<compile_context>
chip_gen: v7x
topology: tpu7x:2x2x1
jax: 0.10.0
libtpu: 0.0.40
codegen_flags: <defaults>
</compile_context>

<pallas_src>
import jax
import jax.numpy as jnp
from jax.experimental import pallas as pl
from jax.experimental.pallas import tpu as pltpu


def _lstm_layer(x_all_bf16, wih_ref, whh_ref, b_ref, feat, seq_ref, xproj_ref,
                T, Bc, H):
    """One LSTM layer over the whole (time-major, batch-chunk) sequence.

    x_all_bf16:  (T*Bc, Din) bf16 value, row t*Bc + b
    wih_ref:     (Din, 4H) bf16  (PyTorch W_ih^T, gate order i, f, g, o)
    whh_ref:     (H, 4H)   bf16  (PyTorch W_hh^T)
    b_ref:       (1, 4H)   f32   (b_ih + b_hh folded)
    feat:        (Bc, H)   f32 initial h and c
    seq_ref:     (T*Bc, H) f32 VMEM scratch, receives h_t (overwritten in place)
    xproj_ref:   (T*Bc, 4H) f32 VMEM scratch for the batched input projection
    """
    # Batched input projection for ALL timesteps in a single MXU matmul
    # (bf16 inputs, f32 accumulation).  This fully consumes x_all, so seq_ref
    # can be safely overwritten step-by-step below even when x_all came from it.
    xproj_ref[...] = jnp.dot(x_all_bf16, wih_ref[...],
                             preferred_element_type=jnp.float32) + b_ref[...]
    whh = whh_ref[...]                                   # bf16 (H, 4H), resident

    def step(t, carry):
        h, c = carry                                     # f32 (Bc, H)
        row = pl.multiple_of(t * Bc, Bc)                 # 8-sublane aligned
        gates = xproj_ref[pl.ds(row, Bc), :] + jnp.dot(
            h.astype(jnp.bfloat16), whh, preferred_element_type=jnp.float32)
        # NOTE: with toy H=32 these are masked sub-vreg lane slices; real
        # configs should use H that is a multiple of 128 to keep them free.
        i = jax.nn.sigmoid(gates[:, 0:H])
        f = jax.nn.sigmoid(gates[:, H:2 * H])
        g = jnp.tanh(gates[:, 2 * H:3 * H])
        o = jax.nn.sigmoid(gates[:, 3 * H:4 * H])
        c = f * c + i * g
        h = o * jnp.tanh(c)
        seq_ref[pl.ds(row, Bc), :] = h
        return (h, c)

    # Partial unroll: LLO scheduling visibility for small T without exploding
    # code size / vreg live ranges once T grows.
    jax.lax.fori_loop(0, T, step, (feat, feat), unroll=min(T, 8))


def decoder_rnn_kernel(emb_ref, feat_ref,
                       wih0_ref, whh0_ref, b0_ref,
                       wih1_ref, whh1_ref, b1_ref,
                       wih2_ref, whh2_ref, b2_ref,
                       wout_ref, bout_ref,
                       out_ref,
                       seq_ref, xproj_ref):
    TB, _V = out_ref.shape
    H = whh0_ref.shape[0]
    Bc = feat_ref.shape[0]
    T = TB // Bc

    feat = feat_ref[...]                                 # (Bc, H) f32 = h0 = c0

    # ---- 3 stacked LSTM layers (num_layers == 3, hard-coded by expand(3,...))
    # One sequence scratch, reused in place across layers.
    _lstm_layer(emb_ref[...], wih0_ref, whh0_ref, b0_ref, feat,
                seq_ref, xproj_ref, T, Bc, H)
    _lstm_layer(seq_ref[...].astype(jnp.bfloat16), wih1_ref, whh1_ref, b1_ref,
                feat, seq_ref, xproj_ref, T, Bc, H)
    _lstm_layer(seq_ref[...].astype(jnp.bfloat16), wih2_ref, whh2_ref, b2_ref,
                feat, seq_ref, xproj_ref, T, Bc, H)

    # ---- Vocab projection for all timesteps of this batch chunk:
    # one MXU matmul and one lane-dense (T*Bc, V) store (V multiple of 128).
    out_ref[...] = jnp.dot(seq_ref[...].astype(jnp.bfloat16), wout_ref[...],
                           preferred_element_type=jnp.float32) + bout_ref[...]


def decoder_rnn_forward(features, captions, lengths, emb_table,
                        layer_weights, wout, bout, *, chunk=8):
    """features: (B, H) f32; captions: (B, T) int32; lengths: python list, descending.

    Returns packed logits (sum(lengths), vocab), matching
    DecoderRNN.forward(features, captions, lengths).
    """
    B, T = captions.shape
    V, E = emb_table.shape
    H = wout.shape[0]
    # pack_padded_sequence with enforce_sorted=True requires descending lengths;
    # the packed-row gather below assumes the same.
    assert all(int(lengths[i]) >= int(lengths[i + 1])
               for i in range(len(lengths) - 1)), "lengths must be descending"
    assert max(int(l) for l in lengths) <= T

    bf16 = jnp.bfloat16
    Bc = chunk                                     # batch rows per grid program (f32 sublane tile)
    B_pad = ((B + Bc - 1) // Bc) * Bc
    G = B_pad // Bc

    # ---- Embedding lookup = real XLA gather in the wrapper (zero MXU work).
    # Padded batch rows get zero embeddings + zero init state; rows are
    # independent and the padded rows are sliced off below.
    emb_b = jnp.take(emb_table.astype(bf16), captions, axis=0)        # (B, T, E)
    emb_pad = jnp.zeros((B_pad, T, E), bf16).at[:B].set(emb_b)
    emb_tm = emb_pad.reshape(G, Bc, T, E).transpose(0, 2, 1, 3)       # (G, T, Bc, E)
    emb_tm = emb_tm.reshape(G, T * Bc, E)                             # row = t*Bc + b

    feat_pad = jnp.zeros((B_pad, H), jnp.float32).at[:B].set(features)
    feat_g = feat_pad.reshape(G, Bc, H)

    (wih0, whh0, b0), (wih1, whh1, b1), (wih2, whh2, b2) = layer_weights
    bout2d = bout.reshape(1, V).astype(jnp.float32)

    def full(shape):
        return pl.BlockSpec(shape, lambda g, _n=len(shape): (0,) * _n)

    in_specs = [
        pl.BlockSpec((None, T * Bc, E), lambda g: (g, 0, 0)),   # embeddings (bf16)
        pl.BlockSpec((None, Bc, H), lambda g: (g, 0, 0)),       # features = h0 = c0
        full((E, 4 * H)), full((H, 4 * H)), full((1, 4 * H)),   # layer 0
        full((H, 4 * H)), full((H, 4 * H)), full((1, 4 * H)),   # layer 1
        full((H, 4 * H)), full((H, 4 * H)), full((1, 4 * H)),   # layer 2
        full((H, V)), full((1, V)),                             # vocab projection
    ]
    out_spec = pl.BlockSpec((None, T * Bc, V), lambda g: (g, 0, 0))

    # VMEM budget: double-buffered blocks + weights + scratch + headroom.
    weight_bytes = ((E * 4 * H) + 2 * (H * 4 * H) + (H * V)) * 2 + (3 * 4 * H + V) * 4
    block_bytes = (T * Bc * E) * 2 + (Bc * H) * 4 + (T * Bc * V) * 4
    scratch_bytes = (T * Bc * H) * 4 + (T * Bc * 4 * H) * 4
    vmem_limit = int(min(max(2 * (weight_bytes + block_bytes) + scratch_bytes
                             + (4 << 20), 32 << 20), 64 << 20))

    logits_blocks = pl.pallas_call(
        decoder_rnn_kernel,
        out_shape=jax.ShapeDtypeStruct((G, T * Bc, V), jnp.float32),
        grid=(G,),
        in_specs=in_specs,
        out_specs=out_spec,
        scratch_shapes=[
            pltpu.VMEM((T * Bc, H), jnp.float32),       # layer output sequence (in-place reuse)
            pltpu.VMEM((T * Bc, 4 * H), jnp.float32),   # batched x-projection
        ],
        compiler_params=pltpu.CompilerParams(
            dimension_semantics=("parallel",),          # batch chunks -> both TCs on v7x
            vmem_limit_bytes=vmem_limit),
    )(emb_tm, feat_g,
      wih0.astype(bf16), whh0.astype(bf16), b0.astype(jnp.float32),
      wih1.astype(bf16), whh1.astype(bf16), b1.astype(jnp.float32),
      wih2.astype(bf16), whh2.astype(bf16), b2.astype(jnp.float32),
      wout.astype(bf16), bout2d)

    logits = logits_blocks.reshape(G, T, Bc, V).transpose(1, 0, 2, 3)
    logits = logits.reshape(T, B_pad, V)[:, :B, :]                    # (T, B, V)

    # pack_padded_sequence ordering: timestep-major over still-alive batch rows.
    t_idx, b_idx = [], []
    for t in range(T):
        for b in range(B):
            if int(lengths[b]) > t:
                t_idx.append(t)
                b_idx.append(b)
    return logits[jnp.array(t_idx), jnp.array(b_idx)]                 # (sum(lengths), V)


def reference_forward(features, captions, lengths, emb_table, layer_weights,
                      wout, bout):
    """Pure-JAX reference with matching bf16-matmul / f32-accumulate numerics."""
    bf16 = jnp.bfloat16

    def bdot(a, b):
        return jnp.dot(a.astype(bf16), b.astype(bf16),
                       preferred_element_type=jnp.float32)

    B, T = captions.shape
    H = wout.shape[0]
    x_seq = jnp.take(emb_table, captions, axis=0)          # (B, T, E)
    for wih, whh, b in layer_weights:
        h = features
        c = features
        hs = []
        for t in range(T):
            gates = bdot(x_seq[:, t, :], wih) + bdot(h, whh) + b
            i = jax.nn.sigmoid(gates[:, 0:H])
            f = jax.nn.sigmoid(gates[:, H:2 * H])
            g = jnp.tanh(gates[:, 2 * H:3 * H])
            o = jax.nn.sigmoid(gates[:, 3 * H:4 * H])
            c = f * c + i * g
            h = o * jnp.tanh(c)
            hs.append(h)
        x_seq = jnp.stack(hs, axis=1)                      # (B, T, H)
    logits = jnp.stack([bdot(x_seq[:, t, :], wout) + bout for t in range(T)],
                       axis=1)                             # (B, T, V)
    rows = [logits[b, t] for t in range(T) for b in range(B)
            if int(lengths[b]) > t]
    return jnp.stack(rows, axis=0)


if __name__ == "__main__":
    B, T = 2, 8
    VOCAB, EMBED, HIDDEN = 128, 32, 32     # features dim must equal hidden (h0 = features)
    NUM_LAYERS = 3                         # hard-coded by the module's expand(3, ...)
    lengths = [8, 6]                       # descending, as pack_padded_sequence requires

    key = jax.random.PRNGKey(0)
    keys = jax.random.split(key, 16)

    emb_table = 0.1 * jax.random.normal(keys[0], (VOCAB, EMBED), jnp.float32)
    features = 0.5 * jax.random.normal(keys[1], (B, HIDDEN), jnp.float32)
    captions = jax.random.randint(keys[2], (B, T), 0, VOCAB, dtype=jnp.int32)

    layer_weights = []
    kidx = 3
    for layer in range(NUM_LAYERS):
        din = EMBED if layer == 0 else HIDDEN
        # Stored as W^T (Din, 4H) / (H, 4H) for x @ W^T; gate order i, f, g, o.
        wih = 0.2 * jax.random.normal(keys[kidx], (din, 4 * HIDDEN), jnp.float32); kidx += 1
        whh = 0.2 * jax.random.normal(keys[kidx], (HIDDEN, 4 * HIDDEN), jnp.float32); kidx += 1
        # PyTorch's b_ih + b_hh always appear summed -> folded into one bias.
        b = 0.1 * jax.random.normal(keys[kidx], (1, 4 * HIDDEN), jnp.float32); kidx += 1
        layer_weights.append((wih, whh, b))

    wout = 0.2 * jax.random.normal(keys[kidx], (HIDDEN, VOCAB), jnp.float32); kidx += 1
    bout = 0.1 * jax.random.normal(keys[kidx], (VOCAB,), jnp.float32)

    out = decoder_rnn_forward(features, captions, lengths, emb_table,
                              layer_weights, wout, bout)
    out = jax.block_until_ready(out)

    ref = reference_forward(features, captions, lengths, emb_table,
                            layer_weights, wout, bout)
    assert out.shape == (sum(lengths), VOCAB), out.shape
    max_err = float(jnp.max(jnp.abs(out - ref)))
    assert jnp.allclose(out, ref, atol=2e-3, rtol=2e-3), f"mismatch: {max_err}"

    print("KERNEL_OK")
</pallas_src>

<mosaic_0001>
module attributes {stable_mosaic.version = 11 : i64} {
  func.func @decoder_rnn_kernel(%arg0: i32, %arg1: memref<1x64x32xbf16, #tpu.memory_space<vmem>>, %arg2: memref<1x8x32xf32, #tpu.memory_space<vmem>>, %arg3: memref<32x128xbf16, #tpu.memory_space<vmem>>, %arg4: memref<32x128xbf16, #tpu.memory_space<vmem>>, %arg5: memref<1x128xf32, #tpu.memory_space<vmem>>, %arg6: memref<32x128xbf16, #tpu.memory_space<vmem>>, %arg7: memref<32x128xbf16, #tpu.memory_space<vmem>>, %arg8: memref<1x128xf32, #tpu.memory_space<vmem>>, %arg9: memref<32x128xbf16, #tpu.memory_space<vmem>>, %arg10: memref<32x128xbf16, #tpu.memory_space<vmem>>, %arg11: memref<1x128xf32, #tpu.memory_space<vmem>>, %arg12: memref<32x128xbf16, #tpu.memory_space<vmem>>, %arg13: memref<1x128xf32, #tpu.memory_space<vmem>>, %arg14: memref<1x64x128xf32, #tpu.memory_space<vmem>>, %arg15: memref<64x32xf32, #tpu.memory_space<vmem>>, %arg16: memref<64x128xf32, #tpu.memory_space<vmem>>) attributes {dimension_semantics = [#tpu.dimension_semantics<parallel>], iteration_bounds = array<i64: 1>, scalar_prefetch = 0 : i64, scratch_operands = 2 : i64, tpu.core_type = #tpu.core_type<tc>, window_params = [{transform_indices = @transform_0, window_bounds = array<i64: 1, 64, 32>}, {transform_indices = @transform_1, window_bounds = array<i64: 1, 8, 32>}, {pipeline_mode = #tpu.pipeline_mode<synchronous>, transform_indices = @transform_2, window_bounds = array<i64: 32, 128>}, {pipeline_mode = #tpu.pipeline_mode<synchronous>, transform_indices = @transform_3, window_bounds = array<i64: 32, 128>}, {pipeline_mode = #tpu.pipeline_mode<synchronous>, transform_indices = @transform_4, window_bounds = array<i64: 1, 128>}, {pipeline_mode = #tpu.pipeline_mode<synchronous>, transform_indices = @transform_5, window_bounds = array<i64: 32, 128>}, {pipeline_mode = #tpu.pipeline_mode<synchronous>, transform_indices = @transform_6, window_bounds = array<i64: 32, 128>}, {pipeline_mode = #tpu.pipeline_mode<synchronous>, transform_indices = @transform_7, window_bounds = array<i64: 1, 128>}, {pipeline_mode = #tpu.pipeline_mode<synchronous>, transform_indices = @transform_8, window_bounds = array<i64: 32, 128>}, {pipeline_mode = #tpu.pipeline_mode<synchronous>, transform_indices = @transform_9, window_bounds = array<i64: 32, 128>}, {pipeline_mode = #tpu.pipeline_mode<synchronous>, transform_indices = @transform_10, window_bounds = array<i64: 1, 128>}, {pipeline_mode = #tpu.pipeline_mode<synchronous>, transform_indices = @transform_11, window_bounds = array<i64: 32, 128>}, {pipeline_mode = #tpu.pipeline_mode<synchronous>, transform_indices = @transform_12, window_bounds = array<i64: 1, 128>}, {transform_indices = @transform_13, window_bounds = array<i64: 1, 64, 128>}]} {
    %c0 = arith.constant 0 : index
    %c0_0 = arith.constant 0 : index
    %c0_1 = arith.constant 0 : index
    %0 = vector.load %arg2[%c0, %c0_0, %c0_1] : memref<1x8x32xf32, #tpu.memory_space<vmem>>, vector<1x8x32xf32>
    %1 = vector.shape_cast %0 : vector<1x8x32xf32> to vector<8x32xf32>
    %c0_2 = arith.constant 0 : index
    %c0_3 = arith.constant 0 : index
    %c0_4 = arith.constant 0 : index
    %2 = vector.load %arg1[%c0_2, %c0_3, %c0_4] : memref<1x64x32xbf16, #tpu.memory_space<vmem>>, vector<1x64x32xbf16>
    %3 = vector.shape_cast %2 : vector<1x64x32xbf16> to vector<64x32xbf16>
    %c0_5 = arith.constant 0 : index
    %c0_6 = arith.constant 0 : index
    %4 = vector.load %arg3[%c0_5, %c0_6] : memref<32x128xbf16, #tpu.memory_space<vmem>>, vector<32x128xbf16>
    %cst = arith.constant dense<0.000000e+00> : vector<64x128xf32>
    %5 = tpu.matmul %3, %4, %cst {dimension_numbers = #tpu.dot_dimension_numbers<[1], [0], [0], [1], [0, 0, 1, 1], [], []>} : vector<64x32xbf16>, vector<32x128xbf16>, vector<64x128xf32> -> vector<64x128xf32>
    %c0_7 = arith.constant 0 : index
    %c0_8 = arith.constant 0 : index
    %6 = vector.load %arg5[%c0_7, %c0_8] : memref<1x128xf32, #tpu.memory_space<vmem>>, vector<1x128xf32>
    %7 = vector.broadcast %6 : vector<1x128xf32> to vector<64x128xf32>
    %8 = arith.addf %5, %7 : vector<64x128xf32>
    %c0_9 = arith.constant 0 : index
    %c0_10 = arith.constant 0 : index
    %9 = vector.load %arg16[%c0_9, %c0_10] : memref<64x128xf32, #tpu.memory_space<vmem>>, vector<64x128xf32>
    tpu.vector_store %arg16[%c0_9, %c0_10], %8 {strides = array<i32>} : memref<64x128xf32, #tpu.memory_space<vmem>>, vector<64x128xf32>,
    %c0_11 = arith.constant 0 : index
    %c0_12 = arith.constant 0 : index
    %10 = vector.load %arg4[%c0_11, %c0_12] : memref<32x128xbf16, #tpu.memory_space<vmem>>, vector<32x128xbf16>
    %c0_i32 = arith.constant 0 : i32
    %c8_i32 = arith.constant 8 : i32
    %11 = arith.muli %c0_i32, %c8_i32 : i32
    %12 = tpu.assume_multiple %11, 8 : i32
    %13 = arith.index_cast %12 : i32 to index
    %c0_13 = arith.constant 0 : index
    %14 = vector.load %arg16[%13, %c0_13] : memref<64x128xf32, #tpu.memory_space<vmem>>, vector<8x128xf32>
    %15 = arith.truncf %1 : vector<8x32xf32> to vector<8x32xbf16>
    %cst_14 = arith.constant dense<0.000000e+00> : vector<8x128xf32>
    %16 = tpu.matmul %15, %10, %cst_14 {dimension_numbers = #tpu.dot_dimension_numbers<[1], [0], [0], [1], [0, 0, 1, 1], [], []>} : vector<8x32xbf16>, vector<32x128xbf16>, vector<8x128xf32> -> vector<8x128xf32>
    %17 = arith.addf %14, %16 : vector<8x128xf32>
    %18 = vector.extract_strided_slice %17 {offsets = [0, 0], sizes = [8, 32], strides = [1, 1]} : vector<8x128xf32> to vector<8x32xf32>
    %19 = arith.negf %18 : vector<8x32xf32>
    %20 = math.exp %19 : vector<8x32xf32>
    %cst_15 = arith.constant 1.000000e+00 : f32
    %21 = vector.broadcast %cst_15 : f32 to vector<8x32xf32>
    %22 = arith.addf %21, %20 : vector<8x32xf32>
    %23 = arith.divf %21, %22 : vector<8x32xf32>
    %24 = vector.extract_strided_slice %17 {offsets = [0, 32], sizes = [8, 32], strides = [1, 1]} : vector<8x128xf32> to vector<8x32xf32>
    %25 = arith.negf %24 : vector<8x32xf32>
    %26 = math.exp %25 : vector<8x32xf32>
    %cst_16 = arith.constant 1.000000e+00 : f32
    %27 = vector.broadcast %cst_16 : f32 to vector<8x32xf32>
    %28 = arith.addf %27, %26 : vector<8x32xf32>
    %29 = arith.divf %27, %28 : vector<8x32xf32>
    %30 = vector.extract_strided_slice %17 {offsets = [0, 64], sizes = [8, 32], strides = [1, 1]} : vector<8x128xf32> to vector<8x32xf32>
    %31 = math.tanh %30 : vector<8x32xf32>
    %32 = vector.extract_strided_slice %17 {offsets = [0, 96], sizes = [8, 32], strides = [1, 1]} : vector<8x128xf32> to vector<8x32xf32>
    %33 = arith.negf %32 : vector<8x32xf32>
    %34 = math.exp %33 : vector<8x32xf32>
    %cst_17 = arith.constant 1.000000e+00 : f32
    %35 = vector.broadcast %cst_17 : f32 to vector<8x32xf32>
    %36 = arith.addf %35, %34 : vector<8x32xf32>
    %37 = arith.divf %35, %36 : vector<8x32xf32>
    %38 = arith.mulf %29, %1 : vector<8x32xf32>
    %39 = arith.mulf %23, %31 : vector<8x32xf32>
    %40 = arith.addf %38, %39 : vector<8x32xf32>
    %41 = math.tanh %40 : vector<8x32xf32>
    %42 = arith.mulf %37, %41 : vector<8x32xf32>
    %43 = arith.index_cast %12 : i32 to index
    %c0_18 = arith.constant 0 : index
    %44 = vector.load %arg15[%43, %c0_18] : memref<64x32xf32, #tpu.memory_space<vmem>>, vector<8x32xf32>
    tpu.vector_store %arg15[%43, %c0_18], %42 {strides = array<i32>} : memref<64x32xf32, #tpu.memory_space<vmem>>, vector<8x32xf32>,
    %c1_i32 = arith.constant 1 : i32
    %c8_i32_19 = arith.constant 8 : i32
    %45 = arith.muli %c1_i32, %c8_i32_19 : i32
    %46 = tpu.assume_multiple %45, 8 : i32
    %47 = arith.index_cast %46 : i32 to index
    %c0_20 = arith.constant 0 : index
    %48 = vector.load %arg16[%47, %c0_20] : memref<64x128xf32, #tpu.memory_space<vmem>>, vector<8x128xf32>
    %49 = arith.truncf %42 : vector<8x32xf32> to vector<8x32xbf16>
    %cst_21 = arith.constant dense<0.000000e+00> : vector<8x128xf32>
    %50 = tpu.matmul %49, %10, %cst_21 {dimension_numbers = #tpu.dot_dimension_numbers<[1], [0], [0], [1], [0, 0, 1, 1], [], []>} : vector<8x32xbf16>, vector<32x128xbf16>, vector<8x128xf32> -> vector<8x128xf32>
    %51 = arith.addf %48, %50 : vector<8x128xf32>
    %52 = vector.extract_strided_slice %51 {offsets = [0, 0], sizes = [8, 32], strides = [1, 1]} : vector<8x128xf32> to vector<8x32xf32>
    %53 = arith.negf %52 : vector<8x32xf32>
    %54 = math.exp %53 : vector<8x32xf32>
    %cst_22 = arith.constant 1.000000e+00 : f32
    %55 = vector.broadcast %cst_22 : f32 to vector<8x32xf32>
    %56 = arith.addf %55, %54 : vector<8x32xf32>
    %57 = arith.divf %55, %56 : vector<8x32xf32>
    %58 = vector.extract_strided_slice %51 {offsets = [0, 32], sizes = [8, 32], strides = [1, 1]} : vector<8x128xf32> to vector<8x32xf32>
    %59 = arith.negf %58 : vector<8x32xf32>
    %60 = math.exp %59 : vector<8x32xf32>
    %cst_23 = arith.constant 1.000000e+00 : f32
    %61 = vector.broadcast %cst_23 : f32 to vector<8x32xf32>
    %62 = arith.addf %61, %60 : vector<8x32xf32>
    %63 = arith.divf %61, %62 : vector<8x32xf32>
    %64 = vector.extract_strided_slice %51 {offsets = [0, 64], sizes = [8, 32], strides = [1, 1]} : vector<8x128xf32> to vector<8x32xf32>
    %65 = math.tanh %64 : vector<8x32xf32>
    %66 = vector.extract_strided_slice %51 {offsets = [0, 96], sizes = [8, 32], strides = [1, 1]} : vector<8x128xf32> to vector<8x32xf32>
    %67 = arith.negf %66 : vector<8x32xf32>
    %68 = math.exp %67 : vector<8x32xf32>
    %cst_24 = arith.constant 1.000000e+00 : f32
    %69 = vector.broadcast %cst_24 : f32 to vector<8x32xf32>
    %70 = arith.addf %69, %68 : vector<8x32xf32>
    %71 = arith.divf %69, %70 : vector<8x32xf32>
    %72 = arith.mulf %63, %40 : vector<8x32xf32>
    %73 = arith.mulf %57, %65 : vector<8x32xf32>
    %74 = arith.addf %72, %73 : vector<8x32xf32>
    %75 = math.tanh %74 : vector<8x32xf32>
    %76 = arith.mulf %71, %75 : vector<8x32xf32>
    %77 = arith.index_cast %46 : i32 to index
    %c0_25 = arith.constant 0 : index
    %78 = vector.load %arg15[%77, %c0_25] : memref<64x32xf32, #tpu.memory_space<vmem>>, vector<8x32xf32>
    tpu.vector_store %arg15[%77, %c0_25], %76 {strides = array<i32>} : memref<64x32xf32, #tpu.memory_space<vmem>>, vector<8x32xf32>,
    %c2_i32 = arith.constant 2 : i32
    %c8_i32_26 = arith.constant 8 : i32
    %79 = arith.muli %c2_i32, %c8_i32_26 : i32
    %80 = tpu.assume_multiple %79, 8 : i32
    %81 = arith.index_cast %80 : i32 to index
    %c0_27 = arith.constant 0 : index
    %82 = vector.load %arg16[%81, %c0_27] : memref<64x128xf32, #tpu.memory_space<vmem>>, vector<8x128xf32>
    %83 = arith.truncf %76 : vector<8x32xf32> to vector<8x32xbf16>
    %cst_28 = arith.constant dense<0.000000e+00> : vector<8x128xf32>
    %84 = tpu.matmul %83, %10, %cst_28 {dimension_numbers = #tpu.dot_dimension_numbers<[1], [0], [0], [1], [0, 0, 1, 1], [], []>} : vector<8x32xbf16>, vector<32x128xbf16>, vector<8x128xf32> -> vector<8x128xf32>
    %85 = arith.addf %82, %84 : vector<8x128xf32>
    %86 = vector.extract_strided_slice %85 {offsets = [0, 0], sizes = [8, 32], strides = [1, 1]} : vector<8x128xf32> to vector<8x32xf32>
    %87 = arith.negf %86 : vector<8x32xf32>
    %88 = math.exp %87 : vector<8x32xf32>
    %cst_29 = arith.constant 1.000000e+00 : f32
    %89 = vector.broadcast %cst_29 : f32 to vector<8x32xf32>
    %90 = arith.addf %89, %88 : vector<8x32xf32>
    %91 = arith.divf %89, %90 : vector<8x32xf32>
    %92 = vector.extract_strided_slice %85 {offsets = [0, 32], sizes = [8, 32], strides = [1, 1]} : vector<8x128xf32> to vector<8x32xf32>
    %93 = arith.negf %92 : vector<8x32xf32>
    %94 = math.exp %93 : vector<8x32xf32>
    %cst_30 = arith.constant 1.000000e+00 : f32
    %95 = vector.broadcast %cst_30 : f32 to vector<8x32xf32>
    %96 = arith.addf %95, %94 : vector<8x32xf32>
    %97 = arith.divf %95, %96 : vector<8x32xf32>
    %98 = vector.extract_strided_slice %85 {offsets = [0, 64], sizes = [8, 32], strides = [1, 1]} : vector<8x128xf32> to vector<8x32xf32>
    %99 = math.tanh %98 : vector<8x32xf32>
    %100 = vector.extract_strided_slice %85 {offsets = [0, 96], sizes = [8, 32], strides = [1, 1]} : vector<8x128xf32> to vector<8x32xf32>
    %101 = arith.negf %100 : vector<8x32xf32>
    %102 = math.exp %101 : vector<8x32xf32>
    %cst_31 = arith.constant 1.000000e+00 : f32
    %103 = vector.broadcast %cst_31 : f32 to vector<8x32xf32>
    %104 = arith.addf %103, %102 : vector<8x32xf32>
    %105 = arith.divf %103, %104 : vector<8x32xf32>
    %106 = arith.mulf %97, %74 : vector<8x32xf32>
    %107 = arith.mulf %91, %99 : vector<8x32xf32>
    %108 = arith.addf %106, %107 : vector<8x32xf32>
    %109 = math.tanh %108 : vector<8x32xf32>
    %110 = arith.mulf %105, %109 : vector<8x32xf32>
    %111 = arith.index_cast %80 : i32 to index
    %c0_32 = arith.constant 0 : index
    %112 = vector.load %arg15[%111, %c0_32] : memref<64x32xf32, #tpu.memory_space<vmem>>, vector<8x32xf32>
    tpu.vector_store %arg15[%111, %c0_32], %110 {strides = array<i32>} : memref<64x32xf32, #tpu.memory_space<vmem>>, vector<8x32xf32>,
    %c3_i32 = arith.constant 3 : i32
    %c8_i32_33 = arith.constant 8 : i32
    %113 = arith.muli %c3_i32, %c8_i32_33 : i32
    %114 = tpu.assume_multiple %113, 8 : i32
    %115 = arith.index_cast %114 : i32 to index
    %c0_34 = arith.constant 0 : index
    %116 = vector.load %arg16[%115, %c0_34] : memref<64x128xf32, #tpu.memory_space<vmem>>, vector<8x128xf32>
    %117 = arith.truncf %110 : vector<8x32xf32> to vector<8x32xbf16>
    %cst_35 = arith.constant dense<0.000000e+00> : vector<8x128xf32>
    %118 = tpu.matmul %117, %10, %cst_35 {dimension_numbers = #tpu.dot_dimension_numbers<[1], [0], [0], [1], [0, 0, 1, 1], [], []>} : vector<8x32xbf16>, vector<32x128xbf16>, vector<8x128xf32> -> vector<8x128xf32>
    %119 = arith.addf %116, %118 : vector<8x128xf32>
    %120 = vector.extract_strided_slice %119 {offsets = [0, 0], sizes = [8, 32], strides = [1, 1]} : vector<8x128xf32> to vector<8x32xf32>
    %121 = arith.negf %120 : vector<8x32xf32>
    %122 = math.exp %121 : vector<8x32xf32>
    %cst_36 = arith.constant 1.000000e+00 : f32
    %123 = vector.broadcast %cst_36 : f32 to vector<8x32xf32>
    %124 = arith.addf %123, %122 : vector<8x32xf32>
    %125 = arith.divf %123, %124 : vector<8x32xf32>
    %126 = vector.extract_strided_slice %119 {offsets = [0, 32], sizes = [8, 32], strides = [1, 1]} : vector<8x128xf32> to vector<8x32xf32>
    %127 = arith.negf %126 : vector<8x32xf32>
    %128 = math.exp %127 : vector<8x32xf32>
    %cst_37 = arith.constant 1.000000e+00 : f32
    %129 = vector.broadcast %cst_37 : f32 to vector<8x32xf32>
    %130 = arith.addf %129, %128 : vector<8x32xf32>
    %131 = arith.divf %129, %130 : vector<8x32xf32>
    %132 = vector.extract_strided_slice %119 {offsets = [0, 64], sizes = [8, 32], strides = [1, 1]} : vector<8x128xf32> to vector<8x32xf32>
    %133 = math.tanh %132 : vector<8x32xf32>
    %134 = vector.extract_strided_slice %119 {offsets = [0, 96], sizes = [8, 32], strides = [1, 1]} : vector<8x128xf32> to vector<8x32xf32>
    %135 = arith.negf %134 : vector<8x32xf32>
    %136 = math.exp %135 : vector<8x32xf32>
    %cst_38 = arith.constant 1.000000e+00 : f32
    %137 = vector.broadcast %cst_38 : f32 to vector<8x32xf32>
    %138 = arith.addf %137, %136 : vector<8x32xf32>
    %139 = arith.divf %137, %138 : vector<8x32xf32>
    %140 = arith.mulf %131, %108 : vector<8x32xf32>
    %141 = arith.mulf %125, %133 : vector<8x32xf32>
    %142 = arith.addf %140, %141 : vector<8x32xf32>
    %143 = math.tanh %142 : vector<8x32xf32>
    %144 = arith.mulf %139, %143 : vector<8x32xf32>
    %145 = arith.index_cast %114 : i32 to index
    %c0_39 = arith.constant 0 : index
    %146 = vector.load %arg15[%145, %c0_39] : memref<64x32xf32, #tpu.memory_space<vmem>>, vector<8x32xf32>
    tpu.vector_store %arg15[%145, %c0_39], %144 {strides = array<i32>} : memref<64x32xf32, #tpu.memory_space<vmem>>, vector<8x32xf32>,
    %c4_i32 = arith.constant 4 : i32
    %c8_i32_40 = arith.constant 8 : i32
    %147 = arith.muli %c4_i32, %c8_i32_40 : i32
    %148 = tpu.assume_multiple %147, 8 : i32
    %149 = arith.index_cast %148 : i32 to index
    %c0_41 = arith.constant 0 : index
    %150 = vector.load %arg16[%149, %c0_41] : memref<64x128xf32, #tpu.memory_space<vmem>>, vector<8x128xf32>
    %151 = arith.truncf %144 : vector<8x32xf32> to vector<8x32xbf16>
    %cst_42 = arith.constant dense<0.000000e+00> : vector<8x128xf32>
    %152 = tpu.matmul %151, %10, %cst_42 {dimension_numbers = #tpu.dot_dimension_numbers<[1], [0], [0], [1], [0, 0, 1, 1], [], []>} : vector<8x32xbf16>, vector<32x128xbf16>, vector<8x128xf32> -> vector<8x128xf32>
    %153 = arith.addf %150, %152 : vector<8x128xf32>
    %154 = vector.extract_strided_slice %153 {offsets = [0, 0], sizes = [8, 32], strides = [1, 1]} : vector<8x128xf32> to vector<8x32xf32>
    %155 = arith.negf %154 : vector<8x32xf32>
    %156 = math.exp %155 : vector<8x32xf32>
    %cst_43 = arith.constant 1.000000e+00 : f32
    %157 = vector.broadcast %cst_43 : f32 to vector<8x32xf32>
    %158 = arith.addf %157, %156 : vector<8x32xf32>
    %159 = arith.divf %157, %158 : vector<8x32xf32>
    %160 = vector.extract_strided_slice %153 {offsets = [0, 32], sizes = [8, 32], strides = [1, 1]} : vector<8x128xf32> to vector<8x32xf32>
    %161 = arith.negf %160 : vector<8x32xf32>
    %162 = math.exp %161 : vector<8x32xf32>
    %cst_44 = arith.constant 1.000000e+00 : f32
    %163 = vector.broadcast %cst_44 : f32 to vector<8x32xf32>
    %164 = arith.addf %163, %162 : vector<8x32xf32>
    %165 = arith.divf %163, %164 : vector<8x32xf32>
    %166 = vector.extract_strided_slice %153 {offsets = [0, 64], sizes = [8, 32], strides = [1, 1]} : vector<8x128xf32> to vector<8x32xf32>
    %167 = math.tanh %166 : vector<8x32xf32>
    %168 = vector.extract_strided_slice %153 {offsets = [0, 96], sizes = [8, 32], strides = [1, 1]} : vector<8x128xf32> to vector<8x32xf32>
    %169 = arith.negf %168 : vector<8x32xf32>
    %170 = math.exp %169 : vector<8x32xf32>
    %cst_45 = arith.constant 1.000000e+00 : f32
    %171 = vector.broadcast %cst_45 : f32 to vector<8x32xf32>
    %172 = arith.addf %171, %170 : vector<8x32xf32>
    %173 = arith.divf %171, %172 : vector<8x32xf32>
    %174 = arith.mulf %165, %142 : vector<8x32xf32>
    %175 = arith.mulf %159, %167 : vector<8x32xf32>
    %176 = arith.addf %174, %175 : vector<8x32xf32>
    %177 = math.tanh %176 : vector<8x32xf32>
    %178 = arith.mulf %173, %177 : vector<8x32xf32>
    %179 = arith.index_cast %148 : i32 to index
    %c0_46 = arith.constant 0 : index
    %180 = vector.load %arg15[%179, %c0_46] : memref<64x32xf32, #tpu.memory_space<vmem>>, vector<8x32xf32>
    tpu.vector_store %arg15[%179, %c0_46], %178 {strides = array<i32>} : memref<64x32xf32, #tpu.memory_space<vmem>>, vector<8x32xf32>,
    %c5_i32 = arith.constant 5 : i32
    %c8_i32_47 = arith.constant 8 : i32
    %181 = arith.muli %c5_i32, %c8_i32_47 : i32
    %182 = tpu.assume_multiple %181, 8 : i32
    %183 = arith.index_cast %182 : i32 to index
    %c0_48 = arith.constant 0 : index
    %184 = vector.load %arg16[%183, %c0_48] : memref<64x128xf32, #tpu.memory_space<vmem>>, vector<8x128xf32>
    %185 = arith.truncf %178 : vector<8x32xf32> to vector<8x32xbf16>
    %cst_49 = arith.constant dense<0.000000e+00> : vector<8x128xf32>
    %186 = tpu.matmul %185, %10, %cst_49 {dimension_numbers = #tpu.dot_dimension_numbers<[1], [0], [0], [1], [0, 0, 1, 1], [], []>} : vector<8x32xbf16>, vector<32x128xbf16>, vector<8x128xf32> -> vector<8x128xf32>
    %187 = arith.addf %184, %186 : vector<8x128xf32>
    %188 = vector.extract_strided_slice %187 {offsets = [0, 0], sizes = [8, 32], strides = [1, 1]} : vector<8x128xf32> to vector<8x32xf32>
    %189 = arith.negf %188 : vector<8x32xf32>
    %190 = math.exp %189 : vector<8x32xf32>
    %cst_50 = arith.constant 1.000000e+00 : f32
    %191 = vector.broadcast %cst_50 : f32 to vector<8x32xf32>
    %192 = arith.addf %191, %190 : vector<8x32xf32>
    %193 = arith.divf %191, %192 : vector<8x32xf32>
    %194 = vector.extract_strided_slice %187 {offsets = [0, 32], sizes = [8, 32], strides = [1, 1]} : vector<8x128xf32> to vector<8x32xf32>
    %195 = arith.negf %194 : vector<8x32xf32>
    %196 = math.exp %195 : vector<8x32xf32>
    %cst_51 = arith.constant 1.000000e+00 : f32
    %197 = vector.broadcast %cst_51 : f32 to vector<8x32xf32>
    %198 = arith.addf %197, %196 : vector<8x32xf32>
    %199 = arith.divf %197, %198 : vector<8x32xf32>
    %200 = vector.extract_strided_slice %187 {offsets = [0, 64], sizes = [8, 32], strides = [1, 1]} : vector<8x128xf32> to vector<8x32xf32>
    %201 = math.tanh %200 : vector<8x32xf32>
    %202 = vector.extract_strided_slice %187 {offsets = [0, 96], sizes = [8, 32], strides = [1, 1]} : vector<8x128xf32> to vector<8x32xf32>
    %203 = arith.negf %202 : vector<8x32xf32>
    %204 = math.exp %203 : vector<8x32xf32>
    %cst_52 = arith.constant 1.000000e+00 : f32
    %205 = vector.broadcast %cst_52 : f32 to vector<8x32xf32>
    %206 = arith.addf %205, %204 : vector<8x32xf32>
    %207 = arith.divf %205, %206 : vector<8x32xf32>
    %208 = arith.mulf %199, %176 : vector<8x32xf32>
    %209 = arith.mulf %193, %201 : vector<8x32xf32>
    %210 = arith.addf %208, %209 : vector<8x32xf32>
    %211 = math.tanh %210 : vector<8x32xf32>
    %212 = arith.mulf %207, %211 : vector<8x32xf32>
    %213 = arith.index_cast %182 : i32 to index
    %c0_53 = arith.constant 0 : index
    %214 = vector.load %arg15[%213, %c0_53] : memref<64x32xf32, #tpu.memory_space<vmem>>, vector<8x32xf32>
    tpu.vector_store %arg15[%213, %c0_53], %212 {strides = array<i32>} : memref<64x32xf32, #tpu.memory_space<vmem>>, vector<8x32xf32>,
    %c6_i32 = arith.constant 6 : i32
    %c8_i32_54 = arith.constant 8 : i32
    %215 = arith.muli %c6_i32, %c8_i32_54 : i32
    %216 = tpu.assume_multiple %215, 8 : i32
    %217 = arith.index_cast %216 : i32 to index
    %c0_55 = arith.constant 0 : index
    %218 = vector.load %arg16[%217, %c0_55] : memref<64x128xf32, #tpu.memory_space<vmem>>, vector<8x128xf32>
    %219 = arith.truncf %212 : vector<8x32xf32> to vector<8x32xbf16>
    %cst_56 = arith.constant dense<0.000000e+00> : vector<8x128xf32>
    %220 = tpu.matmul %219, %10, %cst_56 {dimension_numbers = #tpu.dot_dimension_numbers<[1], [0], [0], [1], [0, 0, 1, 1], [], []>} : vector<8x32xbf16>, vector<32x128xbf16>, vector<8x128xf32> -> vector<8x128xf32>
    %221 = arith.addf %218, %220 : vector<8x128xf32>
    %222 = vector.extract_strided_slice %221 {offsets = [0, 0], sizes = [8, 32], strides = [1, 1]} : vector<8x128xf32> to vector<8x32xf32>
    %223 = arith.negf %222 : vector<8x32xf32>
    %224 = math.exp %223 : vector<8x32xf32>
    %cst_57 = arith.constant 1.000000e+00 : f32
    %225 = vector.broadcast %cst_57 : f32 to vector<8x32xf32>
    %226 = arith.addf %225, %224 : vector<8x32xf32>
    %227 = arith.divf %225, %226 : vector<8x32xf32>
    %228 = vector.extract_strided_slice %221 {offsets = [0, 32], sizes = [8, 32], strides = [1, 1]} : vector<8x128xf32> to vector<8x32xf32>
    %229 = arith.negf %228 : vector<8x32xf32>
    %230 = math.exp %229 : vector<8x32xf32>
    %cst_58 = arith.constant 1.000000e+00 : f32
    %231 = vector.broadcast %cst_58 : f32 to vector<8x32xf32>
    %232 = arith.addf %231, %230 : vector<8x32xf32>
    %233 = arith.divf %231, %232 : vector<8x32xf32>
    %234 = vector.extract_strided_slice %221 {offsets = [0, 64], sizes = [8, 32], strides = [1, 1]} : vector<8x128xf32> to vector<8x32xf32>
    %235 = math.tanh %234 : vector<8x32xf32>
    %236 = vector.extract_strided_slice %221 {offsets = [0, 96], sizes = [8, 32], strides = [1, 1]} : vector<8x128xf32> to vector<8x32xf32>
    %237 = arith.negf %236 : vector<8x32xf32>
    %238 = math.exp %237 : vector<8x32xf32>
    %cst_59 = arith.constant 1.000000e+00 : f32
    %239 = vector.broadcast %cst_59 : f32 to vector<8x32xf32>
    %240 = arith.addf %239, %238 : vector<8x32xf32>
    %241 = arith.divf %239, %240 : vector<8x32xf32>
    %242 = arith.mulf %233, %210 : vector<8x32xf32>
    %243 = arith.mulf %227, %235 : vector<8x32xf32>
    %244 = arith.addf %242, %243 : vector<8x32xf32>
    %245 = math.tanh %244 : vector<8x32xf32>
    %246 = arith.mulf %241, %245 : vector<8x32xf32>
    %247 = arith.index_cast %216 : i32 to index
    %c0_60 = arith.constant 0 : index
    %248 = vector.load %arg15[%247, %c0_60] : memref<64x32xf32, #tpu.memory_space<vmem>>, vector<8x32xf32>
    tpu.vector_store %arg15[%247, %c0_60], %246 {strides = array<i32>} : memref<64x32xf32, #tpu.memory_space<vmem>>, vector<8x32xf32>,
    %c7_i32 = arith.constant 7 : i32
    %c8_i32_61 = arith.constant 8 : i32
    %249 = arith.muli %c7_i32, %c8_i32_61 : i32
    %250 = tpu.assume_multiple %249, 8 : i32
    %251 = arith.index_cast %250 : i32 to index
    %c0_62 = arith.constant 0 : index
    %252 = vector.load %arg16[%251, %c0_62] : memref<64x128xf32, #tpu.memory_space<vmem>>, vector<8x128xf32>
    %253 = arith.truncf %246 : vector<8x32xf32> to vector<8x32xbf16>
    %cst_63 = arith.constant dense<0.000000e+00> : vector<8x128xf32>
    %254 = tpu.matmul %253, %10, %cst_63 {dimension_numbers = #tpu.dot_dimension_numbers<[1], [0], [0], [1], [0, 0, 1, 1], [], []>} : vector<8x32xbf16>, vector<32x128xbf16>, vector<8x128xf32> -> vector<8x128xf32>
    %255 = arith.addf %252, %254 : vector<8x128xf32>
    %256 = vector.extract_strided_slice %255 {offsets = [0, 0], sizes = [8, 32], strides = [1, 1]} : vector<8x128xf32> to vector<8x32xf32>
    %257 = arith.negf %256 : vector<8x32xf32>
    %258 = math.exp %257 : vector<8x32xf32>
    %cst_64 = arith.constant 1.000000e+00 : f32
    %259 = vector.broadcast %cst_64 : f32 to vector<8x32xf32>
    %260 = arith.addf %259, %258 : vector<8x32xf32>
    %261 = arith.divf %259, %260 : vector<8x32xf32>
    %262 = vector.extract_strided_slice %255 {offsets = [0, 32], sizes = [8, 32], strides = [1, 1]} : vector<8x128xf32> to vector<8x32xf32>
    %263 = arith.negf %262 : vector<8x32xf32>
    %264 = math.exp %263 : vector<8x32xf32>
    %cst_65 = arith.constant 1.000000e+00 : f32
    %265 = vector.broadcast %cst_65 : f32 to vector<8x32xf32>
    %266 = arith.addf %265, %264 : vector<8x32xf32>
    %267 = arith.divf %265, %266 : vector<8x32xf32>
    %268 = vector.extract_strided_slice %255 {offsets = [0, 64], sizes = [8, 32], strides = [1, 1]} : vector<8x128xf32> to vector<8x32xf32>
    %269 = math.tanh %268 : vector<8x32xf32>
    %270 = vector.extract_strided_slice %255 {offsets = [0, 96], sizes = [8, 32], strides = [1, 1]} : vector<8x128xf32> to vector<8x32xf32>
    %271 = arith.negf %270 : vector<8x32xf32>
    %272 = math.exp %271 : vector<8x32xf32>
    %cst_66 = arith.constant 1.000000e+00 : f32
    %273 = vector.broadcast %cst_66 : f32 to vector<8x32xf32>
    %274 = arith.addf %273, %272 : vector<8x32xf32>
    %275 = arith.divf %273, %274 : vector<8x32xf32>
    %276 = arith.mulf %267, %244 : vector<8x32xf32>
    %277 = arith.mulf %261, %269 : vector<8x32xf32>
    %278 = arith.addf %276, %277 : vector<8x32xf32>
    %279 = math.tanh %278 : vector<8x32xf32>
    %280 = arith.mulf %275, %279 : vector<8x32xf32>
    %281 = arith.index_cast %250 : i32 to index
    %c0_67 = arith.constant 0 : index
    %282 = vector.load %arg15[%281, %c0_67] : memref<64x32xf32, #tpu.memory_space<vmem>>, vector<8x32xf32>
    tpu.vector_store %arg15[%281, %c0_67], %280 {strides = array<i32>} : memref<64x32xf32, #tpu.memory_space<vmem>>, vector<8x32xf32>,
    %c8_i32_68 = arith.constant 8 : i32
    %c0_69 = arith.constant 0 : index
    %c0_70 = arith.constant 0 : index
    %283 = vector.load %arg15[%c0_69, %c0_70] : memref<64x32xf32, #tpu.memory_space<vmem>>, vector<64x32xf32>
    %284 = arith.truncf %283 : vector<64x32xf32> to vector<64x32xbf16>
    %c0_71 = arith.constant 0 : index
    %c0_72 = arith.constant 0 : index
    %285 = vector.load %arg6[%c0_71, %c0_72] : memref<32x128xbf16, #tpu.memory_space<vmem>>, vector<32x128xbf16>
    %cst_73 = arith.constant dense<0.000000e+00> : vector<64x128xf32>
    %286 = tpu.matmul %284, %285, %cst_73 {dimension_numbers = #tpu.dot_dimension_numbers<[1], [0], [0], [1], [0, 0, 1, 1], [], []>} : vector<64x32xbf16>, vector<32x128xbf16>, vector<64x128xf32> -> vector<64x128xf32>
    %c0_74 = arith.constant 0 : index
    %c0_75 = arith.constant 0 : index
    %287 = vector.load %arg8[%c0_74, %c0_75] : memref<1x128xf32, #tpu.memory_space<vmem>>, vector<1x128xf32>
    %288 = vector.broadcast %287 : vector<1x128xf32> to vector<64x128xf32>
    %289 = arith.addf %286, %288 : vector<64x128xf32>
    %c0_76 = arith.constant 0 : index
    %c0_77 = arith.constant 0 : index
    %290 = vector.load %arg16[%c0_76, %c0_77] : memref<64x128xf32, #tpu.memory_space<vmem>>, vector<64x128xf32>
    tpu.vector_store %arg16[%c0_76, %c0_77], %289 {strides = array<i32>} : memref<64x128xf32, #tpu.memory_space<vmem>>, vector<64x128xf32>,
    %c0_78 = arith.constant 0 : index
    %c0_79 = arith.constant 0 : index
    %291 = vector.load %arg7[%c0_78, %c0_79] : memref<32x128xbf16, #tpu.memory_space<vmem>>, vector<32x128xbf16>
    %c0_i32_80 = arith.constant 0 : i32
    %c8_i32_81 = arith.constant 8 : i32
    %292 = arith.muli %c0_i32_80, %c8_i32_81 : i32
    %293 = tpu.assume_multiple %292, 8 : i32
    %294 = arith.index_cast %293 : i32 to index
    %c0_82 = arith.constant 0 : index
    %295 = vector.load %arg16[%294, %c0_82] : memref<64x128xf32, #tpu.memory_space<vmem>>, vector<8x128xf32>
    %296 = arith.truncf %1 : vector<8x32xf32> to vector<8x32xbf16>
    %cst_83 = arith.constant dense<0.000000e+00> : vector<8x128xf32>
    %297 = tpu.matmul %296, %291, %cst_83 {dimension_numbers = #tpu.dot_dimension_numbers<[1], [0], [0], [1], [0, 0, 1, 1], [], []>} : vector<8x32xbf16>, vector<32x128xbf16>, vector<8x128xf32> -> vector<8x128xf32>
    %298 = arith.addf %295, %297 : vector<8x128xf32>
    %299 = vector.extract_strided_slice %298 {offsets = [0, 0], sizes = [8, 32], strides = [1, 1]} : vector<8x128xf32> to vector<8x32xf32>
    %300 = arith.negf %299 : vector<8x32xf32>
    %301 = math.exp %300 : vector<8x32xf32>
    %cst_84 = arith.constant 1.000000e+00 : f32
    %302 = vector.broadcast %cst_84 : f32 to vector<8x32xf32>
    %303 = arith.addf %302, %301 : vector<8x32xf32>
    %304 = arith.divf %302, %303 : vector<8x32xf32>
    %305 = vector.extract_strided_slice %298 {offsets = [0, 32], sizes = [8, 32], strides = [1, 1]} : vector<8x128xf32> to vector<8x32xf32>
    %306 = arith.negf %305 : vector<8x32xf32>
    %307 = math.exp %306 : vector<8x32xf32>
    %cst_85 = arith.constant 1.000000e+00 : f32
    %308 = vector.broadcast %cst_85 : f32 to vector<8x32xf32>
    %309 = arith.addf %308, %307 : vector<8x32xf32>
    %310 = arith.divf %308, %309 : vector<8x32xf32>
    %311 = vector.extract_strided_slice %298 {offsets = [0, 64], sizes = [8, 32], strides = [1, 1]} : vector<8x128xf32> to vector<8x32xf32>
    %312 = math.tanh %311 : vector<8x32xf32>
    %313 = vector.extract_strided_slice %298 {offsets = [0, 96], sizes = [8, 32], strides = [1, 1]} : vector<8x128xf32> to vector<8x32xf32>
    %314 = arith.negf %313 : vector<8x32xf32>
    %315 = math.exp %314 : vector<8x32xf32>
    %cst_86 = arith.constant 1.000000e+00 : f32
    %316 = vector.broadcast %cst_86 : f32 to vector<8x32xf32>
    %317 = arith.addf %316, %315 : vector<8x32xf32>
    %318 = arith.divf %316, %317 : vector<8x32xf32>
    %319 = arith.mulf %310, %1 : vector<8x32xf32>
    %320 = arith.mulf %304, %312 : vector<8x32xf32>
    %321 = arith.addf %319, %320 : vector<8x32xf32>
    %322 = math.tanh %321 : vector<8x32xf32>
    %323 = arith.mulf %318, %322 : vector<8x32xf32>
    %324 = arith.index_cast %293 : i32 to index
    %c0_87 = arith.constant 0 : index
    %325 = vector.load %arg15[%324, %c0_87] : memref<64x32xf32, #tpu.memory_space<vmem>>, vector<8x32xf32>
    tpu.vector_store %arg15[%324, %c0_87], %323 {strides = array<i32>} : memref<64x32xf32, #tpu.memory_space<vmem>>, vector<8x32xf32>,
    %c1_i32_88 = arith.constant 1 : i32
    %c8_i32_89 = arith.constant 8 : i32
    %326 = arith.muli %c1_i32_88, %c8_i32_89 : i32
    %327 = tpu.assume_multiple %326, 8 : i32
    %328 = arith.index_cast %327 : i32 to index
    %c0_90 = arith.constant 0 : index
    %329 = vector.load %arg16[%328, %c0_90] : memref<64x128xf32, #tpu.memory_space<vmem>>, vector<8x128xf32>
    %330 = arith.truncf %323 : vector<8x32xf32> to vector<8x32xbf16>
    %cst_91 = arith.constant dense<0.000000e+00> : vector<8x128xf32>
    %331 = tpu.matmul %330, %291, %cst_91 {dimension_numbers = #tpu.dot_dimension_numbers<[1], [0], [0], [1], [0, 0, 1, 1], [], []>} : vector<8x32xbf16>, vector<32x128xbf16>, vector<8x128xf32> -> vector<8x128xf32>
    %332 = arith.addf %329, %331 : vector<8x128xf32>
    %333 = vector.extract_strided_slice %332 {offsets = [0, 0], sizes = [8, 32], strides = [1, 1]} : vector<8x128xf32> to vector<8x32xf32>
    %334 = arith.negf %333 : vector<8x32xf32>
    %335 = math.exp %334 : vector<8x32xf32>
    %cst_92 = arith.constant 1.000000e+00 : f32
    %336 = vector.broadcast %cst_92 : f32 to vector<8x32xf32>
    %337 = arith.addf %336, %335 : vector<8x32xf32>
    %338 = arith.divf %336, %337 : vector<8x32xf32>
    %339 = vector.extract_strided_slice %332 {offsets = [0, 32], sizes = [8, 32], strides = [1, 1]} : vector<8x128xf32> to vector<8x32xf32>
    %340 = arith.negf %339 : vector<8x32xf32>
    %341 = math.exp %340 : vector<8x32xf32>
    %cst_93 = arith.constant 1.000000e+00 : f32
    %342 = vector.broadcast %cst_93 : f32 to vector<8x32xf32>
    %343 = arith.addf %342, %341 : vector<8x32xf32>
    %344 = arith.divf %342, %343 : vector<8x32xf32>
    %345 = vector.extract_strided_slice %332 {offsets = [0, 64], sizes = [8, 32], strides = [1, 1]} : vector<8x128xf32> to vector<8x32xf32>
    %346 = math.tanh %345 : vector<8x32xf32>
    %347 = vector.extract_strided_slice %332 {offsets = [0, 96], sizes = [8, 32], strides = [1, 1]} : vector<8x128xf32> to vector<8x32xf32>
    %348 = arith.negf %347 : vector<8x32xf32>
    %349 = math.exp %348 : vector<8x32xf32>
    %cst_94 = arith.constant 1.000000e+00 : f32
    %350 = vector.broadcast %cst_94 : f32 to vector<8x32xf32>
    %351 = arith.addf %350, %349 : vector<8x32xf32>
    %352 = arith.divf %350, %351 : vector<8x32xf32>
    %353 = arith.mulf %344, %321 : vector<8x32xf32>
    %354 = arith.mulf %338, %346 : vector<8x32xf32>
    %355 = arith.addf %353, %354 : vector<8x32xf32>
    %356 = math.tanh %355 : vector<8x32xf32>
    %357 = arith.mulf %352, %356 : vector<8x32xf32>
    %358 = arith.index_cast %327 : i32 to index
    %c0_95 = arith.constant 0 : index
    %359 = vector.load %arg15[%358, %c0_95] : memref<64x32xf32, #tpu.memory_space<vmem>>, vector<8x32xf32>
    tpu.vector_store %arg15[%358, %c0_95], %357 {strides = array<i32>} : memref<64x32xf32, #tpu.memory_space<vmem>>, vector<8x32xf32>,
    %c2_i32_96 = arith.constant 2 : i32
    %c8_i32_97 = arith.constant 8 : i32
    %360 = arith.muli %c2_i32_96, %c8_i32_97 : i32
    %361 = tpu.assume_multiple %360, 8 : i32
    %362 = arith.index_cast %361 : i32 to index
    %c0_98 = arith.constant 0 : index
    %363 = vector.load %arg16[%362, %c0_98] : memref<64x128xf32, #tpu.memory_space<vmem>>, vector<8x128xf32>
    %364 = arith.truncf %357 : vector<8x32xf32> to vector<8x32xbf16>
    %cst_99 = arith.constant dense<0.000000e+00> : vector<8x128xf32>
    %365 = tpu.matmul %364, %291, %cst_99 {dimension_numbers = #tpu.dot_dimension_numbers<[1], [0], [0], [1], [0, 0, 1, 1], [], []>} : vector<8x32xbf16>, vector<32x128xbf16>, vector<8x128xf32> -> vector<8x128xf32>
    %366 = arith.addf %363, %365 : vector<8x128xf32>
    %367 = vector.extract_strided_slice %366 {offsets = [0, 0], sizes = [8, 32], strides = [1, 1]} : vector<8x128xf32> to vector<8x32xf32>
    %368 = arith.negf %367 : vector<8x32xf32>
    %369 = math.exp %368 : vector<8x32xf32>
    %cst_100 = arith.constant 1.000000e+00 : f32
    %370 = vector.broadcast %cst_100 : f32 to vector<8x32xf32>
    %371 = arith.addf %370, %369 : vector<8x32xf32>
    %372 = arith.divf %370, %371 : vector<8x32xf32>
    %373 = vector.extract_strided_slice %366 {offsets = [0, 32], sizes = [8, 32], strides = [1, 1]} : vector<8x128xf32> to vector<8x32xf32>
    %374 = arith.negf %373 : vector<8x32xf32>
    %375 = math.exp %374 : vector<8x32xf32>
    %cst_101 = arith.constant 1.000000e+00 : f32
    %376 = vector.broadcast %cst_101 : f32 to vector<8x32xf32>
    %377 = arith.addf %376, %375 : vector<8x32xf32>
    %378 = arith.divf %376, %377 : vector<8x32xf32>
    %379 = vector.extract_strided_slice %366 {offsets = [0, 64], sizes = [8, 32], strides = [1, 1]} : vector<8x128xf32> to vector<8x32xf32>
    %380 = math.tanh %379 : vector<8x32xf32>
    %381 = vector.extract_strided_slice %366 {offsets = [0, 96], sizes = [8, 32], strides = [1, 1]} : vector<8x128xf32> to vector<8x32xf32>
    %382 = arith.negf %381 : vector<8x32xf32>
    %383 = math.exp %382 : vector<8x32xf32>
    %cst_102 = arith.constant 1.000000e+00 : f32
    %384 = vector.broadcast %cst_102 : f32 to vector<8x32xf32>
    %385 = arith.addf %384, %383 : vector<8x32xf32>
    %386 = arith.divf %384, %385 : vector<8x32xf32>
    %387 = arith.mulf %378, %355 : vector<8x32xf32>
    %388 = arith.mulf %372, %380 : vector<8x32xf32>
    %389 = arith.addf %387, %388 : vector<8x32xf32>
    %390 = math.tanh %389 : vector<8x32xf32>
    %391 = arith.mulf %386, %390 : vector<8x32xf32>
    %392 = arith.index_cast %361 : i32 to index
    %c0_103 = arith.constant 0 : index
    %393 = vector.load %arg15[%392, %c0_103] : memref<64x32xf32, #tpu.memory_space<vmem>>, vector<8x32xf32>
    tpu.vector_store %arg15[%392, %c0_103], %391 {strides = array<i32>} : memref<64x32xf32, #tpu.memory_space<vmem>>, vector<8x32xf32>,
    %c3_i32_104 = arith.constant 3 : i32
    %c8_i32_105 = arith.constant 8 : i32
    %394 = arith.muli %c3_i32_104, %c8_i32_105 : i32
    %395 = tpu.assume_multiple %394, 8 : i32
    %396 = arith.index_cast %395 : i32 to index
    %c0_106 = arith.constant 0 : index
    %397 = vector.load %arg16[%396, %c0_106] : memref<64x128xf32, #tpu.memory_space<vmem>>, vector<8x128xf32>
    %398 = arith.truncf %391 : vector<8x32xf32> to vector<8x32xbf16>
    %cst_107 = arith.constant dense<0.000000e+00> : vector<8x128xf32>
    %399 = tpu.matmul %398, %291, %cst_107 {dimension_numbers = #tpu.dot_dimension_numbers<[1], [0], [0], [1], [0, 0, 1, 1], [], []>} : vector<8x32xbf16>, vector<32x128xbf16>, vector<8x128xf32> -> vector<8x128xf32>
    %400 = arith.addf %397, %399 : vector<8x128xf32>
    %401 = vector.extract_strided_slice %400 {offsets = [0, 0], sizes = [8, 32], strides = [1, 1]} : vector<8x128xf32> to vector<8x32xf32>
    %402 = arith.negf %401 : vector<8x32xf32>
    %403 = math.exp %402 : vector<8x32xf32>
    %cst_108 = arith.constant 1.000000e+00 : f32
    %404 = vector.broadcast %cst_108 : f32 to vector<8x32xf32>
    %405 = arith.addf %404, %403 : vector<8x32xf32>
    %406 = arith.divf %404, %405 : vector<8x32xf32>
    %407 = vector.extract_strided_slice %400 {offsets = [0, 32], sizes = [8, 32], strides = [1, 1]} : vector<8x128xf32> to vector<8x32xf32>
    %408 = arith.negf %407 : vector<8x32xf32>
    %409 = math.exp %408 : vector<8x32xf32>
    %cst_109 = arith.constant 1.000000e+00 : f32
    %410 = vector.broadcast %cst_109 : f32 to vector<8x32xf32>
    %411 = arith.addf %410, %409 : vector<8x32xf32>
    %412 = arith.divf %410, %411 : vector<8x32xf32>
    %413 = vector.extract_strided_slice %400 {offsets = [0, 64], sizes = [8, 32], strides = [1, 1]} : vector<8x128xf32> to vector<8x32xf32>
    %414 = math.tanh %413 : vector<8x32xf32>
    %415 = vector.extract_strided_slice %400 {offsets = [0, 96], sizes = [8, 32], strides = [1, 1]} : vector<8x128xf32> to vector<8x32xf32>
    %416 = arith.negf %415 : vector<8x32xf32>
    %417 = math.exp %416 : vector<8x32xf32>
    %cst_110 = arith.constant 1.000000e+00 : f32
    %418 = vector.broadcast %cst_110 : f32 to vector<8x32xf32>
    %419 = arith.addf %418, %417 : vector<8x32xf32>
    %420 = arith.divf %418, %419 : vector<8x32xf32>
    %421 = arith.mulf %412, %389 : vector<8x32xf32>
    %422 = arith.mulf %406, %414 : vector<8x32xf32>
    %423 = arith.addf %421, %422 : vector<8x32xf32>
    %424 = math.tanh %423 : vector<8x32xf32>
    %425 = arith.mulf %420, %424 : vector<8x32xf32>
    %426 = arith.index_cast %395 : i32 to index
    %c0_111 = arith.constant 0 : index
    %427 = vector.load %arg15[%426, %c0_111] : memref<64x32xf32, #tpu.memory_space<vmem>>, vector<8x32xf32>
    tpu.vector_store %arg15[%426, %c0_111], %425 {strides = array<i32>} : memref<64x32xf32, #tpu.memory_space<vmem>>, vector<8x32xf32>,
    %c4_i32_112 = arith.constant 4 : i32
    %c8_i32_113 = arith.constant 8 : i32
    %428 = arith.muli %c4_i32_112, %c8_i32_113 : i32
    %429 = tpu.assume_multiple %428, 8 : i32
    %430 = arith.index_cast %429 : i32 to index
    %c0_114 = arith.constant 0 : index
    %431 = vector.load %arg16[%430, %c0_114] : memref<64x128xf32, #tpu.memory_space<vmem>>, vector<8x128xf32>
    %432 = arith.truncf %425 : vector<8x32xf32> to vector<8x32xbf16>
    %cst_115 = arith.constant dense<0.000000e+00> : vector<8x128xf32>
    %433 = tpu.matmul %432, %291, %cst_115 {dimension_numbers = #tpu.dot_dimension_numbers<[1], [0], [0], [1], [0, 0, 1, 1], [], []>} : vector<8x32xbf16>, vector<32x128xbf16>, vector<8x128xf32> -> vector<8x128xf32>
    %434 = arith.addf %431, %433 : vector<8x128xf32>
    %435 = vector.extract_strided_slice %434 {offsets = [0, 0], sizes = [8, 32], strides = [1, 1]} : vector<8x128xf32> to vector<8x32xf32>
    %436 = arith.negf %435 : vector<8x32xf32>
    %437 = math.exp %436 : vector<8x32xf32>
    %cst_116 = arith.constant 1.000000e+00 : f32
    %438 = vector.broadcast %cst_116 : f32 to vector<8x32xf32>
    %439 = arith.addf %438, %437 : vector<8x32xf32>
    %440 = arith.divf %438, %439 : vector<8x32xf32>
    %441 = vector.extract_strided_slice %434 {offsets = [0, 32], sizes = [8, 32], strides = [1, 1]} : vector<8x128xf32> to vector<8x32xf32>
    %442 = arith.negf %441 : vector<8x32xf32>
    %443 = math.exp %442 : vector<8x32xf32>
    %cst_117 = arith.constant 1.000000e+00 : f32
    %444 = vector.broadcast %cst_117 : f32 to vector<8x32xf32>
    %445 = arith.addf %444, %443 : vector<8x32xf32>
    %446 = arith.divf %444, %445 : vector<8x32xf32>
    %447 = vector.extract_strided_slice %434 {offsets = [0, 64], sizes = [8, 32], strides = [1, 1]} : vector<8x128xf32> to vector<8x32xf32>
    %448 = math.tanh %447 : vector<8x32xf32>
    %449 = vector.extract_strided_slice %434 {offsets = [0, 96], sizes = [8, 32], strides = [1, 1]} : vector<8x128xf32> to vector<8x32xf32>
    %450 = arith.negf %449 : vector<8x32xf32>
    %451 = math.exp %450 : vector<8x32xf32>
    %cst_118 = arith.constant 1.000000e+00 : f32
    %452 = vector.broadcast %cst_118 : f32 to vector<8x32xf32>
    %453 = arith.addf %452, %451 : vector<8x32xf32>
    %454 = arith.divf %452, %453 : vector<8x32xf32>
    %455 = arith.mulf %446, %423 : vector<8x32xf32>
    %456 = arith.mulf %440, %448 : vector<8x32xf32>
    %457 = arith.addf %455, %456 : vector<8x32xf32>
    %458 = math.tanh %457 : vector<8x32xf32>
    %459 = arith.mulf %454, %458 : vector<8x32xf32>
    %460 = arith.index_cast %429 : i32 to index
    %c0_119 = arith.constant 0 : index
    %461 = vector.load %arg15[%460, %c0_119] : memref<64x32xf32, #tpu.memory_space<vmem>>, vector<8x32xf32>
    tpu.vector_store %arg15[%460, %c0_119], %459 {strides = array<i32>} : memref<64x32xf32, #tpu.memory_space<vmem>>, vector<8x32xf32>,
    %c5_i32_120 = arith.constant 5 : i32
    %c8_i32_121 = arith.constant 8 : i32
    %462 = arith.muli %c5_i32_120, %c8_i32_121 : i32
    %463 = tpu.assume_multiple %462, 8 : i32
    %464 = arith.index_cast %463 : i32 to index
    %c0_122 = arith.constant 0 : index
    %465 = vector.load %arg16[%464, %c0_122] : memref<64x128xf32, #tpu.memory_space<vmem>>, vector<8x128xf32>
    %466 = arith.truncf %459 : vector<8x32xf32> to vector<8x32xbf16>
    %cst_123 = arith.constant dense<0.000000e+00> : vector<8x128xf32>
    %467 = tpu.matmul %466, %291, %cst_123 {dimension_numbers = #tpu.dot_dimension_numbers<[1], [0], [0], [1], [0, 0, 1, 1], [], []>} : vector<8x32xbf16>, vector<32x128xbf16>, vector<8x128xf32> -> vector<8x128xf32>
    %468 = arith.addf %465, %467 : vector<8x128xf32>
    %469 = vector.extract_strided_slice %468 {offsets = [0, 0], sizes = [8, 32], strides = [1, 1]} : vector<8x128xf32> to vector<8x32xf32>
    %470 = arith.negf %469 : vector<8x32xf32>
    %471 = math.exp %470 : vector<8x32xf32>
    %cst_124 = arith.constant 1.000000e+00 : f32
    %472 = vector.broadcast %cst_124 : f32 to vector<8x32xf32>
    %473 = arith.addf %472, %471 : vector<8x32xf32>
    %474 = arith.divf %472, %473 : vector<8x32xf32>
    %475 = vector.extract_strided_slice %468 {offsets = [0, 32], sizes = [8, 32], strides = [1, 1]} : vector<8x128xf32> to vector<8x32xf32>
    %476 = arith.negf %475 : vector<8x32xf32>
    %477 = math.exp %476 : vector<8x32xf32>
    %cst_125 = arith.constant 1.000000e+00 : f32
    %478 = vector.broadcast %cst_125 : f32 to vector<8x32xf32>
    %479 = arith.addf %478, %477 : vector<8x32xf32>
    %480 = arith.divf %478, %479 : vector<8x32xf32>
    %481 = vector.extract_strided_slice %468 {offsets = [0, 64], sizes = [8, 32], strides = [1, 1]} : vector<8x128xf32> to vector<8x32xf32>
    %482 = math.tanh %481 : vector<8x32xf32>
    %483 = vector.extract_strided_slice %468 {offsets = [0, 96], sizes = [8, 32], strides = [1, 1]} : vector<8x128xf32> to vector<8x32xf32>
    %484 = arith.negf %483 : vector<8x32xf32>
    %485 = math.exp %484 : vector<8x32xf32>
    %cst_126 = arith.constant 1.000000e+00 : f32
    %486 = vector.broadcast %cst_126 : f32 to vector<8x32xf32>
    %487 = arith.addf %486, %485 : vector<8x32xf32>
    %488 = arith.divf %486, %487 : vector<8x32xf32>
    %489 = arith.mulf %480, %457 : vector<8x32xf32>
    %490 = arith.mulf %474, %482 : vector<8x32xf32>
    %491 = arith.addf %489, %490 : vector<8x32xf32>
    %492 = math.tanh %491 : vector<8x32xf32>
    %493 = arith.mulf %488, %492 : vector<8x32xf32>
    %494 = arith.index_cast %463 : i32 to index
    %c0_127 = arith.constant 0 : index
    %495 = vector.load %arg15[%494, %c0_127] : memref<64x32xf32, #tpu.memory_space<vmem>>, vector<8x32xf32>
    tpu.vector_store %arg15[%494, %c0_127], %493 {strides = array<i32>} : memref<64x32xf32, #tpu.memory_space<vmem>>, vector<8x32xf32>,
    %c6_i32_128 = arith.constant 6 : i32
    %c8_i32_129 = arith.constant 8 : i32
    %496 = arith.muli %c6_i32_128, %c8_i32_129 : i32
    %497 = tpu.assume_multiple %496, 8 : i32
    %498 = arith.index_cast %497 : i32 to index
    %c0_130 = arith.constant 0 : index
    %499 = vector.load %arg16[%498, %c0_130] : memref<64x128xf32, #tpu.memory_space<vmem>>, vector<8x128xf32>
    %500 = arith.truncf %493 : vector<8x32xf32> to vector<8x32xbf16>
    %cst_131 = arith.constant dense<0.000000e+00> : vector<8x128xf32>
    %501 = tpu.matmul %500, %291, %cst_131 {dimension_numbers = #tpu.dot_dimension_numbers<[1], [0], [0], [1], [0, 0, 1, 1], [], []>} : vector<8x32xbf16>, vector<32x128xbf16>, vector<8x128xf32> -> vector<8x128xf32>
    %502 = arith.addf %499, %501 : vector<8x128xf32>
    %503 = vector.extract_strided_slice %502 {offsets = [0, 0], sizes = [8, 32], strides = [1, 1]} : vector<8x128xf32> to vector<8x32xf32>
    %504 = arith.negf %503 : vector<8x32xf32>
    %505 = math.exp %504 : vector<8x32xf32>
    %cst_132 = arith.constant 1.000000e+00 : f32
    %506 = vector.broadcast %cst_132 : f32 to vector<8x32xf32>
    %507 = arith.addf %506, %505 : vector<8x32xf32>
    %508 = arith.divf %506, %507 : vector<8x32xf32>
    %509 = vector.extract_strided_slice %502 {offsets = [0, 32], sizes = [8, 32], strides = [1, 1]} : vector<8x128xf32> to vector<8x32xf32>
    %510 = arith.negf %509 : vector<8x32xf32>
    %511 = math.exp %510 : vector<8x32xf32>
    %cst_133 = arith.constant 1.000000e+00 : f32
    %512 = vector.broadcast %cst_133 : f32 to vector<8x32xf32>
    %513 = arith.addf %512, %511 : vector<8x32xf32>
    %514 = arith.divf %512, %513 : vector<8x32xf32>
    %515 = vector.extract_strided_slice %502 {offsets = [0, 64], sizes = [8, 32], strides = [1, 1]} : vector<8x128xf32> to vector<8x32xf32>
    %516 = math.tanh %515 : vector<8x32xf32>
    %517 = vector.extract_strided_slice %502 {offsets = [0, 96], sizes = [8, 32], strides = [1, 1]} : vector<8x128xf32> to vector<8x32xf32>
    %518 = arith.negf %517 : vector<8x32xf32>
    %519 = math.exp %518 : vector<8x32xf32>
    %cst_134 = arith.constant 1.000000e+00 : f32
    %520 = vector.broadcast %cst_134 : f32 to vector<8x32xf32>
    %521 = arith.addf %520, %519 : vector<8x32xf32>
    %522 = arith.divf %520, %521 : vector<8x32xf32>
    %523 = arith.mulf %514, %491 : vector<8x32xf32>
    %524 = arith.mulf %508, %516 : vector<8x32xf32>
    %525 = arith.addf %523, %524 : vector<8x32xf32>
    %526 = math.tanh %525 : vector<8x32xf32>
    %527 = arith.mulf %522, %526 : vector<8x32xf32>
    %528 = arith.index_cast %497 : i32 to index
    %c0_135 = arith.constant 0 : index
    %529 = vector.load %arg15[%528, %c0_135] : memref<64x32xf32, #tpu.memory_space<vmem>>, vector<8x32xf32>
    tpu.vector_store %arg15[%528, %c0_135], %527 {strides = array<i32>} : memref<64x32xf32, #tpu.memory_space<vmem>>, vector<8x32xf32>,
    %c7_i32_136 = arith.constant 7 : i32
    %c8_i32_137 = arith.constant 8 : i32
    %530 = arith.muli %c7_i32_136, %c8_i32_137 : i32
    %531 = tpu.assume_multiple %530, 8 : i32
    %532 = arith.index_cast %531 : i32 to index
    %c0_138 = arith.constant 0 : index
    %533 = vector.load %arg16[%532, %c0_138] : memref<64x128xf32, #tpu.memory_space<vmem>>, vector<8x128xf32>
    %534 = arith.truncf %527 : vector<8x32xf32> to vector<8x32xbf16>
    %cst_139 = arith.constant dense<0.000000e+00> : vector<8x128xf32>
    %535 = tpu.matmul %534, %291, %cst_139 {dimension_numbers = #tpu.dot_dimension_numbers<[1], [0], [0], [1], [0, 0, 1, 1], [], []>} : vector<8x32xbf16>, vector<32x128xbf16>, vector<8x128xf32> -> vector<8x128xf32>
    %536 = arith.addf %533, %535 : vector<8x128xf32>
    %537 = vector.extract_strided_slice %536 {offsets = [0, 0], sizes = [8, 32], strides = [1, 1]} : vector<8x128xf32> to vector<8x32xf32>
    %538 = arith.negf %537 : vector<8x32xf32>
    %539 = math.exp %538 : vector<8x32xf32>
    %cst_140 = arith.constant 1.000000e+00 : f32
    %540 = vector.broadcast %cst_140 : f32 to vector<8x32xf32>
    %541 = arith.addf %540, %539 : vector<8x32xf32>
    %542 = arith.divf %540, %541 : vector<8x32xf32>
    %543 = vector.extract_strided_slice %536 {offsets = [0, 32], sizes = [8, 32], strides = [1, 1]} : vector<8x128xf32> to vector<8x32xf32>
    %544 = arith.negf %543 : vector<8x32xf32>
    %545 = math.exp %544 : vector<8x32xf32>
    %cst_141 = arith.constant 1.000000e+00 : f32
    %546 = vector.broadcast %cst_141 : f32 to vector<8x32xf32>
    %547 = arith.addf %546, %545 : vector<8x32xf32>
    %548 = arith.divf %546, %547 : vector<8x32xf32>
    %549 = vector.extract_strided_slice %536 {offsets = [0, 64], sizes = [8, 32], strides = [1, 1]} : vector<8x128xf32> to vector<8x32xf32>
    %550 = math.tanh %549 : vector<8x32xf32>
    %551 = vector.extract_strided_slice %536 {offsets = [0, 96], sizes = [8, 32], strides = [1, 1]} : vector<8x128xf32> to vector<8x32xf32>
    %552 = arith.negf %551 : vector<8x32xf32>
    %553 = math.exp %552 : vector<8x32xf32>
    %cst_142 = arith.constant 1.000000e+00 : f32
    %554 = vector.broadcast %cst_142 : f32 to vector<8x32xf32>
    %555 = arith.addf %554, %553 : vector<8x32xf32>
    %556 = arith.divf %554, %555 : vector<8x32xf32>
    %557 = arith.mulf %548, %525 : vector<8x32xf32>
    %558 = arith.mulf %542, %550 : vector<8x32xf32>
    %559 = arith.addf %557, %558 : vector<8x32xf32>
    %560 = math.tanh %559 : vector<8x32xf32>
    %561 = arith.mulf %556, %560 : vector<8x32xf32>
    %562 = arith.index_cast %531 : i32 to index
    %c0_143 = arith.constant 0 : index
    %563 = vector.load %arg15[%562, %c0_143] : memref<64x32xf32, #tpu.memory_space<vmem>>, vector<8x32xf32>
    tpu.vector_store %arg15[%562, %c0_143], %561 {strides = array<i32>} : memref<64x32xf32, #tpu.memory_space<vmem>>, vector<8x32xf32>,
    %c8_i32_144 = arith.constant 8 : i32
    %c0_145 = arith.constant 0 : index
    %c0_146 = arith.constant 0 : index
    %564 = vector.load %arg15[%c0_145, %c0_146] : memref<64x32xf32, #tpu.memory_space<vmem>>, vector<64x32xf32>
    %565 = arith.truncf %564 : vector<64x32xf32> to vector<64x32xbf16>
    %c0_147 = arith.constant 0 : index
    %c0_148 = arith.constant 0 : index
    %566 = vector.load %arg9[%c0_147, %c0_148] : memref<32x128xbf16, #tpu.memory_space<vmem>>, vector<32x128xbf16>
    %cst_149 = arith.constant dense<0.000000e+00> : vector<64x128xf32>
    %567 = tpu.matmul %565, %566, %cst_149 {dimension_numbers = #tpu.dot_dimension_numbers<[1], [0], [0], [1], [0, 0, 1, 1], [], []>} : vector<64x32xbf16>, vector<32x128xbf16>, vector<64x128xf32> -> vector<64x128xf32>
    %c0_150 = arith.constant 0 : index
    %c0_151 = arith.constant 0 : index
    %568 = vector.load %arg11[%c0_150, %c0_151] : memref<1x128xf32, #tpu.memory_space<vmem>>, vector<1x128xf32>
    %569 = vector.broadcast %568 : vector<1x128xf32> to vector<64x128xf32>
    %570 = arith.addf %567, %569 : vector<64x128xf32>
    %c0_152 = arith.constant 0 : index
    %c0_153 = arith.constant 0 : index
    %571 = vector.load %arg16[%c0_152, %c0_153] : memref<64x128xf32, #tpu.memory_space<vmem>>, vector<64x128xf32>
    tpu.vector_store %arg16[%c0_152, %c0_153], %570 {strides = array<i32>} : memref<64x128xf32, #tpu.memory_space<vmem>>, vector<64x128xf32>,
    %c0_154 = arith.constant 0 : index
    %c0_155 = arith.constant 0 : index
    %572 = vector.load %arg10[%c0_154, %c0_155] : memref<32x128xbf16, #tpu.memory_space<vmem>>, vector<32x128xbf16>
    %c0_i32_156 = arith.constant 0 : i32
    %c8_i32_157 = arith.constant 8 : i32
    %573 = arith.muli %c0_i32_156, %c8_i32_157 : i32
    %574 = tpu.assume_multiple %573, 8 : i32
    %575 = arith.index_cast %574 : i32 to index
    %c0_158 = arith.constant 0 : index
    %576 = vector.load %arg16[%575, %c0_158] : memref<64x128xf32, #tpu.memory_space<vmem>>, vector<8x128xf32>
    %577 = arith.truncf %1 : vector<8x32xf32> to vector<8x32xbf16>
    %cst_159 = arith.constant dense<0.000000e+00> : vector<8x128xf32>
    %578 = tpu.matmul %577, %572, %cst_159 {dimension_numbers = #tpu.dot_dimension_numbers<[1], [0], [0], [1], [0, 0, 1, 1], [], []>} : vector<8x32xbf16>, vector<32x128xbf16>, vector<8x128xf32> -> vector<8x128xf32>
    %579 = arith.addf %576, %578 : vector<8x128xf32>
    %580 = vector.extract_strided_slice %579 {offsets = [0, 0], sizes = [8, 32], strides = [1, 1]} : vector<8x128xf32> to vector<8x32xf32>
    %581 = arith.negf %580 : vector<8x32xf32>
    %582 = math.exp %581 : vector<8x32xf32>
    %cst_160 = arith.constant 1.000000e+00 : f32
    %583 = vector.broadcast %cst_160 : f32 to vector<8x32xf32>
    %584 = arith.addf %583, %582 : vector<8x32xf32>
    %585 = arith.divf %583, %584 : vector<8x32xf32>
    %586 = vector.extract_strided_slice %579 {offsets = [0, 32], sizes = [8, 32], strides = [1, 1]} : vector<8x128xf32> to vector<8x32xf32>
    %587 = arith.negf %586 : vector<8x32xf32>
    %588 = math.exp %587 : vector<8x32xf32>
    %cst_161 = arith.constant 1.000000e+00 : f32
    %589 = vector.broadcast %cst_161 : f32 to vector<8x32xf32>
    %590 = arith.addf %589, %588 : vector<8x32xf32>
    %591 = arith.divf %589, %590 : vector<8x32xf32>
    %592 = vector.extract_strided_slice %579 {offsets = [0, 64], sizes = [8, 32], strides = [1, 1]} : vector<8x128xf32> to vector<8x32xf32>
    %593 = math.tanh %592 : vector<8x32xf32>
    %594 = vector.extract_strided_slice %579 {offsets = [0, 96], sizes = [8, 32], strides = [1, 1]} : vector<8x128xf32> to vector<8x32xf32>
    %595 = arith.negf %594 : vector<8x32xf32>
    %596 = math.exp %595 : vector<8x32xf32>
    %cst_162 = arith.constant 1.000000e+00 : f32
    %597 = vector.broadcast %cst_162 : f32 to vector<8x32xf32>
    %598 = arith.addf %597, %596 : vector<8x32xf32>
    %599 = arith.divf %597, %598 : vector<8x32xf32>
    %600 = arith.mulf %591, %1 : vector<8x32xf32>
    %601 = arith.mulf %585, %593 : vector<8x32xf32>
    %602 = arith.addf %600, %601 : vector<8x32xf32>
    %603 = math.tanh %602 : vector<8x32xf32>
    %604 = arith.mulf %599, %603 : vector<8x32xf32>
    %605 = arith.index_cast %574 : i32 to index
    %c0_163 = arith.constant 0 : index
    %606 = vector.load %arg15[%605, %c0_163] : memref<64x32xf32, #tpu.memory_space<vmem>>, vector<8x32xf32>
    tpu.vector_store %arg15[%605, %c0_163], %604 {strides = array<i32>} : memref<64x32xf32, #tpu.memory_space<vmem>>, vector<8x32xf32>,
    %c1_i32_164 = arith.constant 1 : i32
    %c8_i32_165 = arith.constant 8 : i32
    %607 = arith.muli %c1_i32_164, %c8_i32_165 : i32
    %608 = tpu.assume_multiple %607, 8 : i32
    %609 = arith.index_cast %608 : i32 to index
    %c0_166 = arith.constant 0 : index
    %610 = vector.load %arg16[%609, %c0_166] : memref<64x128xf32, #tpu.memory_space<vmem>>, vector<8x128xf32>
    %611 = arith.truncf %604 : vector<8x32xf32> to vector<8x32xbf16>
    %cst_167 = arith.constant dense<0.000000e+00> : vector<8x128xf32>
    %612 = tpu.matmul %611, %572, %cst_167 {dimension_numbers = #tpu.dot_dimension_numbers<[1], [0], [0], [1], [0, 0, 1, 1], [], []>} : vector<8x32xbf16>, vector<32x128xbf16>, vector<8x128xf32> -> vector<8x128xf32>
    %613 = arith.addf %610, %612 : vector<8x128xf32>
    %614 = vector.extract_strided_slice %613 {offsets = [0, 0], sizes = [8, 32], strides = [1, 1]} : vector<8x128xf32> to vector<8x32xf32>
    %615 = arith.negf %614 : vector<8x32xf32>
    %616 = math.exp %615 : vector<8x32xf32>
    %cst_168 = arith.constant 1.000000e+00 : f32
    %617 = vector.broadcast %cst_168 : f32 to vector<8x32xf32>
    %618 = arith.addf %617, %616 : vector<8x32xf32>
    %619 = arith.divf %617, %618 : vector<8x32xf32>
    %620 = vector.extract_strided_slice %613 {offsets = [0, 32], sizes = [8, 32], strides = [1, 1]} : vector<8x128xf32> to vector<8x32xf32>
    %621 = arith.negf %620 : vector<8x32xf32>
    %622 = math.exp %621 : vector<8x32xf32>
    %cst_169 = arith.constant 1.000000e+00 : f32
    %623 = vector.broadcast %cst_169 : f32 to vector<8x32xf32>
    %624 = arith.addf %623, %622 : vector<8x32xf32>
    %625 = arith.divf %623, %624 : vector<8x32xf32>
    %626 = vector.extract_strided_slice %613 {offsets = [0, 64], sizes = [8, 32], strides = [1, 1]} : vector<8x128xf32> to vector<8x32xf32>
    %627 = math.tanh %626 : vector<8x32xf32>
    %628 = vector.extract_strided_slice %613 {offsets = [0, 96], sizes = [8, 32], strides = [1, 1]} : vector<8x128xf32> to vector<8x32xf32>
    %629 = arith.negf %628 : vector<8x32xf32>
    %630 = math.exp %629 : vector<8x32xf32>
    %cst_170 = arith.constant 1.000000e+00 : f32
    %631 = vector.broadcast %cst_170 : f32 to vector<8x32xf32>
    %632 = arith.addf %631, %630 : vector<8x32xf32>
    %633 = arith.divf %631, %632 : vector<8x32xf32>
    %634 = arith.mulf %625, %602 : vector<8x32xf32>
    %635 = arith.mulf %619, %627 : vector<8x32xf32>
    %636 = arith.addf %634, %635 : vector<8x32xf32>
    %637 = math.tanh %636 : vector<8x32xf32>
    %638 = arith.mulf %633, %637 : vector<8x32xf32>
    %639 = arith.index_cast %608 : i32 to index
    %c0_171 = arith.constant 0 : index
    %640 = vector.load %arg15[%639, %c0_171] : memref<64x32xf32, #tpu.memory_space<vmem>>, vector<8x32xf32>
    tpu.vector_store %arg15[%639, %c0_171], %638 {strides = array<i32>} : memref<64x32xf32, #tpu.memory_space<vmem>>, vector<8x32xf32>,
    %c2_i32_172 = arith.constant 2 : i32
    %c8_i32_173 = arith.constant 8 : i32
    %641 = arith.muli %c2_i32_172, %c8_i32_173 : i32
    %642 = tpu.assume_multiple %641, 8 : i32
    %643 = arith.index_cast %642 : i32 to index
    %c0_174 = arith.constant 0 : index
    %644 = vector.load %arg16[%643, %c0_174] : memref<64x128xf32, #tpu.memory_space<vmem>>, vector<8x128xf32>
    %645 = arith.truncf %638 : vector<8x32xf32> to vector<8x32xbf16>
    %cst_175 = arith.constant dense<0.000000e+00> : vector<8x128xf32>
    %646 = tpu.matmul %645, %572, %cst_175 {dimension_numbers = #tpu.dot_dimension_numbers<[1], [0], [0], [1], [0, 0, 1, 1], [], []>} : vector<8x32xbf16>, vector<32x128xbf16>, vector<8x128xf32> -> vector<8x128xf32>
    %647 = arith.addf %644, %646 : vector<8x128xf32>
    %648 = vector.extract_strided_slice %647 {offsets = [0, 0], sizes = [8, 32], strides = [1, 1]} : vector<8x128xf32> to vector<8x32xf32>
    %649 = arith.negf %648 : vector<8x32xf32>
    %650 = math.exp %649 : vector<8x32xf32>
    %cst_176 = arith.constant 1.000000e+00 : f32
    %651 = vector.broadcast %cst_176 : f32 to vector<8x32xf32>
    %652 = arith.addf %651, %650 : vector<8x32xf32>
    %653 = arith.divf %651, %652 : vector<8x32xf32>
    %654 = vector.extract_strided_slice %647 {offsets = [0, 32], sizes = [8, 32], strides = [1, 1]} : vector<8x128xf32> to vector<8x32xf32>
    %655 = arith.negf %654 : vector<8x32xf32>
    %656 = math.exp %655 : vector<8x32xf32>
    %cst_177 = arith.constant 1.000000e+00 : f32
    %657 = vector.broadcast %cst_177 : f32 to vector<8x32xf32>
    %658 = arith.addf %657, %656 : vector<8x32xf32>
    %659 = arith.divf %657, %658 : vector<8x32xf32>
    %660 = vector.extract_strided_slice %647 {offsets = [0, 64], sizes = [8, 32], strides = [1, 1]} : vector<8x128xf32> to vector<8x32xf32>
    %661 = math.tanh %660 : vector<8x32xf32>
    %662 = vector.extract_strided_slice %647 {offsets = [0, 96], sizes = [8, 32], strides = [1, 1]} : vector<8x128xf32> to vector<8x32xf32>
    %663 = arith.negf %662 : vector<8x32xf32>
    %664 = math.exp %663 : vector<8x32xf32>
    %cst_178 = arith.constant 1.000000e+00 : f32
    %665 = vector.broadcast %cst_178 : f32 to vector<8x32xf32>
    %666 = arith.addf %665, %664 : vector<8x32xf32>
    %667 = arith.divf %665, %666 : vector<8x32xf32>
    %668 = arith.mulf %659, %636 : vector<8x32xf32>
    %669 = arith.mulf %653, %661 : vector<8x32xf32>
    %670 = arith.addf %668, %669 : vector<8x32xf32>
    %671 = math.tanh %670 : vector<8x32xf32>
    %672 = arith.mulf %667, %671 : vector<8x32xf32>
    %673 = arith.index_cast %642 : i32 to index
    %c0_179 = arith.constant 0 : index
    %674 = vector.load %arg15[%673, %c0_179] : memref<64x32xf32, #tpu.memory_space<vmem>>, vector<8x32xf32>
    tpu.vector_store %arg15[%673, %c0_179], %672 {strides = array<i32>} : memref<64x32xf32, #tpu.memory_space<vmem>>, vector<8x32xf32>,
    %c3_i32_180 = arith.constant 3 : i32
    %c8_i32_181 = arith.constant 8 : i32
    %675 = arith.muli %c3_i32_180, %c8_i32_181 : i32
    %676 = tpu.assume_multiple %675, 8 : i32
    %677 = arith.index_cast %676 : i32 to index
    %c0_182 = arith.constant 0 : index
    %678 = vector.load %arg16[%677, %c0_182] : memref<64x128xf32, #tpu.memory_space<vmem>>, vector<8x128xf32>
    %679 = arith.truncf %672 : vector<8x32xf32> to vector<8x32xbf16>
    %cst_183 = arith.constant dense<0.000000e+00> : vector<8x128xf32>
    %680 = tpu.matmul %679, %572, %cst_183 {dimension_numbers = #tpu.dot_dimension_numbers<[1], [0], [0], [1], [0, 0, 1, 1], [], []>} : vector<8x32xbf16>, vector<32x128xbf16>, vector<8x128xf32> -> vector<8x128xf32>
    %681 = arith.addf %678, %680 : vector<8x128xf32>
    %682 = vector.extract_strided_slice %681 {offsets = [0, 0], sizes = [8, 32], strides = [1, 1]} : vector<8x128xf32> to vector<8x32xf32>
    %683 = arith.negf %682 : vector<8x32xf32>
    %684 = math.exp %683 : vector<8x32xf32>
    %cst_184 = arith.constant 1.000000e+00 : f32
    %685 = vector.broadcast %cst_184 : f32 to vector<8x32xf32>
    %686 = arith.addf %685, %684 : vector<8x32xf32>
    %687 = arith.divf %685, %686 : vector<8x32xf32>
    %688 = vector.extract_strided_slice %681 {offsets = [0, 32], sizes = [8, 32], strides = [1, 1]} : vector<8x128xf32> to vector<8x32xf32>
    %689 = arith.negf %688 : vector<8x32xf32>
    %690 = math.exp %689 : vector<8x32xf32>
    %cst_185 = arith.constant 1.000000e+00 : f32
    %691 = vector.broadcast %cst_185 : f32 to vector<8x32xf32>
    %692 = arith.addf %691, %690 : vector<8x32xf32>
    %693 = arith.divf %691, %692 : vector<8x32xf32>
    %694 = vector.extract_strided_slice %681 {offsets = [0, 64], sizes = [8, 32], strides = [1, 1]} : vector<8x128xf32> to vector<8x32xf32>
    %695 = math.tanh %694 : vector<8x32xf32>
    %696 = vector.extract_strided_slice %681 {offsets = [0, 96], sizes = [8, 32], strides = [1, 1]} : vector<8x128xf32> to vector<8x32xf32>
    %697 = arith.negf %696 : vector<8x32xf32>
    %698 = math.exp %697 : vector<8x32xf32>
    %cst_186 = arith.constant 1.000000e+00 : f32
    %699 = vector.broadcast %cst_186 : f32 to vector<8x32xf32>
    %700 = arith.addf %699, %698 : vector<8x32xf32>
    %701 = arith.divf %699, %700 : vector<8x32xf32>
    %702 = arith.mulf %693, %670 : vector<8x32xf32>
    %703 = arith.mulf %687, %695 : vector<8x32xf32>
    %704 = arith.addf %702, %703 : vector<8x32xf32>
    %705 = math.tanh %704 : vector<8x32xf32>
    %706 = arith.mulf %701, %705 : vector<8x32xf32>
    %707 = arith.index_cast %676 : i32 to index
    %c0_187 = arith.constant 0 : index
    %708 = vector.load %arg15[%707, %c0_187] : memref<64x32xf32, #tpu.memory_space<vmem>>, vector<8x32xf32>
    tpu.vector_store %arg15[%707, %c0_187], %706 {strides = array<i32>} : memref<64x32xf32, #tpu.memory_space<vmem>>, vector<8x32xf32>,
    %c4_i32_188 = arith.constant 4 : i32
    %c8_i32_189 = arith.constant 8 : i32
    %709 = arith.muli %c4_i32_188, %c8_i32_189 : i32
    %710 = tpu.assume_multiple %709, 8 : i32
    %711 = arith.index_cast %710 : i32 to index
    %c0_190 = arith.constant 0 : index
    %712 = vector.load %arg16[%711, %c0_190] : memref<64x128xf32, #tpu.memory_space<vmem>>, vector<8x128xf32>
    %713 = arith.truncf %706 : vector<8x32xf32> to vector<8x32xbf16>
    %cst_191 = arith.constant dense<0.000000e+00> : vector<8x128xf32>
    %714 = tpu.matmul %713, %572, %cst_191 {dimension_numbers = #tpu.dot_dimension_numbers<[1], [0], [0], [1], [0, 0, 1, 1], [], []>} : vector<8x32xbf16>, vector<32x128xbf16>, vector<8x128xf32> -> vector<8x128xf32>
    %715 = arith.addf %712, %714 : vector<8x128xf32>
    %716 = vector.extract_strided_slice %715 {offsets = [0, 0], sizes = [8, 32], strides = [1, 1]} : vector<8x128xf32> to vector<8x32xf32>
    %717 = arith.negf %716 : vector<8x32xf32>
    %718 = math.exp %717 : vector<8x32xf32>
    %cst_192 = arith.constant 1.000000e+00 : f32
    %719 = vector.broadcast %cst_192 : f32 to vector<8x32xf32>
    %720 = arith.addf %719, %718 : vector<8x32xf32>
    %721 = arith.divf %719, %720 : vector<8x32xf32>
    %722 = vector.extract_strided_slice %715 {offsets = [0, 32], sizes = [8, 32], strides = [1, 1]} : vector<8x128xf32> to vector<8x32xf32>
    %723 = arith.negf %722 : vector<8x32xf32>
    %724 = math.exp %723 : vector<8x32xf32>
    %cst_193 = arith.constant 1.000000e+00 : f32
    %725 = vector.broadcast %cst_193 : f32 to vector<8x32xf32>
    %726 = arith.addf %725, %724 : vector<8x32xf32>
    %727 = arith.divf %725, %726 : vector<8x32xf32>
    %728 = vector.extract_strided_slice %715 {offsets = [0, 64], sizes = [8, 32], strides = [1, 1]} : vector<8x128xf32> to vector<8x32xf32>
    %729 = math.tanh %728 : vector<8x32xf32>
    %730 = vector.extract_strided_slice %715 {offsets = [0, 96], sizes = [8, 32], strides = [1, 1]} : vector<8x128xf32> to vector<8x32xf32>
    %731 = arith.negf %730 : vector<8x32xf32>
    %732 = math.exp %731 : vector<8x32xf32>
    %cst_194 = arith.constant 1.000000e+00 : f32
    %733 = vector.broadcast %cst_194 : f32 to vector<8x32xf32>
    %734 = arith.addf %733, %732 : vector<8x32xf32>
    %735 = arith.divf %733, %734 : vector<8x32xf32>
    %736 = arith.mulf %727, %704 : vector<8x32xf32>
    %737 = arith.mulf %721, %729 : vector<8x32xf32>
    %738 = arith.addf %736, %737 : vector<8x32xf32>
    %739 = math.tanh %738 : vector<8x32xf32>
    %740 = arith.mulf %735, %739 : vector<8x32xf32>
    %741 = arith.index_cast %710 : i32 to index
    %c0_195 = arith.constant 0 : index
    %742 = vector.load %arg15[%741, %c0_195] : memref<64x32xf32, #tpu.memory_space<vmem>>, vector<8x32xf32>
    tpu.vector_store %arg15[%741, %c0_195], %740 {strides = array<i32>} : memref<64x32xf32, #tpu.memory_space<vmem>>, vector<8x32xf32>,
    %c5_i32_196 = arith.constant 5 : i32
    %c8_i32_197 = arith.constant 8 : i32
    %743 = arith.muli %c5_i32_196, %c8_i32_197 : i32
    %744 = tpu.assume_multiple %743, 8 : i32
    %745 = arith.index_cast %744 : i32 to index
    %c0_198 = arith.constant 0 : index
    %746 = vector.load %arg16[%745, %c0_198] : memref<64x128xf32, #tpu.memory_space<vmem>>, vector<8x128xf32>
    %747 = arith.truncf %740 : vector<8x32xf32> to vector<8x32xbf16>
    %cst_199 = arith.constant dense<0.000000e+00> : vector<8x128xf32>
    %748 = tpu.matmul %747, %572, %cst_199 {dimension_numbers = #tpu.dot_dimension_numbers<[1], [0], [0], [1], [0, 0, 1, 1], [], []>} : vector<8x32xbf16>, vector<32x128xbf16>, vector<8x128xf32> -> vector<8x128xf32>
    %749 = arith.addf %746, %748 : vector<8x128xf32>
    %750 = vector.extract_strided_slice %749 {offsets = [0, 0], sizes = [8, 32], strides = [1, 1]} : vector<8x128xf32> to vector<8x32xf32>
    %751 = arith.negf %750 : vector<8x32xf32>
    %752 = math.exp %751 : vector<8x32xf32>
    %cst_200 = arith.constant 1.000000e+00 : f32
    %753 = vector.broadcast %cst_200 : f32 to vector<8x32xf32>
    %754 = arith.addf %753, %752 : vector<8x32xf32>
    %755 = arith.divf %753, %754 : vector<8x32xf32>
    %756 = vector.extract_strided_slice %749 {offsets = [0, 32], sizes = [8, 32], strides = [1, 1]} : vector<8x128xf32> to vector<8x32xf32>
    %757 = arith.negf %756 : vector<8x32xf32>
    %758 = math.exp %757 : vector<8x32xf32>
    %cst_201 = arith.constant 1.000000e+00 : f32
    %759 = vector.broadcast %cst_201 : f32 to vector<8x32xf32>
    %760 = arith.addf %759, %758 : vector<8x32xf32>
    %761 = arith.divf %759, %760 : vector<8x32xf32>
    %762 = vector.extract_strided_slice %749 {offsets = [0, 64], sizes = [8, 32], strides = [1, 1]} : vector<8x128xf32> to vector<8x32xf32>
    %763 = math.tanh %762 : vector<8x32xf32>
    %764 = vector.extract_strided_slice %749 {offsets = [0, 96], sizes = [8, 32], strides = [1, 1]} : vector<8x128xf32> to vector<8x32xf32>
    %765 = arith.negf %764 : vector<8x32xf32>
    %766 = math.exp %765 : vector<8x32xf32>
    %cst_202 = arith.constant 1.000000e+00 : f32
    %767 = vector.broadcast %cst_202 : f32 to vector<8x32xf32>
    %768 = arith.addf %767, %766 : vector<8x32xf32>
    %769 = arith.divf %767, %768 : vector<8x32xf32>
    %770 = arith.mulf %761, %738 : vector<8x32xf32>
    %771 = arith.mulf %755, %763 : vector<8x32xf32>
    %772 = arith.addf %770, %771 : vector<8x32xf32>
    %773 = math.tanh %772 : vector<8x32xf32>
    %774 = arith.mulf %769, %773 : vector<8x32xf32>
    %775 = arith.index_cast %744 : i32 to index
    %c0_203 = arith.constant 0 : index
    %776 = vector.load %arg15[%775, %c0_203] : memref<64x32xf32, #tpu.memory_space<vmem>>, vector<8x32xf32>
    tpu.vector_store %arg15[%775, %c0_203], %774 {strides = array<i32>} : memref<64x32xf32, #tpu.memory_space<vmem>>, vector<8x32xf32>,
    %c6_i32_204 = arith.constant 6 : i32
    %c8_i32_205 = arith.constant 8 : i32
    %777 = arith.muli %c6_i32_204, %c8_i32_205 : i32
    %778 = tpu.assume_multiple %777, 8 : i32
    %779 = arith.index_cast %778 : i32 to index
    %c0_206 = arith.constant 0 : index
    %780 = vector.load %arg16[%779, %c0_206] : memref<64x128xf32, #tpu.memory_space<vmem>>, vector<8x128xf32>
    %781 = arith.truncf %774 : vector<8x32xf32> to vector<8x32xbf16>
    %cst_207 = arith.constant dense<0.000000e+00> : vector<8x128xf32>
    %782 = tpu.matmul %781, %572, %cst_207 {dimension_numbers = #tpu.dot_dimension_numbers<[1], [0], [0], [1], [0, 0, 1, 1], [], []>} : vector<8x32xbf16>, vector<32x128xbf16>, vector<8x128xf32> -> vector<8x128xf32>
    %783 = arith.addf %780, %782 : vector<8x128xf32>
    %784 = vector.extract_strided_slice %783 {offsets = [0, 0], sizes = [8, 32], strides = [1, 1]} : vector<8x128xf32> to vector<8x32xf32>
    %785 = arith.negf %784 : vector<8x32xf32>
    %786 = math.exp %785 : vector<8x32xf32>
    %cst_208 = arith.constant 1.000000e+00 : f32
    %787 = vector.broadcast %cst_208 : f32 to vector<8x32xf32>
    %788 = arith.addf %787, %786 : vector<8x32xf32>
    %789 = arith.divf %787, %788 : vector<8x32xf32>
    %790 = vector.extract_strided_slice %783 {offsets = [0, 32], sizes = [8, 32], strides = [1, 1]} : vector<8x128xf32> to vector<8x32xf32>
    %791 = arith.negf %790 : vector<8x32xf32>
    %792 = math.exp %791 : vector<8x32xf32>
    %cst_209 = arith.constant 1.000000e+00 : f32
    %793 = vector.broadcast %cst_209 : f32 to vector<8x32xf32>
    %794 = arith.addf %793, %792 : vector<8x32xf32>
    %795 = arith.divf %793, %794 : vector<8x32xf32>
    %796 = vector.extract_strided_slice %783 {offsets = [0, 64], sizes = [8, 32], strides = [1, 1]} : vector<8x128xf32> to vector<8x32xf32>
    %797 = math.tanh %796 : vector<8x32xf32>
    %798 = vector.extract_strided_slice %783 {offsets = [0, 96], sizes = [8, 32], strides = [1, 1]} : vector<8x128xf32> to vector<8x32xf32>
    %799 = arith.negf %798 : vector<8x32xf32>
    %800 = math.exp %799 : vector<8x32xf32>
    %cst_210 = arith.constant 1.000000e+00 : f32
    %801 = vector.broadcast %cst_210 : f32 to vector<8x32xf32>
    %802 = arith.addf %801, %800 : vector<8x32xf32>
    %803 = arith.divf %801, %802 : vector<8x32xf32>
    %804 = arith.mulf %795, %772 : vector<8x32xf32>
    %805 = arith.mulf %789, %797 : vector<8x32xf32>
    %806 = arith.addf %804, %805 : vector<8x32xf32>
    %807 = math.tanh %806 : vector<8x32xf32>
    %808 = arith.mulf %803, %807 : vector<8x32xf32>
    %809 = arith.index_cast %778 : i32 to index
    %c0_211 = arith.constant 0 : index
    %810 = vector.load %arg15[%809, %c0_211] : memref<64x32xf32, #tpu.memory_space<vmem>>, vector<8x32xf32>
    tpu.vector_store %arg15[%809, %c0_211], %808 {strides = array<i32>} : memref<64x32xf32, #tpu.memory_space<vmem>>, vector<8x32xf32>,
    %c7_i32_212 = arith.constant 7 : i32
    %c8_i32_213 = arith.constant 8 : i32
    %811 = arith.muli %c7_i32_212, %c8_i32_213 : i32
    %812 = tpu.assume_multiple %811, 8 : i32
    %813 = arith.index_cast %812 : i32 to index
    %c0_214 = arith.constant 0 : index
    %814 = vector.load %arg16[%813, %c0_214] : memref<64x128xf32, #tpu.memory_space<vmem>>, vector<8x128xf32>
    %815 = arith.truncf %808 : vector<8x32xf32> to vector<8x32xbf16>
    %cst_215 = arith.constant dense<0.000000e+00> : vector<8x128xf32>
    %816 = tpu.matmul %815, %572, %cst_215 {dimension_numbers = #tpu.dot_dimension_numbers<[1], [0], [0], [1], [0, 0, 1, 1], [], []>} : vector<8x32xbf16>, vector<32x128xbf16>, vector<8x128xf32> -> vector<8x128xf32>
    %817 = arith.addf %814, %816 : vector<8x128xf32>
    %818 = vector.extract_strided_slice %817 {offsets = [0, 0], sizes = [8, 32], strides = [1, 1]} : vector<8x128xf32> to vector<8x32xf32>
    %819 = arith.negf %818 : vector<8x32xf32>
    %820 = math.exp %819 : vector<8x32xf32>
    %cst_216 = arith.constant 1.000000e+00 : f32
    %821 = vector.broadcast %cst_216 : f32 to vector<8x32xf32>
    %822 = arith.addf %821, %820 : vector<8x32xf32>
    %823 = arith.divf %821, %822 : vector<8x32xf32>
    %824 = vector.extract_strided_slice %817 {offsets = [0, 32], sizes = [8, 32], strides = [1, 1]} : vector<8x128xf32> to vector<8x32xf32>
    %825 = arith.negf %824 : vector<8x32xf32>
    %826 = math.exp %825 : vector<8x32xf32>
    %cst_217 = arith.constant 1.000000e+00 : f32
    %827 = vector.broadcast %cst_217 : f32 to vector<8x32xf32>
    %828 = arith.addf %827, %826 : vector<8x32xf32>
    %829 = arith.divf %827, %828 : vector<8x32xf32>
    %830 = vector.extract_strided_slice %817 {offsets = [0, 64], sizes = [8, 32], strides = [1, 1]} : vector<8x128xf32> to vector<8x32xf32>
    %831 = math.tanh %830 : vector<8x32xf32>
    %832 = vector.extract_strided_slice %817 {offsets = [0, 96], sizes = [8, 32], strides = [1, 1]} : vector<8x128xf32> to vector<8x32xf32>
    %833 = arith.negf %832 : vector<8x32xf32>
    %834 = math.exp %833 : vector<8x32xf32>
    %cst_218 = arith.constant 1.000000e+00 : f32
    %835 = vector.broadcast %cst_218 : f32 to vector<8x32xf32>
    %836 = arith.addf %835, %834 : vector<8x32xf32>
    %837 = arith.divf %835, %836 : vector<8x32xf32>
    %838 = arith.mulf %829, %806 : vector<8x32xf32>
    %839 = arith.mulf %823, %831 : vector<8x32xf32>
    %840 = arith.addf %838, %839 : vector<8x32xf32>
    %841 = math.tanh %840 : vector<8x32xf32>
    %842 = arith.mulf %837, %841 : vector<8x32xf32>
    %843 = arith.index_cast %812 : i32 to index
    %c0_219 = arith.constant 0 : index
    %844 = vector.load %arg15[%843, %c0_219] : memref<64x32xf32, #tpu.memory_space<vmem>>, vector<8x32xf32>
    tpu.vector_store %arg15[%843, %c0_219], %842 {strides = array<i32>} : memref<64x32xf32, #tpu.memory_space<vmem>>, vector<8x32xf32>,
    %c8_i32_220 = arith.constant 8 : i32
    %c0_221 = arith.constant 0 : index
    %c0_222 = arith.constant 0 : index
    %845 = vector.load %arg15[%c0_221, %c0_222] : memref<64x32xf32, #tpu.memory_space<vmem>>, vector<64x32xf32>
    %846 = arith.truncf %845 : vector<64x32xf32> to vector<64x32xbf16>
    %c0_223 = arith.constant 0 : index
    %c0_224 = arith.constant 0 : index
    %847 = vector.load %arg12[%c0_223, %c0_224] : memref<32x128xbf16, #tpu.memory_space<vmem>>, vector<32x128xbf16>
    %cst_225 = arith.constant dense<0.000000e+00> : vector<64x128xf32>
    %848 = tpu.matmul %846, %847, %cst_225 {dimension_numbers = #tpu.dot_dimension_numbers<[1], [0], [0], [1], [0, 0, 1, 1], [], []>} : vector<64x32xbf16>, vector<32x128xbf16>, vector<64x128xf32> -> vector<64x128xf32>
    %c0_226 = arith.constant 0 : index
    %c0_227 = arith.constant 0 : index
    %849 = vector.load %arg13[%c0_226, %c0_227] : memref<1x128xf32, #tpu.memory_space<vmem>>, vector<1x128xf32>
    %850 = vector.broadcast %849 : vector<1x128xf32> to vector<64x128xf32>
    %851 = arith.addf %848, %850 : vector<64x128xf32>
    %c0_228 = arith.constant 0 : index
    %c0_229 = arith.constant 0 : index
    %c0_230 = arith.constant 0 : index
    %852 = vector.load %arg14[%c0_228, %c0_229, %c0_230] : memref<1x64x128xf32, #tpu.memory_space<vmem>>, vector<1x64x128xf32>
    %853 = vector.shape_cast %852 : vector<1x64x128xf32> to vector<64x128xf32>
    %854 = vector.shape_cast %851 : vector<64x128xf32> to vector<1x64x128xf32>
    tpu.vector_store %arg14[%c0_228, %c0_229, %c0_230], %854 {strides = array<i32>} : memref<1x64x128xf32, #tpu.memory_space<vmem>>, vector<1x64x128xf32>,
    return
  }
  func.func @transform_0(%arg0: i32) -> (i32, i32, i32) {
    %c0_i32 = arith.constant 0 : i32
    %c0_i32_0 = arith.constant 0 : i32
    %c0_i32_1 = arith.constant 0 : i32
    return %arg0, %c0_i32, %c0_i32_0 : i32, i32, i32
  }
  func.func @transform_1(%arg0: i32) -> (i32, i32, i32) {
    %c0_i32 = arith.constant 0 : i32
    %c0_i32_0 = arith.constant 0 : i32
    %c0_i32_1 = arith.constant 0 : i32
    return %arg0, %c0_i32, %c0_i32_0 : i32, i32, i32
  }
  func.func @transform_2(%arg0: i32) -> (i32, i32) {
    %c0_i32 = arith.constant 0 : i32
    %c0_i32_0 = arith.constant 0 : i32
    %c0_i32_1 = arith.constant 0 : i32
    return %c0_i32, %c0_i32_0 : i32, i32
  }
  func.func @transform_3(%arg0: i32) -> (i32, i32) {
    %c0_i32 = arith.constant 0 : i32
    %c0_i32_0 = arith.constant 0 : i32
    %c0_i32_1 = arith.constant 0 : i32
    return %c0_i32, %c0_i32_0 : i32, i32
  }
  func.func @transform_4(%arg0: i32) -> (i32, i32) {
    %c0_i32 = arith.constant 0 : i32
    %c0_i32_0 = arith.constant 0 : i32
    %c0_i32_1 = arith.constant 0 : i32
    return %c0_i32, %c0_i32_0 : i32, i32
  }
  func.func @transform_5(%arg0: i32) -> (i32, i32) {
    %c0_i32 = arith.constant 0 : i32
    %c0_i32_0 = arith.constant 0 : i32
    %c0_i32_1 = arith.constant 0 : i32
    return %c0_i32, %c0_i32_0 : i32, i32
  }
  func.func @transform_6(%arg0: i32) -> (i32, i32) {
    %c0_i32 = arith.constant 0 : i32
    %c0_i32_0 = arith.constant 0 : i32
    %c0_i32_1 = arith.constant 0 : i32
    return %c0_i32, %c0_i32_0 : i32, i32
  }
  func.func @transform_7(%arg0: i32) -> (i32, i32) {
    %c0_i32 = arith.constant 0 : i32
    %c0_i32_0 = arith.constant 0 : i32
    %c0_i32_1 = arith.constant 0 : i32
    return %c0_i32, %c0_i32_0 : i32, i32
  }
  func.func @transform_8(%arg0: i32) -> (i32, i32) {
    %c0_i32 = arith.constant 0 : i32
    %c0_i32_0 = arith.constant 0 : i32
    %c0_i32_1 = arith.constant 0 : i32
    return %c0_i32, %c0_i32_0 : i32, i32
  }
  func.func @transform_9(%arg0: i32) -> (i32, i32) {
    %c0_i32 = arith.constant 0 : i32
    %c0_i32_0 = arith.constant 0 : i32
    %c0_i32_1 = arith.constant 0 : i32
    return %c0_i32, %c0_i32_0 : i32, i32
  }
  func.func @transform_10(%arg0: i32) -> (i32, i32) {
    %c0_i32 = arith.constant 0 : i32
    %c0_i32_0 = arith.constant 0 : i32
    %c0_i32_1 = arith.constant 0 : i32
    return %c0_i32, %c0_i32_0 : i32, i32
  }
  func.func @transform_11(%arg0: i32) -> (i32, i32) {
    %c0_i32 = arith.constant 0 : i32
    %c0_i32_0 = arith.constant 0 : i32
    %c0_i32_1 = arith.constant 0 : i32
    return %c0_i32, %c0_i32_0 : i32, i32
  }
  func.func @transform_12(%arg0: i32) -> (i32, i32) {
    %c0_i32 = arith.constant 0 : i32
    %c0_i32_0 = arith.constant 0 : i32
    %c0_i32_1 = arith.constant 0 : i32
    return %c0_i32, %c0_i32_0 : i32, i32
  }
  func.func @transform_13(%arg0: i32) -> (i32, i32, i32) {
    %c0_i32 = arith.constant 0 : i32
    %c0_i32_0 = arith.constant 0 : i32
    %c0_i32_1 = arith.constant 0 : i32
    return %arg0, %c0_i32, %c0_i32_0 : i32, i32, i32
  }
}

</mosaic_0001>

<llo_original>
// kernel: tpu_custom_call.1
$region0: #{tpu_custom_call.1}
  #allocation0 [shape = 'u32[]', space=smem, size = 0x4, offset = 0x4, fixed_abs, tag = 'smem constant byte address 0x4 - core index']
  #allocation1 [shape = 'u32[144,128]{1,0:T(1,128)}', space=vmem, size = 0x12000, scoped, tag = 'internal scratch']
  #allocation2 [shape = 'f32[64,32]{1,0:T(8,128)}', space=vmem, size = 0x8000, scoped, tag = 'scratch operand']
  #allocation3 [shape = 'f32[64,128]{1,0:T(8,128)}', space=vmem, size = 0x8000, scoped, tag = 'scratch operand']
  %s0 = inlined_call_operand.vmem [shape: bf16[1,64,32], index: 0, kind: input, shape index: {}]
  %s1 = inlined_call_operand.hbm [shape: f32[1,8,32], index: 1, kind: input, shape index: {}]
  %s2 = inlined_call_operand.vmem [shape: bf16[32,128], index: 2, kind: input, shape index: {}]
  %s3 = inlined_call_operand.vmem [shape: bf16[32,128], index: 3, kind: input, shape index: {}]
  %s4 = inlined_call_operand.vmem [shape: f32[1,128], index: 4, kind: input, shape index: {}]
  %s5 = inlined_call_operand.vmem [shape: bf16[32,128], index: 5, kind: input, shape index: {}]
  %s6 = inlined_call_operand.vmem [shape: bf16[32,128], index: 6, kind: input, shape index: {}]
  %s7 = inlined_call_operand.vmem [shape: f32[1,128], index: 7, kind: input, shape index: {}]
  %s8 = inlined_call_operand.hbm [shape: bf16[32,128], index: 8, kind: input, shape index: {}]
  %s9 = inlined_call_operand.vmem [shape: bf16[32,128], index: 9, kind: input, shape index: {}]
  %s10 = inlined_call_operand.vmem [shape: f32[1,128], index: 10, kind: input, shape index: {}]
  %s11 = inlined_call_operand.hbm [shape: bf16[32,128], index: 11, kind: input, shape index: {}]
  %s12 = inlined_call_operand.vmem [shape: f32[1,128], index: 12, kind: input, shape index: {}]
  %s13 = inlined_call_operand.hbm [shape: f32[1,64,128], index: 13, kind: output, shape index: {}]
  %s14 = sld [smem:[#allocation0]]
  $region74: #{tpu_custom_call.1} parent=0
    _
  %s16 = ssub.s32 1, %s14
  %s17 = scalar_select 0, %s16, %s14
  $region1: #{tpu_custom_call.1} parent=0
    #allocation4 [shape = 'u8[4096]{0}', space=vmem, size = 0x1000, scoped, tag = 'input window, operand 1, single buffered']
    #allocation5 [shape = 's32[1]{0}', space=sflag, size = 0x4, scoped, tag = 'scoped memory for tpu_custom_call.1']
    #allocation6 [shape = 's32[1]{0}', space=sflag, size = 0x4, scoped, tag = 'scoped memory for tpu_custom_call.1']
    #allocation7 [shape = 'u8[8192]{0}', space=vmem, size = 0x2000, scoped, tag = 'input window, operand 8, single buffered']
    #allocation8 [shape = 's32[1]{0}', space=sflag, size = 0x4, scoped, tag = 'scoped memory for tpu_custom_call.1']
    #allocation9 [shape = 'u8[8192]{0}', space=vmem, size = 0x2000, scoped, tag = 'input window, operand 11, single buffered']
    #allocation10 [shape = 'u8[32768]{0}', space=vmem, size = 0x8000, scoped, tag = 'output window, operand 0, single buffered']
    %18 = vsyncpa [#allocation5], 0
    %19 = vsyncpa [#allocation8], 0
    %20 = vsyncpa [#allocation6], 0
    // Predicated region
    $region2: #{tpu_custom_call.1} parent=1 // pred_check
      _
    $region3: #{tpu_custom_call.1} parent=1 // pred_check_branch
      %22 = sbr.rel (0) target = $region5
    $region4: #{tpu_custom_call.1} parent=1 // pred_region
      _
    $region5: #{tpu_custom_call.1} parent=1 // pred_fallthru
      _
    // Predicated region
    $region6: #{tpu_custom_call.1} parent=1 // pred_check
      _
    $region7: #{tpu_custom_call.1} parent=1 // pred_check_branch
      %24 = sbr.rel (0) target = $region9
    $region8: #{tpu_custom_call.1} parent=1 // pred_region
      %s26 = ssub.s32 128, 128
      %27 = vsyncadd [#allocation5], %s26
      %s29 = sshll.u32 [#allocation4], 4
      %s30 = int_to_ptr.vmem [resolvable:$true] %s29
      %32 = dma.hbm_to_vmem [thread:$0]  %s1, 128, %s30, [#allocation5]
    $region9: #{tpu_custom_call.1} parent=1 // pred_fallthru
      _
    // Predicated region
    $region10: #{tpu_custom_call.1} parent=1 // pred_check
      _
    $region11: #{tpu_custom_call.1} parent=1 // pred_check_branch
      %34 = sbr.rel (0) target = $region13
    $region12: #{tpu_custom_call.1} parent=1 // pred_region
      _
    $region13: #{tpu_custom_call.1} parent=1 // pred_fallthru
      _
    // Predicated region
    $region14: #{tpu_custom_call.1} parent=1 // pred_check
      _
    $region15: #{tpu_custom_call.1} parent=1 // pred_check_branch
      %36 = sbr.rel (0) target = $region17
    $region16: #{tpu_custom_call.1} parent=1 // pred_region
      _
    $region17: #{tpu_custom_call.1} parent=1 // pred_fallthru
      _
    // Predicated region
    $region18: #{tpu_custom_call.1} parent=1 // pred_check
      _
    $region19: #{tpu_custom_call.1} parent=1 // pred_check_branch
      %38 = sbr.rel (0) target = $region21
    $region20: #{tpu_custom_call.1} parent=1 // pred_region
      _
    $region21: #{tpu_custom_call.1} parent=1 // pred_fallthru
      _
    // Predicated region
    $region22: #{tpu_custom_call.1} parent=1 // pred_check
      _
    $region23: #{tpu_custom_call.1} parent=1 // pred_check_branch
      %40 = sbr.rel (0) target = $region25
    $region24: #{tpu_custom_call.1} parent=1 // pred_region
      _
    $region25: #{tpu_custom_call.1} parent=1 // pred_fallthru
      _
    // Predicated region
    $region26: #{tpu_custom_call.1} parent=1 // pred_check
      _
    $region27: #{tpu_custom_call.1} parent=1 // pred_check_branch
      %42 = sbr.rel (0) target = $region29
    $region28: #{tpu_custom_call.1} parent=1 // pred_region
      _
    $region29: #{tpu_custom_call.1} parent=1 // pred_fallthru
      _
    // Predicated region
    $region30: #{tpu_custom_call.1} parent=1 // pred_check
      _
    $region31: #{tpu_custom_call.1} parent=1 // pred_check_branch
      %44 = sbr.rel (0) target = $region33
    $region32: #{tpu_custom_call.1} parent=1 // pred_region
      _
    $region33: #{tpu_custom_call.1} parent=1 // pred_fallthru
      _
    // Predicated region
    $region34: #{tpu_custom_call.1} parent=1 // pred_check
      _
    $region35: #{tpu_custom_call.1} parent=1 // pred_check_branch
      %46 = sbr.rel (0) target = $region37
    $region36: #{tpu_custom_call.1} parent=1 // pred_region
      %s48 = ssub.s32 256, 256
      %49 = vsyncadd [#allocation8], %s48
      %s50 = sshll.u32 [#allocation7], 4
      %s51 = int_to_ptr.vmem [resolvable:$true] %s50
      %56 = dma.hbm_to_vmem [thread:$0]  %s8, 256, %s51, [#allocation8], 64, 64, 4
    $region37: #{tpu_custom_call.1} parent=1 // pred_fallthru
      _
    // Predicated region
    $region38: #{tpu_custom_call.1} parent=1 // pred_check
      _
    $region39: #{tpu_custom_call.1} parent=1 // pred_check_branch
      %58 = sbr.rel (0) target = $region41
    $region40: #{tpu_custom_call.1} parent=1 // pred_region
      _
    $region41: #{tpu_custom_call.1} parent=1 // pred_fallthru
      _
    // Predicated region
    $region42: #{tpu_custom_call.1} parent=1 // pred_check
      _
    $region43: #{tpu_custom_call.1} parent=1 // pred_check_branch
      %60 = sbr.rel (0) target = $region45
    $region44: #{tpu_custom_call.1} parent=1 // pred_region
      _
    $region45: #{tpu_custom_call.1} parent=1 // pred_fallthru
      _
    // Predicated region
    $region46: #{tpu_custom_call.1} parent=1 // pred_check
      _
    $region47: #{tpu_custom_call.1} parent=1 // pred_check_branch
      %62 = sbr.rel (0) target = $region49
    $region48: #{tpu_custom_call.1} parent=1 // pred_region
      %s64 = ssub.s32 256, 256
      %65 = vsyncadd [#allocation8], %s64
      %s66 = sshll.u32 [#allocation9], 4
      %s67 = int_to_ptr.vmem [resolvable:$true] %s66
      %72 = dma.hbm_to_vmem [thread:$0]  %s11, 256, %s67, [#allocation8], 64, 64, 4
    $region49: #{tpu_custom_call.1} parent=1 // pred_fallthru
      _
    // Predicated region
    $region50: #{tpu_custom_call.1} parent=1 // pred_check
      _
    $region51: #{tpu_custom_call.1} parent=1 // pred_check_branch
      %74 = sbr.rel (0) target = $region53
    $region52: #{tpu_custom_call.1} parent=1 // pred_region
      _
    $region53: #{tpu_custom_call.1} parent=1 // pred_fallthru
      _
    // Predicated region
    $region54: #{tpu_custom_call.1} parent=1 // pred_check
      _
    $region55: #{tpu_custom_call.1} parent=1 // pred_check_branch
      %76 = sbr.rel (0) target = $region57
    $region56: #{tpu_custom_call.1} parent=1 // pred_region
      %77 = dma.done [#allocation5], 128
    $region57: #{tpu_custom_call.1} parent=1 // pred_fallthru
      _
    // Predicated region
    $region58: #{tpu_custom_call.1} parent=1 // pred_check
      _
    $region59: #{tpu_custom_call.1} parent=1 // pred_check_branch
      %79 = sbr.rel (0) target = $region61
    $region60: #{tpu_custom_call.1} parent=1 // pred_region
      %80 = dma.done [#allocation8], 256
    $region61: #{tpu_custom_call.1} parent=1 // pred_fallthru
      _
    // Predicated region
    $region62: #{tpu_custom_call.1} parent=1 // pred_check
      _
    $region63: #{tpu_custom_call.1} parent=1 // pred_check_branch
      %82 = sbr.rel (0) target = $region65
    $region64: #{tpu_custom_call.1} parent=1 // pred_region
      %83 = dma.done [#allocation8], 256
    $region65: #{tpu_custom_call.1} parent=1 // pred_fallthru
      _
    %v85 = vld [vmem:[#allocation4] sm:$0xff]
    %v86 = vld [vmem:[%s0] sm:$0xf]
    %v87 = vld [vmem:[%s0 + $0x4] sm:$0xf]
    %v88 = vld [vmem:[%s0 + $0x8] sm:$0xf]
    %v89 = vld [vmem:[%s0 + $0xc] sm:$0xf]
    %v90 = vld [vmem:[%s0 + $0x10] sm:$0xf]
    %v91 = vld [vmem:[%s0 + $0x14] sm:$0xf]
    %v92 = vld [vmem:[%s0 + $0x18] sm:$0xf]
    %v93 = vld [vmem:[%s0 + $0x1c] sm:$0xf]
    %v94 = vld [vmem:[%s2] sm:$0xf]
    %v95 = vld [vmem:[%s2 + $0x4] sm:$0xf]
    %v96 = vld [vmem:[%s2 + $0x8] sm:$0xf]
    %v97 = vld [vmem:[%s2 + $0xc] sm:$0xf]
    %v98 = vld [vmem:[%s4] sm:$0x1]
    %v100 = vlaneseq
    %v101 = vshrl.u32 %v100, 7
    %v102 = vsub.s32 0, %v101
    %v103 = vrot.slane %v98, %v102
    %v113 = vunpack.c.l.b16 %v86
    %v114 = vunpack.c.l.b16 %v87
    %v115 = vunpack.c.l.b16 %v88
    %v116 = vunpack.c.l.b16 %v89
    %v117 = vunpack.c.l.b16 %v90
    %v118 = vunpack.c.l.b16 %v91
    %v119 = vunpack.c.l.b16 %v92
    %v120 = vunpack.c.l.b16 %v93
    %v121 = vpack.c.b16 %v114, %v113
    %v122 = vpack.c.b16 %v116, %v115
    %v123 = vpack.c.b16 %v118, %v117
    %v124 = vpack.c.b16 %v120, %v119
    %v129 = vunpack.c.l.b16 %v94
    %v130 = vunpack.c.l.b16 %v95
    %v131 = vunpack.c.l.b16 %v96
    %v132 = vunpack.c.l.b16 %v97
    %v133 = vpack.c.b16 %v130, %v129
    %v134 = vpack.c.b16 %v132, %v131
    %vm137 = vcmask 261120
    %v139 = vsel %vm137, %v121, 0
    %v142 = vsel %vm137, %v122, 0
    %v145 = vsel %vm137, %v123, 0
    %v148 = vsel %vm137, %v124, 0
    %150 = vmatprep.subr.bf16.mxu0 0
    %151 = vmatpush1.bf16.msra.mxu0 %v133
    %152 = vmatprep.subr.bf16.mxu0 0
    %153 = vmatpush1.bf16.msra.mxu0 %v134
    %154 = vmatprep.subr.bf16.mxu0 0
    %155 = vmatpush1.bf16.msra.mxu0 0
    %156 = vmatprep.subr.bf16.mxu0 0
    %157 = vmatpush1.bf16.msra.mxu0 0
    %158 = vmatprep.subr.bf16.mxu0 0
    %159 = vmatpush1.bf16.msra.mxu0 0
    %160 = vmatprep.subr.bf16.mxu0 0
    %161 = vmatpush1.bf16.msra.mxu0 0
    %162 = vmatprep.subr.bf16.mxu0 0
    %163 = vmatpush1.bf16.msra.mxu0 0
    %164 = vmatprep.subr.bf16.mxu0 0
    %165 = vmatpush1.bf16.msra.mxu0 0
    %166 = vmatprep.subr.bf16.mxu0 0
    %167 = vmatpush1.bf16.msra.mxu0 0
    %168 = vmatprep.subr.bf16.mxu0 0
    %169 = vmatpush1.bf16.msra.mxu0 0
    %170 = vmatprep.subr.bf16.mxu0 0
    %171 = vmatpush1.bf16.msra.mxu0 0
    %172 = vmatprep.subr.bf16.mxu0 0
    %173 = vmatpush1.bf16.msra.mxu0 0
    %174 = vmatprep.subr.bf16.mxu0 0
    %175 = vmatpush1.bf16.msra.mxu0 0
    %176 = vmatprep.subr.bf16.mxu0 0
    %177 = vmatpush1.bf16.msra.mxu0 0
    %178 = vmatprep.subr.bf16.mxu0 0
    %179 = vmatpush1.bf16.msra.mxu0 0
    %180 = vmatprep.subr.bf16.mxu0 0
    %181 = vmatpush1.bf16.msra.mxu0 0
    %182 = vmatprep.mubr.bf16.mxu0 0
    %183 = vmatmul.mubr.bf16.gmra.mrb[0].mxu0 %v139
    %v184 = vpop.f32.mrb[0].mxu0
    %v185 = vadd.f32 %v103, %v184
    %v186 = vpop.f32.mrb[0].mxu0
    %v187 = vpop.f32.mrb[0].mxu0
    %v188 = vadd.f32 %v103, %v187
    %v189 = vpop.f32.mrb[0].mxu0
    %190 = vmatprep.mubr.bf16.mxu0 0
    %191 = vmatmul.mubr.bf16.gmra.mrb[0].mxu0 %v142
    %v192 = vpop.f32.mrb[0].mxu0
    %v193 = vadd.f32 %v103, %v192
    %v194 = vpop.f32.mrb[0].mxu0
    %v195 = vpop.f32.mrb[0].mxu0
    %v196 = vadd.f32 %v103, %v195
    %v197 = vpop.f32.mrb[0].mxu0
    %198 = vmatprep.mubr.bf16.mxu0 0
    %199 = vmatmul.mubr.bf16.gmra.mrb[0].mxu0 %v145
    %v200 = vpop.f32.mrb[0].mxu0
    %v201 = vadd.f32 %v103, %v200
    %v202 = vpop.f32.mrb[0].mxu0
    %v203 = vpop.f32.mrb[0].mxu0
    %v204 = vadd.f32 %v103, %v203
    %v205 = vpop.f32.mrb[0].mxu0
    %206 = vmatprep.mubr.bf16.mxu0 0
    %207 = vmatmul.mubr.bf16.gmra.mrb[0].mxu0 %v148
    %v208 = vpop.f32.mrb[0].mxu0
    %v209 = vadd.f32 %v103, %v208
    %v210 = vpop.f32.mrb[0].mxu0
    %v211 = vpop.f32.mrb[0].mxu0
    %v212 = vadd.f32 %v103, %v211
    %v213 = vpop.f32.mrb[0].mxu0
    %214 = vdwg.mxu0
    %215 = vst [vmem:[#allocation3] sm:$0xff] %v185
    %216 = vst [vmem:[#allocation3 + $0x8] sm:$0xff] %v188
    %217 = vst [vmem:[#allocation3 + $0x10] sm:$0xff] %v193
    %218 = vst [vmem:[#allocation3 + $0x18] sm:$0xff] %v196
    %219 = vst [vmem:[#allocation3 + $0x20] sm:$0xff] %v201
    %220 = vst [vmem:[#allocation3 + $0x28] sm:$0xff] %v204
    %221 = vst [vmem:[#allocation3 + $0x30] sm:$0xff] %v209
    %222 = vst [vmem:[#allocation3 + $0x38] sm:$0xff] %v212
    %v223 = vld [vmem:[%s3] sm:$0xf]
    %v224 = vld [vmem:[%s3 + $0x4] sm:$0xf]
    %v225 = vld [vmem:[%s3 + $0x8] sm:$0xf]
    %v226 = vld [vmem:[%s3 + $0xc] sm:$0xf]
    %v227 = vld [vmem:[#allocation3] sm:$0xff]
    %v228 = vpack.c.bf16 %v85, %v85
    %v233 = vunpack.c.l.b16 %v223
    %v234 = vunpack.c.l.b16 %v224
    %v235 = vunpack.c.l.b16 %v225
    %v236 = vunpack.c.l.b16 %v226
    %v237 = vpack.c.b16 %v234, %v233
    %v238 = vpack.c.b16 %v236, %v235
    %v242 = vsel %vm137, %v228, 0
    %244 = vmatprep.subr.bf16.mxu0 0
    %245 = vmatpush1.bf16.msra.mxu0 %v237
    %246 = vmatprep.subr.bf16.mxu0 0
    %247 = vmatpush1.bf16.msra.mxu0 %v238
    %248 = vmatprep.subr.bf16.mxu0 0
    %249 = vmatpush1.bf16.msra.mxu0 0
    %250 = vmatprep.subr.bf16.mxu0 0
    %251 = vmatpush1.bf16.msra.mxu0 0
    %252 = vmatprep.subr.bf16.mxu0 0
    %253 = vmatpush1.bf16.msra.mxu0 0
    %254 = vmatprep.subr.bf16.mxu0 0
    %255 = vmatpush1.bf16.msra.mxu0 0
    %256 = vmatprep.subr.bf16.mxu0 0
    %257 = vmatpush1.bf16.msra.mxu0 0
    %258 = vmatprep.subr.bf16.mxu0 0
    %259 = vmatpush1.bf16.msra.mxu0 0
    %260 = vmatprep.subr.bf16.mxu0 0
    %261 = vmatpush1.bf16.msra.mxu0 0
    %262 = vmatprep.subr.bf16.mxu0 0
    %263 = vmatpush1.bf16.msra.mxu0 0
    %264 = vmatprep.subr.bf16.mxu0 0
    %265 = vmatpush1.bf16.msra.mxu0 0
    %266 = vmatprep.subr.bf16.mxu0 0
    %267 = vmatpush1.bf16.msra.mxu0 0
    %268 = vmatprep.subr.bf16.mxu0 0
    %269 = vmatpush1.bf16.msra.mxu0 0
    %270 = vmatprep.subr.bf16.mxu0 0
    %271 = vmatpush1.bf16.msra.mxu0 0
    %272 = vmatprep.subr.bf16.mxu0 0
    %273 = vmatpush1.bf16.msra.mxu0 0
    %274 = vmatprep.subr.bf16.mxu0 0
    %275 = vmatpush1.bf16.msra.mxu0 0
    %276 = vmatprep.mubr.bf16.mxu0 0
    %277 = vmatmul.mubr.bf16.gmra.mrb[0].mxu0 %v242
    %v278 = vpop.f32.mrb[0].mxu0
    %v279 = vadd.f32 0.0, %v278
    %v280 = vpop.f32.mrb[0].mxu0
    %v281 = vpop.f32.mrb[0].mxu0
    %v282 = vpop.f32.mrb[0].mxu0
    %283 = vdwg.mxu0
    %v284 = vadd.f32 %v227, %v279
    %v285 = vxor.u32 %v284, 2147483648
    %v286 = vmul.f32 %v285, 1.442695
    %v287 = vpow.pop %v286
    %v288 = vadd.f32 %v287, 1.0
    %v289 = vrcp.pop %v288
    %v290 = vmul.f32 1.0, %v289
    %v291 = vtanh.pop %v284
    %293 = vrot.lane.b32.xlu0 %v85, 32
    %v294 = vpop.permute.xlu0 %293
    %v296 = vmul.f32 %v290, %v294
    %298 = vrot.lane.b32.xlu0 %v291, 64
    %v299 = vpop.permute.xlu0 %298
    %v301 = vmul.f32 %v290, %v299
    %303 = vrot.lane.b32.xlu0 %v301, 32
    %v304 = vpop.permute.xlu0 %303
    %v306 = vadd.f32 %v296, %v304
    %v307 = vtanh.pop %v306
    %309 = vrot.lane.b32.xlu0 %v307, 64
    %v310 = vpop.permute.xlu0 %309
    %v312 = vmul.f32 %v290, %v310
    %314 = vrot.lane.b32.xlu0 %v312, 32
    %v315 = vpop.permute.xlu0 %314
    %317 = vst.msk [vmem:[#allocation2] sm:$0xff] %vm137, %v315
    %s318 = scalar_lea.vmem [#allocation3], 8
    %v319 = vld [vmem:[%s318] sm:$0xff]
    %v320 = vpack.c.bf16 %v312, %v312
    %322 = vrot.lane.b32.xlu0 %v320, 32
    %v323 = vpop.permute.xlu0 %322
    %v325 = vsel %vm137, %v323, 0
    %327 = vmatprep.subr.bf16.mxu0 0
    %328 = vmatpush1.bf16.msra.mxu0 %v237
    %329 = vmatprep.subr.bf16.mxu0 0
    %330 = vmatpush1.bf16.msra.mxu0 %v238
    %331 = vmatprep.subr.bf16.mxu0 0
    %332 = vmatpush1.bf16.msra.mxu0 0
    %333 = vmatprep.subr.bf16.mxu0 0
    %334 = vmatpush1.bf16.msra.mxu0 0
    %335 = vmatprep.subr.bf16.mxu0 0
    %336 = vmatpush1.bf16.msra.mxu0 0
    %337 = vmatprep.subr.bf16.mxu0 0
    %338 = vmatpush1.bf16.msra.mxu0 0
    %339 = vmatprep.subr.bf16.mxu0 0
    %340 = vmatpush1.bf16.msra.mxu0 0
    %341 = vmatprep.subr.bf16.mxu0 0
    %342 = vmatpush1.bf16.msra.mxu0 0
    %343 = vmatprep.subr.bf16.mxu0 0
    %344 = vmatpush1.bf16.msra.mxu0 0
    %345 = vmatprep.subr.bf16.mxu0 0
    %346 = vmatpush1.bf16.msra.mxu0 0
    %347 = vmatprep.subr.bf16.mxu0 0
    %348 = vmatpush1.bf16.msra.mxu0 0
    %349 = vmatprep.subr.bf16.mxu0 0
    %350 = vmatpush1.bf16.msra.mxu0 0
    %351 = vmatprep.subr.bf16.mxu0 0
    %352 = vmatpush1.bf16.msra.mxu0 0
    %353 = vmatprep.subr.bf16.mxu0 0
    %354 = vmatpush1.bf16.msra.mxu0 0
    %355 = vmatprep.subr.bf16.mxu0 0
    %356 = vmatpush1.bf16.msra.mxu0 0
    %357 = vmatprep.subr.bf16.mxu0 0
    %358 = vmatpush1.bf16.msra.mxu0 0
    %359 = vmatprep.mubr.bf16.mxu0 0
    %360 = vmatmul.mubr.bf16.gmra.mrb[0].mxu0 %v325
    %v361 = vpop.f32.mrb[0].mxu0
    %v362 = vadd.f32 0.0, %v361
    %v363 = vpop.f32.mrb[0].mxu0
    %v364 = vpop.f32.mrb[0].mxu0
    %v365 = vpop.f32.mrb[0].mxu0
    %366 = vdwg.mxu0
    %v367 = vadd.f32 %v319, %v362
    %v368 = vxor.u32 %v367, 2147483648
    %v369 = vmul.f32 %v368, 1.442695
    %v370 = vpow.pop %v369
    %v371 = vadd.f32 %v370, 1.0
    %v372 = vrcp.pop %v371
    %v373 = vmul.f32 1.0, %v372
    %v374 = vtanh.pop %v367
    %v375 = vmul.f32 %v373, %v306
    %377 = vrot.lane.b32.xlu0 %v374, 64
    %v378 = vpop.permute.xlu0 %377
    %v380 = vmul.f32 %v373, %v378
    %382 = vrot.lane.b32.xlu0 %v380, 32
    %v383 = vpop.permute.xlu0 %382
    %v385 = vadd.f32 %v375, %v383
    %v386 = vtanh.pop %v385
    %388 = vrot.lane.b32.xlu0 %v386, 64
    %v389 = vpop.permute.xlu0 %388
    %v391 = vmul.f32 %v373, %v389
    %393 = vrot.lane.b32.xlu0 %v391, 32
    %v394 = vpop.permute.xlu0 %393
    %s396 = scalar_lea.vmem [#allocation2], 8
    %397 = vst.msk [vmem:[%s396] sm:$0xff] %vm137, %v394
    %s398 = scalar_lea.vmem [#allocation3], 16
    %v399 = vld [vmem:[%s398] sm:$0xff]
    %v400 = vpack.c.bf16 %v391, %v391
    %402 = vrot.lane.b32.xlu0 %v400, 32
    %v403 = vpop.permute.xlu0 %402
    %v405 = vsel %vm137, %v403, 0
    %407 = vmatprep.subr.bf16.mxu0 0
    %408 = vmatpush1.bf16.msra.mxu0 %v237
    %409 = vmatprep.subr.bf16.mxu0 0
    %410 = vmatpush1.bf16.msra.mxu0 %v238
    %411 = vmatprep.subr.bf16.mxu0 0
    %412 = vmatpush1.bf16.msra.mxu0 0
    %413 = vmatprep.subr.bf16.mxu0 0
    %414 = vmatpush1.bf16.msra.mxu0 0
    %415 = vmatprep.subr.bf16.mxu0 0
    %416 = vmatpush1.bf16.msra.mxu0 0
    %417 = vmatprep.subr.bf16.mxu0 0
    %418 = vmatpush1.bf16.msra.mxu0 0
    %419 = vmatprep.subr.bf16.mxu0 0
    %420 = vmatpush1.bf16.msra.mxu0 0
    %421 = vmatprep.subr.bf16.mxu0 0
    %422 = vmatpush1.bf16.msra.mxu0 0
    %423 = vmatprep.subr.bf16.mxu0 0
    %424 = vmatpush1.bf16.msra.mxu0 0
    %425 = vmatprep.subr.bf16.mxu0 0
    %426 = vmatpush1.bf16.msra.mxu0 0
    %427 = vmatprep.subr.bf16.mxu0 0
    %428 = vmatpush1.bf16.msra.mxu0 0
    %429 = vmatprep.subr.bf16.mxu0 0
    %430 = vmatpush1.bf16.msra.mxu0 0
    %431 = vmatprep.subr.bf16.mxu0 0
    %432 = vmatpush1.bf16.msra.mxu0 0
    %433 = vmatprep.subr.bf16.mxu0 0
    %434 = vmatpush1.bf16.msra.mxu0 0
    %435 = vmatprep.subr.bf16.mxu0 0
    %436 = vmatpush1.bf16.msra.mxu0 0
    %437 = vmatprep.subr.bf16.mxu0 0
    %438 = vmatpush1.bf16.msra.mxu0 0
    %439 = vmatprep.mubr.bf16.mxu0 0
    %440 = vmatmul.mubr.bf16.gmra.mrb[0].mxu0 %v405
    %v441 = vpop.f32.mrb[0].mxu0
    %v442 = vadd.f32 0.0, %v441
    %v443 = vpop.f32.mrb[0].mxu0
    %v444 = vpop.f32.mrb[0].mxu0
    %v445 = vpop.f32.mrb[0].mxu0
    %446 = vdwg.mxu0
    %v447 = vadd.f32 %v399, %v442
    %v448 = vxor.u32 %v447, 2147483648
    %v449 = vmul.f32 %v448, 1.442695
    %v450 = vpow.pop %v449
    %v451 = vadd.f32 %v450, 1.0
    %v452 = vrcp.pop %v451
    %v453 = vmul.f32 1.0, %v452
    %v454 = vtanh.pop %v447
    %v455 = vmul.f32 %v453, %v385
    %457 = vrot.lane.b32.xlu0 %v454, 64
    %v458 = vpop.permute.xlu0 %457
    %v460 = vmul.f32 %v453, %v458
    %462 = vrot.lane.b32.xlu0 %v460, 32
    %v463 = vpop.permute.xlu0 %462
    %v465 = vadd.f32 %v455, %v463
    %v466 = vtanh.pop %v465
    %468 = vrot.lane.b32.xlu0 %v466, 64
    %v469 = vpop.permute.xlu0 %468
    %v471 = vmul.f32 %v453, %v469
    %473 = vrot.lane.b32.xlu0 %v471, 32
    %v474 = vpop.permute.xlu0 %473
    %s476 = scalar_lea.vmem [#allocation2], 16
    %477 = vst.msk [vmem:[%s476] sm:$0xff] %vm137, %v474
    %s478 = scalar_lea.vmem [#allocation3], 24
    %v479 = vld [vmem:[%s478] sm:$0xff]
    %v480 = vpack.c.bf16 %v471, %v471
    %482 = vrot.lane.b32.xlu0 %v480, 32
    %v483 = vpop.permute.xlu0 %482
    %v485 = vsel %vm137, %v483, 0
    %487 = vmatprep.subr.bf16.mxu0 0
    %488 = vmatpush1.bf16.msra.mxu0 %v237
    %489 = vmatprep.subr.bf16.mxu0 0
    %490 = vmatpush1.bf16.msra.mxu0 %v238
    %491 = vmatprep.subr.bf16.mxu0 0
    %492 = vmatpush1.bf16.msra.mxu0 0
    %493 = vmatprep.subr.bf16.mxu0 0
    %494 = vmatpush1.bf16.msra.mxu0 0
    %495 = vmatprep.subr.bf16.mxu0 0
    %496 = vmatpush1.bf16.msra.mxu0 0
    %497 = vmatprep.subr.bf16.mxu0 0
    %498 = vmatpush1.bf16.msra.mxu0 0
    %499 = vmatprep.subr.bf16.mxu0 0
    %500 = vmatpush1.bf16.msra.mxu0 0
    %501 = vmatprep.subr.bf16.mxu0 0
    %502 = vmatpush1.bf16.msra.mxu0 0
    %503 = vmatprep.subr.bf16.mxu0 0
    %504 = vmatpush1.bf16.msra.mxu0 0
    %505 = vmatprep.subr.bf16.mxu0 0
    %506 = vmatpush1.bf16.msra.mxu0 0
    %507 = vmatprep.subr.bf16.mxu0 0
    %508 = vmatpush1.bf16.msra.mxu0 0
    %509 = vmatprep.subr.bf16.mxu0 0
    %510 = vmatpush1.bf16.msra.mxu0 0
    %511 = vmatprep.subr.bf16.mxu0 0
    %512 = vmatpush1.bf16.msra.mxu0 0
    %513 = vmatprep.subr.bf16.mxu0 0
    %514 = vmatpush1.bf16.msra.mxu0 0
    %515 = vmatprep.subr.bf16.mxu0 0
    %516 = vmatpush1.bf16.msra.mxu0 0
    %517 = vmatprep.subr.bf16.mxu0 0
    %518 = vmatpush1.bf16.msra.mxu0 0
    %519 = vmatprep.mubr.bf16.mxu0 0
    %520 = vmatmul.mubr.bf16.gmra.mrb[0].mxu0 %v485
    %v521 = vpop.f32.mrb[0].mxu0
    %v522 = vadd.f32 0.0, %v521
    %v523 = vpop.f32.mrb[0].mxu0
    %v524 = vpop.f32.mrb[0].mxu0
    %v525 = vpop.f32.mrb[0].mxu0
    %526 = vdwg.mxu0
    %v527 = vadd.f32 %v479, %v522
    %v528 = vxor.u32 %v527, 2147483648
    %v529 = vmul.f32 %v528, 1.442695
    %v530 = vpow.pop %v529
    %v531 = vadd.f32 %v530, 1.0
    %v532 = vrcp.pop %v531
    %v533 = vmul.f32 1.0, %v532
    %v534 = vtanh.pop %v527
    %v535 = vmul.f32 %v533, %v465
    %537 = vrot.lane.b32.xlu0 %v534, 64
    %v538 = vpop.permute.xlu0 %537
    %v540 = vmul.f32 %v533, %v538
    %542 = vrot.lane.b32.xlu0 %v540, 32
    %v543 = vpop.permute.xlu0 %542
    %v545 = vadd.f32 %v535, %v543
    %v546 = vtanh.pop %v545
    %548 = vrot.lane.b32.xlu0 %v546, 64
    %v549 = vpop.permute.xlu0 %548
    %v551 = vmul.f32 %v533, %v549
    %553 = vrot.lane.b32.xlu0 %v551, 32
    %v554 = vpop.permute.xlu0 %553
    %s556 = scalar_lea.vmem [#allocation2], 24
    %557 = vst.msk [vmem:[%s556] sm:$0xff] %vm137, %v554
    %s558 = scalar_lea.vmem [#allocation3], 32
    %v559 = vld [vmem:[%s558] sm:$0xff]
    %v560 = vpack.c.bf16 %v551, %v551
    %562 = vrot.lane.b32.xlu0 %v560, 32
    %v563 = vpop.permute.xlu0 %562
    %v565 = vsel %vm137, %v563, 0
    %567 = vmatprep.subr.bf16.mxu0 0
    %568 = vmatpush1.bf16.msra.mxu0 %v237
    %569 = vmatprep.subr.bf16.mxu0 0
    %570 = vmatpush1.bf16.msra.mxu0 %v238
    %571 = vmatprep.subr.bf16.mxu0 0
    %572 = vmatpush1.bf16.msra.mxu0 0
    %573 = vmatprep.subr.bf16.mxu0 0
    %574 = vmatpush1.bf16.msra.mxu0 0
    %575 = vmatprep.subr.bf16.mxu0 0
    %576 = vmatpush1.bf16.msra.mxu0 0
    %577 = vmatprep.subr.bf16.mxu0 0
    %578 = vmatpush1.bf16.msra.mxu0 0
    %579 = vmatprep.subr.bf16.mxu0 0
    %580 = vmatpush1.bf16.msra.mxu0 0
    %581 = vmatprep.subr.bf16.mxu0 0
    %582 = vmatpush1.bf16.msra.mxu0 0
    %583 = vmatprep.subr.bf16.mxu0 0
    %584 = vmatpush1.bf16.msra.mxu0 0
    %585 = vmatprep.subr.bf16.mxu0 0
    %586 = vmatpush1.bf16.msra.mxu0 0
    %587 = vmatprep.subr.bf16.mxu0 0
    %588 = vmatpush1.bf16.msra.mxu0 0
    %589 = vmatprep.subr.bf16.mxu0 0
    %590 = vmatpush1.bf16.msra.mxu0 0
    %591 = vmatprep.subr.bf16.mxu0 0
    %592 = vmatpush1.bf16.msra.mxu0 0
    %593 = vmatprep.subr.bf16.mxu0 0
    %594 = vmatpush1.bf16.msra.mxu0 0
    %595 = vmatprep.subr.bf16.mxu0 0
    %596 = vmatpush1.bf16.msra.mxu0 0
    %597 = vmatprep.subr.bf16.mxu0 0
    %598 = vmatpush1.bf16.msra.mxu0 0
    %599 = vmatprep.mubr.bf16.mxu0 0
    %600 = vmatmul.mubr.bf16.gmra.mrb[0].mxu0 %v565
    %v601 = vpop.f32.mrb[0].mxu0
    %v602 = vadd.f32 0.0, %v601
    %v603 = vpop.f32.mrb[0].mxu0
    %v604 = vpop.f32.mrb[0].mxu0
    %v605 = vpop.f32.mrb[0].mxu0
    %606 = vdwg.mxu0
    %v607 = vadd.f32 %v559, %v602
    %v608 = vxor.u32 %v607, 2147483648
    %v609 = vmul.f32 %v608, 1.442695
    %v610 = vpow.pop %v609
    %v611 = vadd.f32 %v610, 1.0
    %v612 = vrcp.pop %v611
    %v613 = vmul.f32 1.0, %v612
    %v614 = vtanh.pop %v607
    %v615 = vmul.f32 %v613, %v545
    %617 = vrot.lane.b32.xlu0 %v614, 64
    %v618 = vpop.permute.xlu0 %617
    %v620 = vmul.f32 %v613, %v618
    %622 = vrot.lane.b32.xlu0 %v620, 32
    %v623 = vpop.permute.xlu0 %622
    %v625 = vadd.f32 %v615, %v623
    %v626 = vtanh.pop %v625
    %628 = vrot.lane.b32.xlu0 %v626, 64
    %v629 = vpop.permute.xlu0 %628
    %v631 = vmul.f32 %v613, %v629
    %633 = vrot.lane.b32.xlu0 %v631, 32
    %v634 = vpop.permute.xlu0 %633
    %s636 = scalar_lea.vmem [#allocation2], 32
    %637 = vst.msk [vmem:[%s636] sm:$0xff] %vm137, %v634
    %s638 = scalar_lea.vmem [#allocation3], 40
    %v639 = vld [vmem:[%s638] sm:$0xff]
    %v640 = vpack.c.bf16 %v631, %v631
    %642 = vrot.lane.b32.xlu0 %v640, 32
    %v643 = vpop.permute.xlu0 %642
    %v645 = vsel %vm137, %v643, 0
    %647 = vmatprep.subr.bf16.mxu0 0
    %648 = vmatpush1.bf16.msra.mxu0 %v237
    %649 = vmatprep.subr.bf16.mxu0 0
    %650 = vmatpush1.bf16.msra.mxu0 %v238
    %651 = vmatprep.subr.bf16.mxu0 0
    %652 = vmatpush1.bf16.msra.mxu0 0
    %653 = vmatprep.subr.bf16.mxu0 0
    %654 = vmatpush1.bf16.msra.mxu0 0
    %655 = vmatprep.subr.bf16.mxu0 0
    %656 = vmatpush1.bf16.msra.mxu0 0
    %657 = vmatprep.subr.bf16.mxu0 0
    %658 = vmatpush1.bf16.msra.mxu0 0
    %659 = vmatprep.subr.bf16.mxu0 0
    %660 = vmatpush1.bf16.msra.mxu0 0
    %661 = vmatprep.subr.bf16.mxu0 0
    %662 = vmatpush1.bf16.msra.mxu0 0
    %663 = vmatprep.subr.bf16.mxu0 0
    %664 = vmatpush1.bf16.msra.mxu0 0
    %665 = vmatprep.subr.bf16.mxu0 0
    %666 = vmatpush1.bf16.msra.mxu0 0
    %667 = vmatprep.subr.bf16.mxu0 0
    %668 = vmatpush1.bf16.msra.mxu0 0
    %669 = vmatprep.subr.bf16.mxu0 0
    %670 = vmatpush1.bf16.msra.mxu0 0
    %671 = vmatprep.subr.bf16.mxu0 0
    %672 = vmatpush1.bf16.msra.mxu0 0
    %673 = vmatprep.subr.bf16.mxu0 0
    %674 = vmatpush1.bf16.msra.mxu0 0
    %675 = vmatprep.subr.bf16.mxu0 0
    %676 = vmatpush1.bf16.msra.mxu0 0
    %677 = vmatprep.subr.bf16.mxu0 0
    %678 = vmatpush1.bf16.msra.mxu0 0
    %679 = vmatprep.mubr.bf16.mxu0 0
    %680 = vmatmul.mubr.bf16.gmra.mrb[0].mxu0 %v645
    %v681 = vpop.f32.mrb[0].mxu0
    %v682 = vadd.f32 0.0, %v681
    %v683 = vpop.f32.mrb[0].mxu0
    %v684 = vpop.f32.mrb[0].mxu0
    %v685 = vpop.f32.mrb[0].mxu0
    %686 = vdwg.mxu0
    %v687 = vadd.f32 %v639, %v682
    %v688 = vxor.u32 %v687, 2147483648
    %v689 = vmul.f32 %v688, 1.442695
    %v690 = vpow.pop %v689
    %v691 = vadd.f32 %v690, 1.0
    %v692 = vrcp.pop %v691
    %v693 = vmul.f32 1.0, %v692
    %v694 = vtanh.pop %v687
    %v695 = vmul.f32 %v693, %v625
    %697 = vrot.lane.b32.xlu0 %v694, 64
    %v698 = vpop.permute.xlu0 %697
    %v700 = vmul.f32 %v693, %v698
    %702 = vrot.lane.b32.xlu0 %v700, 32
    %v703 = vpop.permute.xlu0 %702
    %v705 = vadd.f32 %v695, %v703
    %v706 = vtanh.pop %v705
    %708 = vrot.lane.b32.xlu0 %v706, 64
    %v709 = vpop.permute.xlu0 %708
    %v711 = vmul.f32 %v693, %v709
    %713 = vrot.lane.b32.xlu0 %v711, 32
    %v714 = vpop.permute.xlu0 %713
    %s716 = scalar_lea.vmem [#allocation2], 40
    %717 = vst.msk [vmem:[%s716] sm:$0xff] %vm137, %v714
    %s718 = scalar_lea.vmem [#allocation3], 48
    %v719 = vld [vmem:[%s718] sm:$0xff]
    %v720 = vpack.c.bf16 %v711, %v711
    %722 = vrot.lane.b32.xlu0 %v720, 32
    %v723 = vpop.permute.xlu0 %722
    %v725 = vsel %vm137, %v723, 0
    %727 = vmatprep.subr.bf16.mxu0 0
    %728 = vmatpush1.bf16.msra.mxu0 %v237
    %729 = vmatprep.subr.bf16.mxu0 0
    %730 = vmatpush1.bf16.msra.mxu0 %v238
    %731 = vmatprep.subr.bf16.mxu0 0
    %732 = vmatpush1.bf16.msra.mxu0 0
    %733 = vmatprep.subr.bf16.mxu0 0
    %734 = vmatpush1.bf16.msra.mxu0 0
    %735 = vmatprep.subr.bf16.mxu0 0
    %736 = vmatpush1.bf16.msra.mxu0 0
    %737 = vmatprep.subr.bf16.mxu0 0
    %738 = vmatpush1.bf16.msra.mxu0 0
    %739 = vmatprep.subr.bf16.mxu0 0
    %740 = vmatpush1.bf16.msra.mxu0 0
    %741 = vmatprep.subr.bf16.mxu0 0
    %742 = vmatpush1.bf16.msra.mxu0 0
    %743 = vmatprep.subr.bf16.mxu0 0
    %744 = vmatpush1.bf16.msra.mxu0 0
    %745 = vmatprep.subr.bf16.mxu0 0
    %746 = vmatpush1.bf16.msra.mxu0 0
    %747 = vmatprep.subr.bf16.mxu0 0
    %748 = vmatpush1.bf16.msra.mxu0 0
    %749 = vmatprep.subr.bf16.mxu0 0
    %750 = vmatpush1.bf16.msra.mxu0 0
    %751 = vmatprep.subr.bf16.mxu0 0
    %752 = vmatpush1.bf16.msra.mxu0 0
    %753 = vmatprep.subr.bf16.mxu0 0
    %754 = vmatpush1.bf16.msra.mxu0 0
    %755 = vmatprep.subr.bf16.mxu0 0
    %756 = vmatpush1.bf16.msra.mxu0 0
    %757 = vmatprep.subr.bf16.mxu0 0
    %758 = vmatpush1.bf16.msra.mxu0 0
    %759 = vmatprep.mubr.bf16.mxu0 0
    %760 = vmatmul.mubr.bf16.gmra.mrb[0].mxu0 %v725
    %v761 = vpop.f32.mrb[0].mxu0
    %v762 = vadd.f32 0.0, %v761
    %v763 = vpop.f32.mrb[0].mxu0
    %v764 = vpop.f32.mrb[0].mxu0
    %v765 = vpop.f32.mrb[0].mxu0
    %766 = vdwg.mxu0
    %v767 = vadd.f32 %v719, %v762
    %v768 = vxor.u32 %v767, 2147483648
    %v769 = vmul.f32 %v768, 1.442695
    %v770 = vpow.pop %v769
    %v771 = vadd.f32 %v770, 1.0
    %v772 = vrcp.pop %v771
    %v773 = vmul.f32 1.0, %v772
    %v774 = vtanh.pop %v767
    %v775 = vmul.f32 %v773, %v705
    %777 = vrot.lane.b32.xlu0 %v774, 64
    %v778 = vpop.permute.xlu0 %777
    %v780 = vmul.f32 %v773, %v778
    %782 = vrot.lane.b32.xlu0 %v780, 32
    %v783 = vpop.permute.xlu0 %782
    %v785 = vadd.f32 %v775, %v783
    %v786 = vtanh.pop %v785
    %788 = vrot.lane.b32.xlu0 %v786, 64
    %v789 = vpop.permute.xlu0 %788
    %v791 = vmul.f32 %v773, %v789
    %793 = vrot.lane.b32.xlu0 %v791, 32
    %v794 = vpop.permute.xlu0 %793
    %s796 = scalar_lea.vmem [#allocation2], 48
    %797 = vst.msk [vmem:[%s796] sm:$0xff] %vm137, %v794
    %s798 = scalar_lea.vmem [#allocation3], 56
    %v799 = vld [vmem:[%s798] sm:$0xff]
    %v800 = vpack.c.bf16 %v791, %v791
    %802 = vrot.lane.b32.xlu0 %v800, 32
    %v803 = vpop.permute.xlu0 %802
    %v805 = vsel %vm137, %v803, 0
    %807 = vmatprep.subr.bf16.mxu0 0
    %808 = vmatpush1.bf16.msra.mxu0 %v237
    %809 = vmatprep.subr.bf16.mxu0 0
    %810 = vmatpush1.bf16.msra.mxu0 %v238
    %811 = vmatprep.subr.bf16.mxu0 0
    %812 = vmatpush1.bf16.msra.mxu0 0
    %813 = vmatprep.subr.bf16.mxu0 0
    %814 = vmatpush1.bf16.msra.mxu0 0
    %815 = vmatprep.subr.bf16.mxu0 0
    %816 = vmatpush1.bf16.msra.mxu0 0
    %817 = vmatprep.subr.bf16.mxu0 0
    %818 = vmatpush1.bf16.msra.mxu0 0
    %819 = vmatprep.subr.bf16.mxu0 0
    %820 = vmatpush1.bf16.msra.mxu0 0
    %821 = vmatprep.subr.bf16.mxu0 0
    %822 = vmatpush1.bf16.msra.mxu0 0
    %823 = vmatprep.subr.bf16.mxu0 0
    %824 = vmatpush1.bf16.msra.mxu0 0
    %825 = vmatprep.subr.bf16.mxu0 0
    %826 = vmatpush1.bf16.msra.mxu0 0
    %827 = vmatprep.subr.bf16.mxu0 0
    %828 = vmatpush1.bf16.msra.mxu0 0
    %829 = vmatprep.subr.bf16.mxu0 0
    %830 = vmatpush1.bf16.msra.mxu0 0
    %831 = vmatprep.subr.bf16.mxu0 0
    %832 = vmatpush1.bf16.msra.mxu0 0
    %833 = vmatprep.subr.bf16.mxu0 0
    %834 = vmatpush1.bf16.msra.mxu0 0
    %835 = vmatprep.subr.bf16.mxu0 0
    %836 = vmatpush1.bf16.msra.mxu0 0
    %837 = vmatprep.subr.bf16.mxu0 0
    %838 = vmatpush1.bf16.msra.mxu0 0
    %839 = vmatprep.mubr.bf16.mxu0 0
    %840 = vmatmul.mubr.bf16.gmra.mrb[0].mxu0 %v805
    %v841 = vpop.f32.mrb[0].mxu0
    %v842 = vadd.f32 0.0, %v841
    %v843 = vpop.f32.mrb[0].mxu0
    %v844 = vpop.f32.mrb[0].mxu0
    %v845 = vpop.f32.mrb[0].mxu0
    %846 = vdwg.mxu0
    %v847 = vadd.f32 %v799, %v842
    %v848 = vxor.u32 %v847, 2147483648
    %v849 = vmul.f32 %v848, 1.442695
    %v850 = vpow.pop %v849
    %v851 = vadd.f32 %v850, 1.0
    %v852 = vrcp.pop %v851
    %v853 = vmul.f32 1.0, %v852
    %v854 = vtanh.pop %v847
    %v855 = vmul.f32 %v853, %v785
    %857 = vrot.lane.b32.xlu0 %v854, 64
    %v858 = vpop.permute.xlu0 %857
    %v860 = vmul.f32 %v853, %v858
    %862 = vrot.lane.b32.xlu0 %v860, 32
    %v863 = vpop.permute.xlu0 %862
    %v865 = vadd.f32 %v855, %v863
    %v866 = vtanh.pop %v865
    %868 = vrot.lane.b32.xlu0 %v866, 64
    %v869 = vpop.permute.xlu0 %868
    %v871 = vmul.f32 %v853, %v869
    %873 = vrot.lane.b32.xlu0 %v871, 32
    %v874 = vpop.permute.xlu0 %873
    %s876 = scalar_lea.vmem [#allocation2], 56
    %877 = vst.msk [vmem:[%s876] sm:$0xff] %vm137, %v874
    %v878 = vld [vmem:[#allocation2] sm:$0xff]
    %v879 = vld [vmem:[#allocation2 + $0x8] sm:$0xff]
    %v880 = vld [vmem:[#allocation2 + $0x10] sm:$0xff]
    %v881 = vld [vmem:[#allocation2 + $0x18] sm:$0xff]
    %v882 = vld [vmem:[#allocation2 + $0x20] sm:$0xff]
    %v883 = vld [vmem:[#allocation2 + $0x28] sm:$0xff]
    %v884 = vld [vmem:[#allocation2 + $0x30] sm:$0xff]
    %v885 = vld [vmem:[#allocation2 + $0x38] sm:$0xff]
    %v886 = vpack.c.bf16 %v879, %v878
    %v887 = vpack.c.bf16 %v881, %v880
    %v888 = vpack.c.bf16 %v883, %v882
    %v889 = vpack.c.bf16 %v885, %v884
    %v890 = vld [vmem:[%s5] sm:$0xf]
    %v891 = vld [vmem:[%s5 + $0x4] sm:$0xf]
    %v892 = vld [vmem:[%s5 + $0x8] sm:$0xf]
    %v893 = vld [vmem:[%s5 + $0xc] sm:$0xf]
    %v894 = vld [vmem:[%s7] sm:$0x1]
    %v896 = vlaneseq
    %v897 = vshrl.u32 %v896, 7
    %v898 = vsub.s32 0, %v897
    %v899 = vrot.slane %v894, %v898
    %v905 = vunpack.c.l.b16 %v890
    %v906 = vunpack.c.l.b16 %v891
    %v907 = vunpack.c.l.b16 %v892
    %v908 = vunpack.c.l.b16 %v893
    %v909 = vpack.c.b16 %v906, %v905
    %v910 = vpack.c.b16 %v908, %v907
    %v914 = vsel %vm137, %v886, 0
    %v917 = vsel %vm137, %v887, 0
    %v920 = vsel %vm137, %v888, 0
    %v923 = vsel %vm137, %v889, 0
    %925 = vmatprep.subr.bf16.mxu0 0
    %926 = vmatpush1.bf16.msra.mxu0 %v909
    %927 = vmatprep.subr.bf16.mxu0 0
    %928 = vmatpush1.bf16.msra.mxu0 %v910
    %929 = vmatprep.subr.bf16.mxu0 0
    %930 = vmatpush1.bf16.msra.mxu0 0
    %931 = vmatprep.subr.bf16.mxu0 0
    %932 = vmatpush1.bf16.msra.mxu0 0
    %933 = vmatprep.subr.bf16.mxu0 0
    %934 = vmatpush1.bf16.msra.mxu0 0
    %935 = vmatprep.subr.bf16.mxu0 0
    %936 = vmatpush1.bf16.msra.mxu0 0
    %937 = vmatprep.subr.bf16.mxu0 0
    %938 = vmatpush1.bf16.msra.mxu0 0
    %939 = vmatprep.subr.bf16.mxu0 0
    %940 = vmatpush1.bf16.msra.mxu0 0
    %941 = vmatprep.subr.bf16.mxu0 0
    %942 = vmatpush1.bf16.msra.mxu0 0
    %943 = vmatprep.subr.bf16.mxu0 0
    %944 = vmatpush1.bf16.msra.mxu0 0
    %945 = vmatprep.subr.bf16.mxu0 0
    %946 = vmatpush1.bf16.msra.mxu0 0
    %947 = vmatprep.subr.bf16.mxu0 0
    %948 = vmatpush1.bf16.msra.mxu0 0
    %949 = vmatprep.subr.bf16.mxu0 0
    %950 = vmatpush1.bf16.msra.mxu0 0
    %951 = vmatprep.subr.bf16.mxu0 0
    %952 = vmatpush1.bf16.msra.mxu0 0
    %953 = vmatprep.subr.bf16.mxu0 0
    %954 = vmatpush1.bf16.msra.mxu0 0
    %955 = vmatprep.subr.bf16.mxu0 0
    %956 = vmatpush1.bf16.msra.mxu0 0
    %957 = vmatprep.mubr.bf16.mxu0 0
    %958 = vmatmul.mubr.bf16.gmra.mrb[0].mxu0 %v914
    %v959 = vpop.f32.mrb[0].mxu0
    %v960 = vadd.f32 %v899, %v959
    %v961 = vpop.f32.mrb[0].mxu0
    %v962 = vpop.f32.mrb[0].mxu0
    %v963 = vadd.f32 %v899, %v962
    %v964 = vpop.f32.mrb[0].mxu0
    %965 = vmatprep.mubr.bf16.mxu0 0
    %966 = vmatmul.mubr.bf16.gmra.mrb[0].mxu0 %v917
    %v967 = vpop.f32.mrb[0].mxu0
    %v968 = vadd.f32 %v899, %v967
    %v969 = vpop.f32.mrb[0].mxu0
    %v970 = vpop.f32.mrb[0].mxu0
    %v971 = vadd.f32 %v899, %v970
    %v972 = vpop.f32.mrb[0].mxu0
    %973 = vmatprep.mubr.bf16.mxu0 0
    %974 = vmatmul.mubr.bf16.gmra.mrb[0].mxu0 %v920
    %v975 = vpop.f32.mrb[0].mxu0
    %v976 = vadd.f32 %v899, %v975
    %v977 = vpop.f32.mrb[0].mxu0
    %v978 = vpop.f32.mrb[0].mxu0
    %v979 = vadd.f32 %v899, %v978
    %v980 = vpop.f32.mrb[0].mxu0
    %981 = vmatprep.mubr.bf16.mxu0 0
    %982 = vmatmul.mubr.bf16.gmra.mrb[0].mxu0 %v923
    %v983 = vpop.f32.mrb[0].mxu0
    %v984 = vadd.f32 %v899, %v983
    %v985 = vpop.f32.mrb[0].mxu0
    %v986 = vpop.f32.mrb[0].mxu0
    %v987 = vadd.f32 %v899, %v986
    %v988 = vpop.f32.mrb[0].mxu0
    %989 = vdwg.mxu0
    %990 = vst [vmem:[#allocation3] sm:$0xff] %v960
    %991 = vst [vmem:[#allocation3 + $0x8] sm:$0xff] %v963
    %992 = vst [vmem:[#allocation3 + $0x10] sm:$0xff] %v968
    %993 = vst [vmem:[#allocation3 + $0x18] sm:$0xff] %v971
    %994 = vst [vmem:[#allocation3 + $0x20] sm:$0xff] %v976
    %995 = vst [vmem:[#allocation3 + $0x28] sm:$0xff] %v979
    %996 = vst [vmem:[#allocation3 + $0x30] sm:$0xff] %v984
    %997 = vst [vmem:[#allocation3 + $0x38] sm:$0xff] %v987
    %v998 = vld [vmem:[%s6] sm:$0xf]
    %v999 = vld [vmem:[%s6 + $0x4] sm:$0xf]
    %v1000 = vld [vmem:[%s6 + $0x8] sm:$0xf]
    %v1001 = vld [vmem:[%s6 + $0xc] sm:$0xf]
    %v1002 = vld [vmem:[#allocation3] sm:$0xff]
    %v1007 = vunpack.c.l.b16 %v998
    %v1008 = vunpack.c.l.b16 %v999
    %v1009 = vunpack.c.l.b16 %v1000
    %v1010 = vunpack.c.l.b16 %v1001
    %v1011 = vpack.c.b16 %v1008, %v1007
    %v1012 = vpack.c.b16 %v1010, %v1009
    %1015 = vmatprep.subr.bf16.mxu0 0
    %1016 = vmatpush1.bf16.msra.mxu0 %v1011
    %1017 = vmatprep.subr.bf16.mxu0 0
    %1018 = vmatpush1.bf16.msra.mxu0 %v1012
    %1019 = vmatprep.subr.bf16.mxu0 0
    %1020 = vmatpush1.bf16.msra.mxu0 0
    %1021 = vmatprep.subr.bf16.mxu0 0
    %1022 = vmatpush1.bf16.msra.mxu0 0
    %1023 = vmatprep.subr.bf16.mxu0 0
    %1024 = vmatpush1.bf16.msra.mxu0 0
    %1025 = vmatprep.subr.bf16.mxu0 0
    %1026 = vmatpush1.bf16.msra.mxu0 0
    %1027 = vmatprep.subr.bf16.mxu0 0
    %1028 = vmatpush1.bf16.msra.mxu0 0
    %1029 = vmatprep.subr.bf16.mxu0 0
    %1030 = vmatpush1.bf16.msra.mxu0 0
    %1031 = vmatprep.subr.bf16.mxu0 0
    %1032 = vmatpush1.bf16.msra.mxu0 0
    %1033 = vmatprep.subr.bf16.mxu0 0
    %1034 = vmatpush1.bf16.msra.mxu0 0
    %1035 = vmatprep.subr.bf16.mxu0 0
    %1036 = vmatpush1.bf16.msra.mxu0 0
    %1037 = vmatprep.subr.bf16.mxu0 0
    %1038 = vmatpush1.bf16.msra.mxu0 0
    %1039 = vmatprep.subr.bf16.mxu0 0
    %1040 = vmatpush1.bf16.msra.mxu0 0
    %1041 = vmatprep.subr.bf16.mxu0 0
    %1042 = vmatpush1.bf16.msra.mxu0 0
    %1043 = vmatprep.subr.bf16.mxu0 0
    %1044 = vmatpush1.bf16.msra.mxu0 0
    %1045 = vmatprep.subr.bf16.mxu0 0
    %1046 = vmatpush1.bf16.msra.mxu0 0
    %1047 = vmatprep.mubr.bf16.mxu0 0
    %1048 = vmatmul.mubr.bf16.gmra.mrb[0].mxu0 %v242
    %v1049 = vpop.f32.mrb[0].mxu0
    %v1050 = vadd.f32 0.0, %v1049
    %v1051 = vpop.f32.mrb[0].mxu0
    %v1052 = vpop.f32.mrb[0].mxu0
    %v1053 = vpop.f32.mrb[0].mxu0
    %1054 = vdwg.mxu0
    %v1055 = vadd.f32 %v1002, %v1050
    %v1056 = vxor.u32 %v1055, 2147483648
    %v1057 = vmul.f32 %v1056, 1.442695
    %v1058 = vpow.pop %v1057
    %v1059 = vadd.f32 %v1058, 1.0
    %v1060 = vrcp.pop %v1059
    %v1061 = vmul.f32 1.0, %v1060
    %v1062 = vtanh.pop %v1055
    %v1063 = vmul.f32 %v1061, %v294
    %1065 = vrot.lane.b32.xlu0 %v1062, 64
    %v1066 = vpop.permute.xlu0 %1065
    %v1068 = vmul.f32 %v1061, %v1066
    %1070 = vrot.lane.b32.xlu0 %v1068, 32
    %v1071 = vpop.permute.xlu0 %1070
    %v1073 = vadd.f32 %v1063, %v1071
    %v1074 = vtanh.pop %v1073
    %1076 = vrot.lane.b32.xlu0 %v1074, 64
    %v1077 = vpop.permute.xlu0 %1076
    %v1079 = vmul.f32 %v1061, %v1077
    %1081 = vrot.lane.b32.xlu0 %v1079, 32
    %v1082 = vpop.permute.xlu0 %1081
    %1084 = vst.msk [vmem:[#allocation2] sm:$0xff] %vm137, %v1082
    %v1085 = vld [vmem:[%s318] sm:$0xff]
    %v1086 = vpack.c.bf16 %v1079, %v1079
    %1088 = vrot.lane.b32.xlu0 %v1086, 32
    %v1089 = vpop.permute.xlu0 %1088
    %v1091 = vsel %vm137, %v1089, 0
    %1093 = vmatprep.subr.bf16.mxu0 0
    %1094 = vmatpush1.bf16.msra.mxu0 %v1011
    %1095 = vmatprep.subr.bf16.mxu0 0
    %1096 = vmatpush1.bf16.msra.mxu0 %v1012
    %1097 = vmatprep.subr.bf16.mxu0 0
    %1098 = vmatpush1.bf16.msra.mxu0 0
    %1099 = vmatprep.subr.bf16.mxu0 0
    %1100 = vmatpush1.bf16.msra.mxu0 0
    %1101 = vmatprep.subr.bf16.mxu0 0
    %1102 = vmatpush1.bf16.msra.mxu0 0
    %1103 = vmatprep.subr.bf16.mxu0 0
    %1104 = vmatpush1.bf16.msra.mxu0 0
    %1105 = vmatprep.subr.bf16.mxu0 0
    %1106 = vmatpush1.bf16.msra.mxu0 0
    %1107 = vmatprep.subr.bf16.mxu0 0
    %1108 = vmatpush1.bf16.msra.mxu0 0
    %1109 = vmatprep.subr.bf16.mxu0 0
    %1110 = vmatpush1.bf16.msra.mxu0 0
    %1111 = vmatprep.subr.bf16.mxu0 0
    %1112 = vmatpush1.bf16.msra.mxu0 0
    %1113 = vmatprep.subr.bf16.mxu0 0
    %1114 = vmatpush1.bf16.msra.mxu0 0
    %1115 = vmatprep.subr.bf16.mxu0 0
    %1116 = vmatpush1.bf16.msra.mxu0 0
    %1117 = vmatprep.subr.bf16.mxu0 0
    %1118 = vmatpush1.bf16.msra.mxu0 0
    %1119 = vmatprep.subr.bf16.mxu0 0
    %1120 = vmatpush1.bf16.msra.mxu0 0
    %1121 = vmatprep.subr.bf16.mxu0 0
    %1122 = vmatpush1.bf16.msra.mxu0 0
    %1123 = vmatprep.subr.bf16.mxu0 0
    %1124 = vmatpush1.bf16.msra.mxu0 0
    %1125 = vmatprep.mubr.bf16.mxu0 0
    %1126 = vmatmul.mubr.bf16.gmra.mrb[0].mxu0 %v1091
    %v1127 = vpop.f32.mrb[0].mxu0
    %v1128 = vadd.f32 0.0, %v1127
    %v1129 = vpop.f32.mrb[0].mxu0
    %v1130 = vpop.f32.mrb[0].mxu0
    %v1131 = vpop.f32.mrb[0].mxu0
    %1132 = vdwg.mxu0
    %v1133 = vadd.f32 %v1085, %v1128
    %v1134 = vxor.u32 %v1133, 2147483648
    %v1135 = vmul.f32 %v1134, 1.442695
    %v1136 = vpow.pop %v1135
    %v1137 = vadd.f32 %v1136, 1.0
    %v1138 = vrcp.pop %v1137
    %v1139 = vmul.f32 1.0, %v1138
    %v1140 = vtanh.pop %v1133
    %v1141 = vmul.f32 %v1139, %v1073
    %1143 = vrot.lane.b32.xlu0 %v1140, 64
    %v1144 = vpop.permute.xlu0 %1143
    %v1146 = vmul.f32 %v1139, %v1144
    %1148 = vrot.lane.b32.xlu0 %v1146, 32
    %v1149 = vpop.permute.xlu0 %1148
    %v1151 = vadd.f32 %v1141, %v1149
    %v1152 = vtanh.pop %v1151
    %1154 = vrot.lane.b32.xlu0 %v1152, 64
    %v1155 = vpop.permute.xlu0 %1154
    %v1157 = vmul.f32 %v1139, %v1155
    %1159 = vrot.lane.b32.xlu0 %v1157, 32
    %v1160 = vpop.permute.xlu0 %1159
    %1162 = vst.msk [vmem:[%s396] sm:$0xff] %vm137, %v1160
    %v1163 = vld [vmem:[%s398] sm:$0xff]
    %v1164 = vpack.c.bf16 %v1157, %v1157
    %1166 = vrot.lane.b32.xlu0 %v1164, 32
    %v1167 = vpop.permute.xlu0 %1166
    %v1169 = vsel %vm137, %v1167, 0
    %1171 = vmatprep.subr.bf16.mxu0 0
    %1172 = vmatpush1.bf16.msra.mxu0 %v1011
    %1173 = vmatprep.subr.bf16.mxu0 0
    %1174 = vmatpush1.bf16.msra.mxu0 %v1012
    %1175 = vmatprep.subr.bf16.mxu0 0
    %1176 = vmatpush1.bf16.msra.mxu0 0
    %1177 = vmatprep.subr.bf16.mxu0 0
    %1178 = vmatpush1.bf16.msra.mxu0 0
    %1179 = vmatprep.subr.bf16.mxu0 0
    %1180 = vmatpush1.bf16.msra.mxu0 0
    %1181 = vmatprep.subr.bf16.mxu0 0
    %1182 = vmatpush1.bf16.msra.mxu0 0
    %1183 = vmatprep.subr.bf16.mxu0 0
    %1184 = vmatpush1.bf16.msra.mxu0 0
    %1185 = vmatprep.subr.bf16.mxu0 0
    %1186 = vmatpush1.bf16.msra.mxu0 0
    %1187 = vmatprep.subr.bf16.mxu0 0
    %1188 = vmatpush1.bf16.msra.mxu0 0
    %1189 = vmatprep.subr.bf16.mxu0 0
    %1190 = vmatpush1.bf16.msra.mxu0 0
    %1191 = vmatprep.subr.bf16.mxu0 0
    %1192 = vmatpush1.bf16.msra.mxu0 0
    %1193 = vmatprep.subr.bf16.mxu0 0
    %1194 = vmatpush1.bf16.msra.mxu0 0
    %1195 = vmatprep.subr.bf16.mxu0 0
    %1196 = vmatpush1.bf16.msra.mxu0 0
    %1197 = vmatprep.subr.bf16.mxu0 0
    %1198 = vmatpush1.bf16.msra.mxu0 0
    %1199 = vmatprep.subr.bf16.mxu0 0
    %1200 = vmatpush1.bf16.msra.mxu0 0
    %1201 = vmatprep.subr.bf16.mxu0 0
    %1202 = vmatpush1.bf16.msra.mxu0 0
    %1203 = vmatprep.mubr.bf16.mxu0 0
    %1204 = vmatmul.mubr.bf16.gmra.mrb[0].mxu0 %v1169
    %v1205 = vpop.f32.mrb[0].mxu0
    %v1206 = vadd.f32 0.0, %v1205
    %v1207 = vpop.f32.mrb[0].mxu0
    %v1208 = vpop.f32.mrb[0].mxu0
    %v1209 = vpop.f32.mrb[0].mxu0
    %1210 = vdwg.mxu0
    %v1211 = vadd.f32 %v1163, %v1206
    %v1212 = vxor.u32 %v1211, 2147483648
    %v1213 = vmul.f32 %v1212, 1.442695
    %v1214 = vpow.pop %v1213
    %v1215 = vadd.f32 %v1214, 1.0
    %v1216 = vrcp.pop %v1215
    %v1217 = vmul.f32 1.0, %v1216
    %v1218 = vtanh.pop %v1211
    %v1219 = vmul.f32 %v1217, %v1151
    %1221 = vrot.lane.b32.xlu0 %v1218, 64
    %v1222 = vpop.permute.xlu0 %1221
    %v1224 = vmul.f32 %v1217, %v1222
    %1226 = vrot.lane.b32.xlu0 %v1224, 32
    %v1227 = vpop.permute.xlu0 %1226
    %v1229 = vadd.f32 %v1219, %v1227
    %v1230 = vtanh.pop %v1229
    %1232 = vrot.lane.b32.xlu0 %v1230, 64
    %v1233 = vpop.permute.xlu0 %1232
    %v1235 = vmul.f32 %v1217, %v1233
    %1237 = vrot.lane.b32.xlu0 %v1235, 32
    %v1238 = vpop.permute.xlu0 %1237
    %1240 = vst.msk [vmem:[%s476] sm:$0xff] %vm137, %v1238
    %v1241 = vld [vmem:[%s478] sm:$0xff]
    %v1242 = vpack.c.bf16 %v1235, %v1235
    %1244 = vrot.lane.b32.xlu0 %v1242, 32
    %v1245 = vpop.permute.xlu0 %1244
    %v1247 = vsel %vm137, %v1245, 0
    %1249 = vmatprep.subr.bf16.mxu0 0
    %1250 = vmatpush1.bf16.msra.mxu0 %v1011
    %1251 = vmatprep.subr.bf16.mxu0 0
    %1252 = vmatpush1.bf16.msra.mxu0 %v1012
    %1253 = vmatprep.subr.bf16.mxu0 0
    %1254 = vmatpush1.bf16.msra.mxu0 0
    %1255 = vmatprep.subr.bf16.mxu0 0
    %1256 = vmatpush1.bf16.msra.mxu0 0
    %1257 = vmatprep.subr.bf16.mxu0 0
    %1258 = vmatpush1.bf16.msra.mxu0 0
    %1259 = vmatprep.subr.bf16.mxu0 0
    %1260 = vmatpush1.bf16.msra.mxu0 0
    %1261 = vmatprep.subr.bf16.mxu0 0
    %1262 = vmatpush1.bf16.msra.mxu0 0
    %1263 = vmatprep.subr.bf16.mxu0 0
    %1264 = vmatpush1.bf16.msra.mxu0 0
    %1265 = vmatprep.subr.bf16.mxu0 0
    %1266 = vmatpush1.bf16.msra.mxu0 0
    %1267 = vmatprep.subr.bf16.mxu0 0
    %1268 = vmatpush1.bf16.msra.mxu0 0
    %1269 = vmatprep.subr.bf16.mxu0 0
    %1270 = vmatpush1.bf16.msra.mxu0 0
    %1271 = vmatprep.subr.bf16.mxu0 0
    %1272 = vmatpush1.bf16.msra.mxu0 0
    %1273 = vmatprep.subr.bf16.mxu0 0
    %1274 = vmatpush1.bf16.msra.mxu0 0
    %1275 = vmatprep.subr.bf16.mxu0 0
    %1276 = vmatpush1.bf16.msra.mxu0 0
    %1277 = vmatprep.subr.bf16.mxu0 0
    %1278 = vmatpush1.bf16.msra.mxu0 0
    %1279 = vmatprep.subr.bf16.mxu0 0
    %1280 = vmatpush1.bf16.msra.mxu0 0
    %1281 = vmatprep.mubr.bf16.mxu0 0
    %1282 = vmatmul.mubr.bf16.gmra.mrb[0].mxu0 %v1247
    %v1283 = vpop.f32.mrb[0].mxu0
    %v1284 = vadd.f32 0.0, %v1283
    %v1285 = vpop.f32.mrb[0].mxu0
    %v1286 = vpop.f32.mrb[0].mxu0
    %v1287 = vpop.f32.mrb[0].mxu0
    %1288 = vdwg.mxu0
    %v1289 = vadd.f32 %v1241, %v1284
    %v1290 = vxor.u32 %v1289, 2147483648
    %v1291 = vmul.f32 %v1290, 1.442695
    %v1292 = vpow.pop %v1291
    %v1293 = vadd.f32 %v1292, 1.0
    %v1294 = vrcp.pop %v1293
    %v1295 = vmul.f32 1.0, %v1294
    %v1296 = vtanh.pop %v1289
    %v1297 = vmul.f32 %v1295, %v1229
    %1299 = vrot.lane.b32.xlu0 %v1296, 64
    %v1300 = vpop.permute.xlu0 %1299
    %v1302 = vmul.f32 %v1295, %v1300
    %1304 = vrot.lane.b32.xlu0 %v1302, 32
    %v1305 = vpop.permute.xlu0 %1304
    %v1307 = vadd.f32 %v1297, %v1305
    %v1308 = vtanh.pop %v1307
    %1310 = vrot.lane.b32.xlu0 %v1308, 64
    %v1311 = vpop.permute.xlu0 %1310
    %v1313 = vmul.f32 %v1295, %v1311
    %1315 = vrot.lane.b32.xlu0 %v1313, 32
    %v1316 = vpop.permute.xlu0 %1315
    %1318 = vst.msk [vmem:[%s556] sm:$0xff] %vm137, %v1316
    %v1319 = vld [vmem:[%s558] sm:$0xff]
    %v1320 = vpack.c.bf16 %v1313, %v1313
    %1322 = vrot.lane.b32.xlu0 %v1320, 32
    %v1323 = vpop.permute.xlu0 %1322
    %v1325 = vsel %vm137, %v1323, 0
    %1327 = vmatprep.subr.bf16.mxu0 0
    %1328 = vmatpush1.bf16.msra.mxu0 %v1011
    %1329 = vmatprep.subr.bf16.mxu0 0
    %1330 = vmatpush1.bf16.msra.mxu0 %v1012
    %1331 = vmatprep.subr.bf16.mxu0 0
    %1332 = vmatpush1.bf16.msra.mxu0 0
    %1333 = vmatprep.subr.bf16.mxu0 0
    %1334 = vmatpush1.bf16.msra.mxu0 0
    %1335 = vmatprep.subr.bf16.mxu0 0
    %1336 = vmatpush1.bf16.msra.mxu0 0
    %1337 = vmatprep.subr.bf16.mxu0 0
    %1338 = vmatpush1.bf16.msra.mxu0 0
    %1339 = vmatprep.subr.bf16.mxu0 0
    %1340 = vmatpush1.bf16.msra.mxu0 0
    %1341 = vmatprep.subr.bf16.mxu0 0
    %1342 = vmatpush1.bf16.msra.mxu0 0
    %1343 = vmatprep.subr.bf16.mxu0 0
    %1344 = vmatpush1.bf16.msra.mxu0 0
    %1345 = vmatprep.subr.bf16.mxu0 0
    %1346 = vmatpush1.bf16.msra.mxu0 0
    %1347 = vmatprep.subr.bf16.mxu0 0
    %1348 = vmatpush1.bf16.msra.mxu0 0
    %1349 = vmatprep.subr.bf16.mxu0 0
    %1350 = vmatpush1.bf16.msra.mxu0 0
    %1351 = vmatprep.subr.bf16.mxu0 0
    %1352 = vmatpush1.bf16.msra.mxu0 0
    %1353 = vmatprep.subr.bf16.mxu0 0
    %1354 = vmatpush1.bf16.msra.mxu0 0
    %1355 = vmatprep.subr.bf16.mxu0 0
    %1356 = vmatpush1.bf16.msra.mxu0 0
    %1357 = vmatprep.subr.bf16.mxu0 0
    %1358 = vmatpush1.bf16.msra.mxu0 0
    %1359 = vmatprep.mubr.bf16.mxu0 0
    %1360 = vmatmul.mubr.bf16.gmra.mrb[0].mxu0 %v1325
    %v1361 = vpop.f32.mrb[0].mxu0
    %v1362 = vadd.f32 0.0, %v1361
    %v1363 = vpop.f32.mrb[0].mxu0
    %v1364 = vpop.f32.mrb[0].mxu0
    %v1365 = vpop.f32.mrb[0].mxu0
    %1366 = vdwg.mxu0
    %v1367 = vadd.f32 %v1319, %v1362
    %v1368 = vxor.u32 %v1367, 2147483648
    %v1369 = vmul.f32 %v1368, 1.442695
    %v1370 = vpow.pop %v1369
    %v1371 = vadd.f32 %v1370, 1.0
    %v1372 = vrcp.pop %v1371
    %v1373 = vmul.f32 1.0, %v1372
    %v1374 = vtanh.pop %v1367
    %v1375 = vmul.f32 %v1373, %v1307
    %1377 = vrot.lane.b32.xlu0 %v1374, 64
    %v1378 = vpop.permute.xlu0 %1377
    %v1380 = vmul.f32 %v1373, %v1378
    %1382 = vrot.lane.b32.xlu0 %v1380, 32
    %v1383 = vpop.permute.xlu0 %1382
    %v1385 = vadd.f32 %v1375, %v1383
    %v1386 = vtanh.pop %v1385
    %1388 = vrot.lane.b32.xlu0 %v1386, 64
    %v1389 = vpop.permute.xlu0 %1388
    %v1391 = vmul.f32 %v1373, %v1389
    %1393 = vrot.lane.b32.xlu0 %v1391, 32
    %v1394 = vpop.permute.xlu0 %1393
    %1396 = vst.msk [vmem:[%s636] sm:$0xff] %vm137, %v1394
    %v1397 = vld [vmem:[%s638] sm:$0xff]
    %v1398 = vpack.c.bf16 %v1391, %v1391
    %1400 = vrot.lane.b32.xlu0 %v1398, 32
    %v1401 = vpop.permute.xlu0 %1400
    %v1403 = vsel %vm137, %v1401, 0
    %1405 = vmatprep.subr.bf16.mxu0 0
    %1406 = vmatpush1.bf16.msra.mxu0 %v1011
    %1407 = vmatprep.subr.bf16.mxu0 0
    %1408 = vmatpush1.bf16.msra.mxu0 %v1012
    %1409 = vmatprep.subr.bf16.mxu0 0
    %1410 = vmatpush1.bf16.msra.mxu0 0
    %1411 = vmatprep.subr.bf16.mxu0 0
    %1412 = vmatpush1.bf16.msra.mxu0 0
    %1413 = vmatprep.subr.bf16.mxu0 0
    %1414 = vmatpush1.bf16.msra.mxu0 0
    %1415 = vmatprep.subr.bf16.mxu0 0
    %1416 = vmatpush1.bf16.msra.mxu0 0
    %1417 = vmatprep.subr.bf16.mxu0 0
    %1418 = vmatpush1.bf16.msra.mxu0 0
    %1419 = vmatprep.subr.bf16.mxu0 0
    %1420 = vmatpush1.bf16.msra.mxu0 0
    %1421 = vmatprep.subr.bf16.mxu0 0
    %1422 = vmatpush1.bf16.msra.mxu0 0
    %1423 = vmatprep.subr.bf16.mxu0 0
    %1424 = vmatpush1.bf16.msra.mxu0 0
    %1425 = vmatprep.subr.bf16.mxu0 0
    %1426 = vmatpush1.bf16.msra.mxu0 0
    %1427 = vmatprep.subr.bf16.mxu0 0
    %1428 = vmatpush1.bf16.msra.mxu0 0
    %1429 = vmatprep.subr.bf16.mxu0 0
    %1430 = vmatpush1.bf16.msra.mxu0 0
    %1431 = vmatprep.subr.bf16.mxu0 0
    %1432 = vmatpush1.bf16.msra.mxu0 0
    %1433 = vmatprep.subr.bf16.mxu0 0
    %1434 = vmatpush1.bf16.msra.mxu0 0
    %1435 = vmatprep.subr.bf16.mxu0 0
    %1436 = vmatpush1.bf16.msra.mxu0 0
    %1437 = vmatprep.mubr.bf16.mxu0 0
    %1438 = vmatmul.mubr.bf16.gmra.mrb[0].mxu0 %v1403
    %v1439 = vpop.f32.mrb[0].mxu0
    %v1440 = vadd.f32 0.0, %v1439
    %v1441 = vpop.f32.mrb[0].mxu0
    %v1442 = vpop.f32.mrb[0].mxu0
    %v1443 = vpop.f32.mrb[0].mxu0
    %1444 = vdwg.mxu0
    %v1445 = vadd.f32 %v1397, %v1440
    %v1446 = vxor.u32 %v1445, 2147483648
    %v1447 = vmul.f32 %v1446, 1.442695
    %v1448 = vpow.pop %v1447
    %v1449 = vadd.f32 %v1448, 1.0
    %v1450 = vrcp.pop %v1449
    %v1451 = vmul.f32 1.0, %v1450
    %v1452 = vtanh.pop %v1445
    %v1453 = vmul.f32 %v1451, %v1385
    %1455 = vrot.lane.b32.xlu0 %v1452, 64
    %v1456 = vpop.permute.xlu0 %1455
    %v1458 = vmul.f32 %v1451, %v1456
    %1460 = vrot.lane.b32.xlu0 %v1458, 32
    %v1461 = vpop.permute.xlu0 %1460
    %v1463 = vadd.f32 %v1453, %v1461
    %v1464 = vtanh.pop %v1463
    %1466 = vrot.lane.b32.xlu0 %v1464, 64
    %v1467 = vpop.permute.xlu0 %1466
    %v1469 = vmul.f32 %v1451, %v1467
    %1471 = vrot.lane.b32.xlu0 %v1469, 32
    %v1472 = vpop.permute.xlu0 %1471
    %1474 = vst.msk [vmem:[%s716] sm:$0xff] %vm137, %v1472
    %v1475 = vld [vmem:[%s718] sm:$0xff]
    %v1476 = vpack.c.bf16 %v1469, %v1469
    %1478 = vrot.lane.b32.xlu0 %v1476, 32
    %v1479 = vpop.permute.xlu0 %1478
    %v1481 = vsel %vm137, %v1479, 0
    %1483 = vmatprep.subr.bf16.mxu0 0
    %1484 = vmatpush1.bf16.msra.mxu0 %v1011
    %1485 = vmatprep.subr.bf16.mxu0 0
    %1486 = vmatpush1.bf16.msra.mxu0 %v1012
    %1487 = vmatprep.subr.bf16.mxu0 0
    %1488 = vmatpush1.bf16.msra.mxu0 0
    %1489 = vmatprep.subr.bf16.mxu0 0
    %1490 = vmatpush1.bf16.msra.mxu0 0
    %1491 = vmatprep.subr.bf16.mxu0 0
    %1492 = vmatpush1.bf16.msra.mxu0 0
    %1493 = vmatprep.subr.bf16.mxu0 0
    %1494 = vmatpush1.bf16.msra.mxu0 0
    %1495 = vmatprep.subr.bf16.mxu0 0
    %1496 = vmatpush1.bf16.msra.mxu0 0
    %1497 = vmatprep.subr.bf16.mxu0 0
    %1498 = vmatpush1.bf16.msra.mxu0 0
    %1499 = vmatprep.subr.bf16.mxu0 0
    %1500 = vmatpush1.bf16.msra.mxu0 0
    %1501 = vmatprep.subr.bf16.mxu0 0
    %1502 = vmatpush1.bf16.msra.mxu0 0
    %1503 = vmatprep.subr.bf16.mxu0 0
    %1504 = vmatpush1.bf16.msra.mxu0 0
    %1505 = vmatprep.subr.bf16.mxu0 0
    %1506 = vmatpush1.bf16.msra.mxu0 0
    %1507 = vmatprep.subr.bf16.mxu0 0
    %1508 = vmatpush1.bf16.msra.mxu0 0
    %1509 = vmatprep.subr.bf16.mxu0 0
    %1510 = vmatpush1.bf16.msra.mxu0 0
    %1511 = vmatprep.subr.bf16.mxu0 0
    %1512 = vmatpush1.bf16.msra.mxu0 0
    %1513 = vmatprep.subr.bf16.mxu0 0
    %1514 = vmatpush1.bf16.msra.mxu0 0
    %1515 = vmatprep.mubr.bf16.mxu0 0
    %1516 = vmatmul.mubr.bf16.gmra.mrb[0].mxu0 %v1481
    %v1517 = vpop.f32.mrb[0].mxu0
    %v1518 = vadd.f32 0.0, %v1517
    %v1519 = vpop.f32.mrb[0].mxu0
    %v1520 = vpop.f32.mrb[0].mxu0
    %v1521 = vpop.f32.mrb[0].mxu0
    %1522 = vdwg.mxu0
    %v1523 = vadd.f32 %v1475, %v1518
    %v1524 = vxor.u32 %v1523, 2147483648
    %v1525 = vmul.f32 %v1524, 1.442695
    %v1526 = vpow.pop %v1525
    %v1527 = vadd.f32 %v1526, 1.0
    %v1528 = vrcp.pop %v1527
    %v1529 = vmul.f32 1.0, %v1528
    %v1530 = vtanh.pop %v1523
    %v1531 = vmul.f32 %v1529, %v1463
    %1533 = vrot.lane.b32.xlu0 %v1530, 64
    %v1534 = vpop.permute.xlu0 %1533
    %v1536 = vmul.f32 %v1529, %v1534
    %1538 = vrot.lane.b32.xlu0 %v1536, 32
    %v1539 = vpop.permute.xlu0 %1538
    %v1541 = vadd.f32 %v1531, %v1539
    %v1542 = vtanh.pop %v1541
    %1544 = vrot.lane.b32.xlu0 %v1542, 64
    %v1545 = vpop.permute.xlu0 %1544
    %v1547 = vmul.f32 %v1529, %v1545
    %1549 = vrot.lane.b32.xlu0 %v1547, 32
    %v1550 = vpop.permute.xlu0 %1549
    %1552 = vst.msk [vmem:[%s796] sm:$0xff] %vm137, %v1550
    %v1553 = vld [vmem:[%s798] sm:$0xff]
    %v1554 = vpack.c.bf16 %v1547, %v1547
    %1556 = vrot.lane.b32.xlu0 %v1554, 32
    %v1557 = vpop.permute.xlu0 %1556
    %v1559 = vsel %vm137, %v1557, 0
    %1561 = vmatprep.subr.bf16.mxu0 0
    %1562 = vmatpush1.bf16.msra.mxu0 %v1011
    %1563 = vmatprep.subr.bf16.mxu0 0
    %1564 = vmatpush1.bf16.msra.mxu0 %v1012
    %1565 = vmatprep.subr.bf16.mxu0 0
    %1566 = vmatpush1.bf16.msra.mxu0 0
    %1567 = vmatprep.subr.bf16.mxu0 0
    %1568 = vmatpush1.bf16.msra.mxu0 0
    %1569 = vmatprep.subr.bf16.mxu0 0
    %1570 = vmatpush1.bf16.msra.mxu0 0
    %1571 = vmatprep.subr.bf16.mxu0 0
    %1572 = vmatpush1.bf16.msra.mxu0 0
    %1573 = vmatprep.subr.bf16.mxu0 0
    %1574 = vmatpush1.bf16.msra.mxu0 0
    %1575 = vmatprep.subr.bf16.mxu0 0
    %1576 = vmatpush1.bf16.msra.mxu0 0
    %1577 = vmatprep.subr.bf16.mxu0 0
    %1578 = vmatpush1.bf16.msra.mxu0 0
    %1579 = vmatprep.subr.bf16.mxu0 0
    %1580 = vmatpush1.bf16.msra.mxu0 0
    %1581 = vmatprep.subr.bf16.mxu0 0
    %1582 = vmatpush1.bf16.msra.mxu0 0
    %1583 = vmatprep.subr.bf16.mxu0 0
    %1584 = vmatpush1.bf16.msra.mxu0 0
    %1585 = vmatprep.subr.bf16.mxu0 0
    %1586 = vmatpush1.bf16.msra.mxu0 0
    %1587 = vmatprep.subr.bf16.mxu0 0
    %1588 = vmatpush1.bf16.msra.mxu0 0
    %1589 = vmatprep.subr.bf16.mxu0 0
    %1590 = vmatpush1.bf16.msra.mxu0 0
    %1591 = vmatprep.subr.bf16.mxu0 0
    %1592 = vmatpush1.bf16.msra.mxu0 0
    %1593 = vmatprep.mubr.bf16.mxu0 0
    %1594 = vmatmul.mubr.bf16.gmra.mrb[0].mxu0 %v1559
    %v1595 = vpop.f32.mrb[0].mxu0
    %v1596 = vadd.f32 0.0, %v1595
    %v1597 = vpop.f32.mrb[0].mxu0
    %v1598 = vpop.f32.mrb[0].mxu0
    %v1599 = vpop.f32.mrb[0].mxu0
    %1600 = vdwg.mxu0
    %v1601 = vadd.f32 %v1553, %v1596
    %v1602 = vxor.u32 %v1601, 2147483648
    %v1603 = vmul.f32 %v1602, 1.442695
    %v1604 = vpow.pop %v1603
    %v1605 = vadd.f32 %v1604, 1.0
    %v1606 = vrcp.pop %v1605
    %v1607 = vmul.f32 1.0, %v1606
    %v1608 = vtanh.pop %v1601
    %v1609 = vmul.f32 %v1607, %v1541
    %1611 = vrot.lane.b32.xlu0 %v1608, 64
    %v1612 = vpop.permute.xlu0 %1611
    %v1614 = vmul.f32 %v1607, %v1612
    %1616 = vrot.lane.b32.xlu0 %v1614, 32
    %v1617 = vpop.permute.xlu0 %1616
    %v1619 = vadd.f32 %v1609, %v1617
    %v1620 = vtanh.pop %v1619
    %1622 = vrot.lane.b32.xlu0 %v1620, 64
    %v1623 = vpop.permute.xlu0 %1622
    %v1625 = vmul.f32 %v1607, %v1623
    %1627 = vrot.lane.b32.xlu0 %v1625, 32
    %v1628 = vpop.permute.xlu0 %1627
    %1630 = vst.msk [vmem:[%s876] sm:$0xff] %vm137, %v1628
    %v1631 = vld [vmem:[#allocation2] sm:$0xff]
    %v1632 = vld [vmem:[#allocation2 + $0x8] sm:$0xff]
    %v1633 = vld [vmem:[#allocation2 + $0x10] sm:$0xff]
    %v1634 = vld [vmem:[#allocation2 + $0x18] sm:$0xff]
    %v1635 = vld [vmem:[#allocation2 + $0x20] sm:$0xff]
    %v1636 = vld [vmem:[#allocation2 + $0x28] sm:$0xff]
    %v1637 = vld [vmem:[#allocation2 + $0x30] sm:$0xff]
    %v1638 = vld [vmem:[#allocation2 + $0x38] sm:$0xff]
    %v1639 = vpack.c.bf16 %v1632, %v1631
    %v1640 = vpack.c.bf16 %v1634, %v1633
    %v1641 = vpack.c.bf16 %v1636, %v1635
    %v1642 = vpack.c.bf16 %v1638, %v1637
    %v1643 = vld [vmem:[#allocation7] sm:$0xf]
    %v1644 = vld [vmem:[#allocation7 + $0x4] sm:$0xf]
    %v1645 = vld [vmem:[#allocation7 + $0x8] sm:$0xf]
    %v1646 = vld [vmem:[#allocation7 + $0xc] sm:$0xf]
    %v1647 = vld [vmem:[%s10] sm:$0x1]
    %v1649 = vlaneseq
    %v1650 = vshrl.u32 %v1649, 7
    %v1651 = vsub.s32 0, %v1650
    %v1652 = vrot.slane %v1647, %v1651
    %v1658 = vunpack.c.l.b16 %v1643
    %v1659 = vunpack.c.l.b16 %v1644
    %v1660 = vunpack.c.l.b16 %v1645
    %v1661 = vunpack.c.l.b16 %v1646
    %v1662 = vpack.c.b16 %v1659, %v1658
    %v1663 = vpack.c.b16 %v1661, %v1660
    %v1667 = vsel %vm137, %v1639, 0
    %v1670 = vsel %vm137, %v1640, 0
    %v1673 = vsel %vm137, %v1641, 0
    %v1676 = vsel %vm137, %v1642, 0
    %1678 = vmatprep.subr.bf16.mxu0 0
    %1679 = vmatpush1.bf16.msra.mxu0 %v1662
    %1680 = vmatprep.subr.bf16.mxu0 0
    %1681 = vmatpush1.bf16.msra.mxu0 %v1663
    %1682 = vmatprep.subr.bf16.mxu0 0
    %1683 = vmatpush1.bf16.msra.mxu0 0
    %1684 = vmatprep.subr.bf16.mxu0 0
    %1685 = vmatpush1.bf16.msra.mxu0 0
    %1686 = vmatprep.subr.bf16.mxu0 0
    %1687 = vmatpush1.bf16.msra.mxu0 0
    %1688 = vmatprep.subr.bf16.mxu0 0
    %1689 = vmatpush1.bf16.msra.mxu0 0
    %1690 = vmatprep.subr.bf16.mxu0 0
    %1691 = vmatpush1.bf16.msra.mxu0 0
    %1692 = vmatprep.subr.bf16.mxu0 0
    %1693 = vmatpush1.bf16.msra.mxu0 0
    %1694 = vmatprep.subr.bf16.mxu0 0
    %1695 = vmatpush1.bf16.msra.mxu0 0
    %1696 = vmatprep.subr.bf16.mxu0 0
    %1697 = vmatpush1.bf16.msra.mxu0 0
    %1698 = vmatprep.subr.bf16.mxu0 0
    %1699 = vmatpush1.bf16.msra.mxu0 0
    %1700 = vmatprep.subr.bf16.mxu0 0
    %1701 = vmatpush1.bf16.msra.mxu0 0
    %1702 = vmatprep.subr.bf16.mxu0 0
    %1703 = vmatpush1.bf16.msra.mxu0 0
    %1704 = vmatprep.subr.bf16.mxu0 0
    %1705 = vmatpush1.bf16.msra.mxu0 0
    %1706 = vmatprep.subr.bf16.mxu0 0
    %1707 = vmatpush1.bf16.msra.mxu0 0
    %1708 = vmatprep.subr.bf16.mxu0 0
    %1709 = vmatpush1.bf16.msra.mxu0 0
    %1710 = vmatprep.mubr.bf16.mxu0 0
    %1711 = vmatmul.mubr.bf16.gmra.mrb[0].mxu0 %v1667
    %v1712 = vpop.f32.mrb[0].mxu0
    %v1713 = vadd.f32 %v1652, %v1712
    %v1714 = vpop.f32.mrb[0].mxu0
    %v1715 = vpop.f32.mrb[0].mxu0
    %v1716 = vadd.f32 %v1652, %v1715
    %v1717 = vpop.f32.mrb[0].mxu0
    %1718 = vmatprep.mubr.bf16.mxu0 0
    %1719 = vmatmul.mubr.bf16.gmra.mrb[0].mxu0 %v1670
    %v1720 = vpop.f32.mrb[0].mxu0
    %v1721 = vadd.f32 %v1652, %v1720
    %v1722 = vpop.f32.mrb[0].mxu0
    %v1723 = vpop.f32.mrb[0].mxu0
    %v1724 = vadd.f32 %v1652, %v1723
    %v1725 = vpop.f32.mrb[0].mxu0
    %1726 = vmatprep.mubr.bf16.mxu0 0
    %1727 = vmatmul.mubr.bf16.gmra.mrb[0].mxu0 %v1673
    %v1728 = vpop.f32.mrb[0].mxu0
    %v1729 = vadd.f32 %v1652, %v1728
    %v1730 = vpop.f32.mrb[0].mxu0
    %v1731 = vpop.f32.mrb[0].mxu0
    %v1732 = vadd.f32 %v1652, %v1731
    %v1733 = vpop.f32.mrb[0].mxu0
    %1734 = vmatprep.mubr.bf16.mxu0 0
    %1735 = vmatmul.mubr.bf16.gmra.mrb[0].mxu0 %v1676
    %v1736 = vpop.f32.mrb[0].mxu0
    %v1737 = vadd.f32 %v1652, %v1736
    %v1738 = vpop.f32.mrb[0].mxu0
    %v1739 = vpop.f32.mrb[0].mxu0
    %v1740 = vadd.f32 %v1652, %v1739
    %v1741 = vpop.f32.mrb[0].mxu0
    %1742 = vdwg.mxu0
    %1743 = vst [vmem:[#allocation3] sm:$0xff] %v1713
    %1744 = vst [vmem:[#allocation3 + $0x8] sm:$0xff] %v1716
    %1745 = vst [vmem:[#allocation3 + $0x10] sm:$0xff] %v1721
    %1746 = vst [vmem:[#allocation3 + $0x18] sm:$0xff] %v1724
    %1747 = vst [vmem:[#allocation3 + $0x20] sm:$0xff] %v1729
    %1748 = vst [vmem:[#allocation3 + $0x28] sm:$0xff] %v1732
    %1749 = vst [vmem:[#allocation3 + $0x30] sm:$0xff] %v1737
    %1750 = vst [vmem:[#allocation3 + $0x38] sm:$0xff] %v1740
    %v1751 = vld [vmem:[%s9] sm:$0xf]
    %v1752 = vld [vmem:[%s9 + $0x4] sm:$0xf]
    %v1753 = vld [vmem:[%s9 + $0x8] sm:$0xf]
    %v1754 = vld [vmem:[%s9 + $0xc] sm:$0xf]
    %v1755 = vld [vmem:[#allocation3] sm:$0xff]
    %v1760 = vunpack.c.l.b16 %v1751
    %v1761 = vunpack.c.l.b16 %v1752
    %v1762 = vunpack.c.l.b16 %v1753
    %v1763 = vunpack.c.l.b16 %v1754
    %v1764 = vpack.c.b16 %v1761, %v1760
    %v1765 = vpack.c.b16 %v1763, %v1762
    %1768 = vmatprep.subr.bf16.mxu0 0
    %1769 = vmatpush1.bf16.msra.mxu0 %v1764
    %1770 = vmatprep.subr.bf16.mxu0 0
    %1771 = vmatpush1.bf16.msra.mxu0 %v1765
    %1772 = vmatprep.subr.bf16.mxu0 0
    %1773 = vmatpush1.bf16.msra.mxu0 0
    %1774 = vmatprep.subr.bf16.mxu0 0
    %1775 = vmatpush1.bf16.msra.mxu0 0
    %1776 = vmatprep.subr.bf16.mxu0 0
    %1777 = vmatpush1.bf16.msra.mxu0 0
    %1778 = vmatprep.subr.bf16.mxu0 0
    %1779 = vmatpush1.bf16.msra.mxu0 0
    %1780 = vmatprep.subr.bf16.mxu0 0
    %1781 = vmatpush1.bf16.msra.mxu0 0
    %1782 = vmatprep.subr.bf16.mxu0 0
    %1783 = vmatpush1.bf16.msra.mxu0 0
    %1784 = vmatprep.subr.bf16.mxu0 0
    %1785 = vmatpush1.bf16.msra.mxu0 0
    %1786 = vmatprep.subr.bf16.mxu0 0
    %1787 = vmatpush1.bf16.msra.mxu0 0
    %1788 = vmatprep.subr.bf16.mxu0 0
    %1789 = vmatpush1.bf16.msra.mxu0 0
    %1790 = vmatprep.subr.bf16.mxu0 0
    %1791 = vmatpush1.bf16.msra.mxu0 0
    %1792 = vmatprep.subr.bf16.mxu0 0
    %1793 = vmatpush1.bf16.msra.mxu0 0
    %1794 = vmatprep.subr.bf16.mxu0 0
    %1795 = vmatpush1.bf16.msra.mxu0 0
    %1796 = vmatprep.subr.bf16.mxu0 0
    %1797 = vmatpush1.bf16.msra.mxu0 0
    %1798 = vmatprep.subr.bf16.mxu0 0
    %1799 = vmatpush1.bf16.msra.mxu0 0
    %1800 = vmatprep.mubr.bf16.mxu0 0
    %1801 = vmatmul.mubr.bf16.gmra.mrb[0].mxu0 %v242
    %v1802 = vpop.f32.mrb[0].mxu0
    %v1803 = vadd.f32 0.0, %v1802
    %v1804 = vpop.f32.mrb[0].mxu0
    %v1805 = vpop.f32.mrb[0].mxu0
    %v1806 = vpop.f32.mrb[0].mxu0
    %1807 = vdwg.mxu0
    %v1808 = vadd.f32 %v1755, %v1803
    %v1809 = vxor.u32 %v1808, 2147483648
    %v1810 = vmul.f32 %v1809, 1.442695
    %v1811 = vpow.pop %v1810
    %v1812 = vadd.f32 %v1811, 1.0
    %v1813 = vrcp.pop %v1812
    %v1814 = vmul.f32 1.0, %v1813
    %v1815 = vtanh.pop %v1808
    %v1816 = vmul.f32 %v1814, %v294
    %1818 = vrot.lane.b32.xlu0 %v1815, 64
    %v1819 = vpop.permute.xlu0 %1818
    %v1821 = vmul.f32 %v1814, %v1819
    %1823 = vrot.lane.b32.xlu0 %v1821, 32
    %v1824 = vpop.permute.xlu0 %1823
    %v1826 = vadd.f32 %v1816, %v1824
    %v1827 = vtanh.pop %v1826
    %1829 = vrot.lane.b32.xlu0 %v1827, 64
    %v1830 = vpop.permute.xlu0 %1829
    %v1832 = vmul.f32 %v1814, %v1830
    %1834 = vrot.lane.b32.xlu0 %v1832, 32
    %v1835 = vpop.permute.xlu0 %1834
    %1837 = vst.msk [vmem:[#allocation2] sm:$0xff] %vm137, %v1835
    %v1838 = vld [vmem:[%s318] sm:$0xff]
    %v1839 = vpack.c.bf16 %v1832, %v1832
    %1841 = vrot.lane.b32.xlu0 %v1839, 32
    %v1842 = vpop.permute.xlu0 %1841
    %v1844 = vsel %vm137, %v1842, 0
    %1846 = vmatprep.subr.bf16.mxu0 0
    %1847 = vmatpush1.bf16.msra.mxu0 %v1764
    %1848 = vmatprep.subr.bf16.mxu0 0
    %1849 = vmatpush1.bf16.msra.mxu0 %v1765
    %1850 = vmatprep.subr.bf16.mxu0 0
    %1851 = vmatpush1.bf16.msra.mxu0 0
    %1852 = vmatprep.subr.bf16.mxu0 0
    %1853 = vmatpush1.bf16.msra.mxu0 0
    %1854 = vmatprep.subr.bf16.mxu0 0
    %1855 = vmatpush1.bf16.msra.mxu0 0
    %1856 = vmatprep.subr.bf16.mxu0 0
    %1857 = vmatpush1.bf16.msra.mxu0 0
    %1858 = vmatprep.subr.bf16.mxu0 0
    %1859 = vmatpush1.bf16.msra.mxu0 0
    %1860 = vmatprep.subr.bf16.mxu0 0
    %1861 = vmatpush1.bf16.msra.mxu0 0
    %1862 = vmatprep.subr.bf16.mxu0 0
    %1863 = vmatpush1.bf16.msra.mxu0 0
    %1864 = vmatprep.subr.bf16.mxu0 0
    %1865 = vmatpush1.bf16.msra.mxu0 0
    %1866 = vmatprep.subr.bf16.mxu0 0
    %1867 = vmatpush1.bf16.msra.mxu0 0
    %1868 = vmatprep.subr.bf16.mxu0 0
    %1869 = vmatpush1.bf16.msra.mxu0 0
    %1870 = vmatprep.subr.bf16.mxu0 0
    %1871 = vmatpush1.bf16.msra.mxu0 0
    %1872 = vmatprep.subr.bf16.mxu0 0
    %1873 = vmatpush1.bf16.msra.mxu0 0
    %1874 = vmatprep.subr.bf16.mxu0 0
    %1875 = vmatpush1.bf16.msra.mxu0 0
    %1876 = vmatprep.subr.bf16.mxu0 0
    %1877 = vmatpush1.bf16.msra.mxu0 0
    %1878 = vmatprep.mubr.bf16.mxu0 0
    %1879 = vmatmul.mubr.bf16.gmra.mrb[0].mxu0 %v1844
    %v1880 = vpop.f32.mrb[0].mxu0
    %v1881 = vadd.f32 0.0, %v1880
    %v1882 = vpop.f32.mrb[0].mxu0
    %v1883 = vpop.f32.mrb[0].mxu0
    %v1884 = vpop.f32.mrb[0].mxu0
    %1885 = vdwg.mxu0
    %v1886 = vadd.f32 %v1838, %v1881
    %v1887 = vxor.u32 %v1886, 2147483648
    %v1888 = vmul.f32 %v1887, 1.442695
    %v1889 = vpow.pop %v1888
    %v1890 = vadd.f32 %v1889, 1.0
    %v1891 = vrcp.pop %v1890
    %v1892 = vmul.f32 1.0, %v1891
    %v1893 = vtanh.pop %v1886
    %v1894 = vmul.f32 %v1892, %v1826
    %1896 = vrot.lane.b32.xlu0 %v1893, 64
    %v1897 = vpop.permute.xlu0 %1896
    %v1899 = vmul.f32 %v1892, %v1897
    %1901 = vrot.lane.b32.xlu0 %v1899, 32
    %v1902 = vpop.permute.xlu0 %1901
    %v1904 = vadd.f32 %v1894, %v1902
    %v1905 = vtanh.pop %v1904
    %1907 = vrot.lane.b32.xlu0 %v1905, 64
    %v1908 = vpop.permute.xlu0 %1907
    %v1910 = vmul.f32 %v1892, %v1908
    %1912 = vrot.lane.b32.xlu0 %v1910, 32
    %v1913 = vpop.permute.xlu0 %1912
    %1915 = vst.msk [vmem:[%s396] sm:$0xff] %vm137, %v1913
    %v1916 = vld [vmem:[%s398] sm:$0xff]
    %v1917 = vpack.c.bf16 %v1910, %v1910
    %1919 = vrot.lane.b32.xlu0 %v1917, 32
    %v1920 = vpop.permute.xlu0 %1919
    %v1922 = vsel %vm137, %v1920, 0
    %1924 = vmatprep.subr.bf16.mxu0 0
    %1925 = vmatpush1.bf16.msra.mxu0 %v1764
    %1926 = vmatprep.subr.bf16.mxu0 0
    %1927 = vmatpush1.bf16.msra.mxu0 %v1765
    %1928 = vmatprep.subr.bf16.mxu0 0
    %1929 = vmatpush1.bf16.msra.mxu0 0
    %1930 = vmatprep.subr.bf16.mxu0 0
    %1931 = vmatpush1.bf16.msra.mxu0 0
    %1932 = vmatprep.subr.bf16.mxu0 0
    %1933 = vmatpush1.bf16.msra.mxu0 0
    %1934 = vmatprep.subr.bf16.mxu0 0
    %1935 = vmatpush1.bf16.msra.mxu0 0
    %1936 = vmatprep.subr.bf16.mxu0 0
    %1937 = vmatpush1.bf16.msra.mxu0 0
    %1938 = vmatprep.subr.bf16.mxu0 0
    %1939 = vmatpush1.bf16.msra.mxu0 0
    %1940 = vmatprep.subr.bf16.mxu0 0
    %1941 = vmatpush1.bf16.msra.mxu0 0
    %1942 = vmatprep.subr.bf16.mxu0 0
    %1943 = vmatpush1.bf16.msra.mxu0 0
    %1944 = vmatprep.subr.bf16.mxu0 0
    %1945 = vmatpush1.bf16.msra.mxu0 0
    %1946 = vmatprep.subr.bf16.mxu0 0
    %1947 = vmatpush1.bf16.msra.mxu0 0
    %1948 = vmatprep.subr.bf16.mxu0 0
    %1949 = vmatpush1.bf16.msra.mxu0 0
    %1950 = vmatprep.subr.bf16.mxu0 0
    %1951 = vmatpush1.bf16.msra.mxu0 0
    %1952 = vmatprep.subr.bf16.mxu0 0
    %1953 = vmatpush1.bf16.msra.mxu0 0
    %1954 = vmatprep.subr.bf16.mxu0 0
    %1955 = vmatpush1.bf16.msra.mxu0 0
    %1956 = vmatprep.mubr.bf16.mxu0 0
    %1957 = vmatmul.mubr.bf16.gmra.mrb[0].mxu0 %v1922
    %v1958 = vpop.f32.mrb[0].mxu0
    %v1959 = vadd.f32 0.0, %v1958
    %v1960 = vpop.f32.mrb[0].mxu0
    %v1961 = vpop.f32.mrb[0].mxu0
    %v1962 = vpop.f32.mrb[0].mxu0
    %1963 = vdwg.mxu0
    %v1964 = vadd.f32 %v1916, %v1959
    %v1965 = vxor.u32 %v1964, 2147483648
    %v1966 = vmul.f32 %v1965, 1.442695
    %v1967 = vpow.pop %v1966
    %v1968 = vadd.f32 %v1967, 1.0
    %v1969 = vrcp.pop %v1968
    %v1970 = vmul.f32 1.0, %v1969
    %v1971 = vtanh.pop %v1964
    %v1972 = vmul.f32 %v1970, %v1904
    %1974 = vrot.lane.b32.xlu0 %v1971, 64
    %v1975 = vpop.permute.xlu0 %1974
    %v1977 = vmul.f32 %v1970, %v1975
    %1979 = vrot.lane.b32.xlu0 %v1977, 32
    %v1980 = vpop.permute.xlu0 %1979
    %v1982 = vadd.f32 %v1972, %v1980
    %v1983 = vtanh.pop %v1982
    %1985 = vrot.lane.b32.xlu0 %v1983, 64
    %v1986 = vpop.permute.xlu0 %1985
    %v1988 = vmul.f32 %v1970, %v1986
    %1990 = vrot.lane.b32.xlu0 %v1988, 32
    %v1991 = vpop.permute.xlu0 %1990
    %1993 = vst.msk [vmem:[%s476] sm:$0xff] %vm137, %v1991
    %v1994 = vld [vmem:[%s478] sm:$0xff]
    %v1995 = vpack.c.bf16 %v1988, %v1988
    %1997 = vrot.lane.b32.xlu0 %v1995, 32
    %v1998 = vpop.permute.xlu0 %1997
    %v2000 = vsel %vm137, %v1998, 0
    %2002 = vmatprep.subr.bf16.mxu0 0
    %2003 = vmatpush1.bf16.msra.mxu0 %v1764
    %2004 = vmatprep.subr.bf16.mxu0 0
    %2005 = vmatpush1.bf16.msra.mxu0 %v1765
    %2006 = vmatprep.subr.bf16.mxu0 0
    %2007 = vmatpush1.bf16.msra.mxu0 0
    %2008 = vmatprep.subr.bf16.mxu0 0
    %2009 = vmatpush1.bf16.msra.mxu0 0
    %2010 = vmatprep.subr.bf16.mxu0 0
    %2011 = vmatpush1.bf16.msra.mxu0 0
    %2012 = vmatprep.subr.bf16.mxu0 0
    %2013 = vmatpush1.bf16.msra.mxu0 0
    %2014 = vmatprep.subr.bf16.mxu0 0
    %2015 = vmatpush1.bf16.msra.mxu0 0
    %2016 = vmatprep.subr.bf16.mxu0 0
    %2017 = vmatpush1.bf16.msra.mxu0 0
    %2018 = vmatprep.subr.bf16.mxu0 0
    %2019 = vmatpush1.bf16.msra.mxu0 0
    %2020 = vmatprep.subr.bf16.mxu0 0
    %2021 = vmatpush1.bf16.msra.mxu0 0
    %2022 = vmatprep.subr.bf16.mxu0 0
    %2023 = vmatpush1.bf16.msra.mxu0 0
    %2024 = vmatprep.subr.bf16.mxu0 0
    %2025 = vmatpush1.bf16.msra.mxu0 0
    %2026 = vmatprep.subr.bf16.mxu0 0
    %2027 = vmatpush1.bf16.msra.mxu0 0
    %2028 = vmatprep.subr.bf16.mxu0 0
    %2029 = vmatpush1.bf16.msra.mxu0 0
    %2030 = vmatprep.subr.bf16.mxu0 0
    %2031 = vmatpush1.bf16.msra.mxu0 0
    %2032 = vmatprep.subr.bf16.mxu0 0
    %2033 = vmatpush1.bf16.msra.mxu0 0
    %2034 = vmatprep.mubr.bf16.mxu0 0
    %2035 = vmatmul.mubr.bf16.gmra.mrb[0].mxu0 %v2000
    %v2036 = vpop.f32.mrb[0].mxu0
    %v2037 = vadd.f32 0.0, %v2036
    %v2038 = vpop.f32.mrb[0].mxu0
    %v2039 = vpop.f32.mrb[0].mxu0
    %v2040 = vpop.f32.mrb[0].mxu0
    %2041 = vdwg.mxu0
    %v2042 = vadd.f32 %v1994, %v2037
    %v2043 = vxor.u32 %v2042, 2147483648
    %v2044 = vmul.f32 %v2043, 1.442695
    %v2045 = vpow.pop %v2044
    %v2046 = vadd.f32 %v2045, 1.0
    %v2047 = vrcp.pop %v2046
    %v2048 = vmul.f32 1.0, %v2047
    %v2049 = vtanh.pop %v2042
    %v2050 = vmul.f32 %v2048, %v1982
    %2052 = vrot.lane.b32.xlu0 %v2049, 64
    %v2053 = vpop.permute.xlu0 %2052
    %v2055 = vmul.f32 %v2048, %v2053
    %2057 = vrot.lane.b32.xlu0 %v2055, 32
    %v2058 = vpop.permute.xlu0 %2057
    %v2060 = vadd.f32 %v2050, %v2058
    %v2061 = vtanh.pop %v2060
    %2063 = vrot.lane.b32.xlu0 %v2061, 64
    %v2064 = vpop.permute.xlu0 %2063
    %v2066 = vmul.f32 %v2048, %v2064
    %2068 = vrot.lane.b32.xlu0 %v2066, 32
    %v2069 = vpop.permute.xlu0 %2068
    %2071 = vst.msk [vmem:[%s556] sm:$0xff] %vm137, %v2069
    %v2072 = vld [vmem:[%s558] sm:$0xff]
    %v2073 = vpack.c.bf16 %v2066, %v2066
    %2075 = vrot.lane.b32.xlu0 %v2073, 32
    %v2076 = vpop.permute.xlu0 %2075
    %v2078 = vsel %vm137, %v2076, 0
    %2080 = vmatprep.subr.bf16.mxu0 0
    %2081 = vmatpush1.bf16.msra.mxu0 %v1764
    %2082 = vmatprep.subr.bf16.mxu0 0
    %2083 = vmatpush1.bf16.msra.mxu0 %v1765
    %2084 = vmatprep.subr.bf16.mxu0 0
    %2085 = vmatpush1.bf16.msra.mxu0 0
    %2086 = vmatprep.subr.bf16.mxu0 0
    %2087 = vmatpush1.bf16.msra.mxu0 0
    %2088 = vmatprep.subr.bf16.mxu0 0
    %2089 = vmatpush1.bf16.msra.mxu0 0
    %2090 = vmatprep.subr.bf16.mxu0 0
    %2091 = vmatpush1.bf16.msra.mxu0 0
    %2092 = vmatprep.subr.bf16.mxu0 0
    %2093 = vmatpush1.bf16.msra.mxu0 0
    %2094 = vmatprep.subr.bf16.mxu0 0
    %2095 = vmatpush1.bf16.msra.mxu0 0
    %2096 = vmatprep.subr.bf16.mxu0 0
    %2097 = vmatpush1.bf16.msra.mxu0 0
    %2098 = vmatprep.subr.bf16.mxu0 0
    %2099 = vmatpush1.bf16.msra.mxu0 0
    %2100 = vmatprep.subr.bf16.mxu0 0
    %2101 = vmatpush1.bf16.msra.mxu0 0
    %2102 = vmatprep.subr.bf16.mxu0 0
    %2103 = vmatpush1.bf16.msra.mxu0 0
    %2104 = vmatprep.subr.bf16.mxu0 0
    %2105 = vmatpush1.bf16.msra.mxu0 0
    %2106 = vmatprep.subr.bf16.mxu0 0
    %2107 = vmatpush1.bf16.msra.mxu0 0
    %2108 = vmatprep.subr.bf16.mxu0 0
    %2109 = vmatpush1.bf16.msra.mxu0 0
    %2110 = vmatprep.subr.bf16.mxu0 0
    %2111 = vmatpush1.bf16.msra.mxu0 0
    %2112 = vmatprep.mubr.bf16.mxu0 0
    %2113 = vmatmul.mubr.bf16.gmra.mrb[0].mxu0 %v2078
    %v2114 = vpop.f32.mrb[0].mxu0
    %v2115 = vadd.f32 0.0, %v2114
    %v2116 = vpop.f32.mrb[0].mxu0
    %v2117 = vpop.f32.mrb[0].mxu0
    %v2118 = vpop.f32.mrb[0].mxu0
    %2119 = vdwg.mxu0
    %v2120 = vadd.f32 %v2072, %v2115
    %v2121 = vxor.u32 %v2120, 2147483648
    %v2122 = vmul.f32 %v2121, 1.442695
    %v2123 = vpow.pop %v2122
    %v2124 = vadd.f32 %v2123, 1.0
    %v2125 = vrcp.pop %v2124
    %v2126 = vmul.f32 1.0, %v2125
    %v2127 = vtanh.pop %v2120
    %v2128 = vmul.f32 %v2126, %v2060
    %2130 = vrot.lane.b32.xlu0 %v2127, 64
    %v2131 = vpop.permute.xlu0 %2130
    %v2133 = vmul.f32 %v2126, %v2131
    %2135 = vrot.lane.b32.xlu0 %v2133, 32
    %v2136 = vpop.permute.xlu0 %2135
    %v2138 = vadd.f32 %v2128, %v2136
    %v2139 = vtanh.pop %v2138
    %2141 = vrot.lane.b32.xlu0 %v2139, 64
    %v2142 = vpop.permute.xlu0 %2141
    %v2144 = vmul.f32 %v2126, %v2142
    %2146 = vrot.lane.b32.xlu0 %v2144, 32
    %v2147 = vpop.permute.xlu0 %2146
    %2149 = vst.msk [vmem:[%s636] sm:$0xff] %vm137, %v2147
    %v2150 = vld [vmem:[%s638] sm:$0xff]
    %v2151 = vpack.c.bf16 %v2144, %v2144
    %2153 = vrot.lane.b32.xlu0 %v2151, 32
    %v2154 = vpop.permute.xlu0 %2153
    %v2156 = vsel %vm137, %v2154, 0
    %2158 = vmatprep.subr.bf16.mxu0 0
    %2159 = vmatpush1.bf16.msra.mxu0 %v1764
    %2160 = vmatprep.subr.bf16.mxu0 0
    %2161 = vmatpush1.bf16.msra.mxu0 %v1765
    %2162 = vmatprep.subr.bf16.mxu0 0
    %2163 = vmatpush1.bf16.msra.mxu0 0
    %2164 = vmatprep.subr.bf16.mxu0 0
    %2165 = vmatpush1.bf16.msra.mxu0 0
    %2166 = vmatprep.subr.bf16.mxu0 0
    %2167 = vmatpush1.bf16.msra.mxu0 0
    %2168 = vmatprep.subr.bf16.mxu0 0
    %2169 = vmatpush1.bf16.msra.mxu0 0
    %2170 = vmatprep.subr.bf16.mxu0 0
    %2171 = vmatpush1.bf16.msra.mxu0 0
    %2172 = vmatprep.subr.bf16.mxu0 0
    %2173 = vmatpush1.bf16.msra.mxu0 0
    %2174 = vmatprep.subr.bf16.mxu0 0
    %2175 = vmatpush1.bf16.msra.mxu0 0
    %2176 = vmatprep.subr.bf16.mxu0 0
    %2177 = vmatpush1.bf16.msra.mxu0 0
    %2178 = vmatprep.subr.bf16.mxu0 0
    %2179 = vmatpush1.bf16.msra.mxu0 0
    %2180 = vmatprep.subr.bf16.mxu0 0
    %2181 = vmatpush1.bf16.msra.mxu0 0
    %2182 = vmatprep.subr.bf16.mxu0 0
    %2183 = vmatpush1.bf16.msra.mxu0 0
    %2184 = vmatprep.subr.bf16.mxu0 0
    %2185 = vmatpush1.bf16.msra.mxu0 0
    %2186 = vmatprep.subr.bf16.mxu0 0
    %2187 = vmatpush1.bf16.msra.mxu0 0
    %2188 = vmatprep.subr.bf16.mxu0 0
    %2189 = vmatpush1.bf16.msra.mxu0 0
    %2190 = vmatprep.mubr.bf16.mxu0 0
    %2191 = vmatmul.mubr.bf16.gmra.mrb[0].mxu0 %v2156
    %v2192 = vpop.f32.mrb[0].mxu0
    %v2193 = vadd.f32 0.0, %v2192
    %v2194 = vpop.f32.mrb[0].mxu0
    %v2195 = vpop.f32.mrb[0].mxu0
    %v2196 = vpop.f32.mrb[0].mxu0
    %2197 = vdwg.mxu0
    %v2198 = vadd.f32 %v2150, %v2193
    %v2199 = vxor.u32 %v2198, 2147483648
    %v2200 = vmul.f32 %v2199, 1.442695
    %v2201 = vpow.pop %v2200
    %v2202 = vadd.f32 %v2201, 1.0
    %v2203 = vrcp.pop %v2202
    %v2204 = vmul.f32 1.0, %v2203
    %v2205 = vtanh.pop %v2198
    %v2206 = vmul.f32 %v2204, %v2138
    %2208 = vrot.lane.b32.xlu0 %v2205, 64
    %v2209 = vpop.permute.xlu0 %2208
    %v2211 = vmul.f32 %v2204, %v2209
    %2213 = vrot.lane.b32.xlu0 %v2211, 32
    %v2214 = vpop.permute.xlu0 %2213
    %v2216 = vadd.f32 %v2206, %v2214
    %v2217 = vtanh.pop %v2216
    %2219 = vrot.lane.b32.xlu0 %v2217, 64
    %v2220 = vpop.permute.xlu0 %2219
    %v2222 = vmul.f32 %v2204, %v2220
    %2224 = vrot.lane.b32.xlu0 %v2222, 32
    %v2225 = vpop.permute.xlu0 %2224
    %2227 = vst.msk [vmem:[%s716] sm:$0xff] %vm137, %v2225
    %v2228 = vld [vmem:[%s718] sm:$0xff]
    %v2229 = vpack.c.bf16 %v2222, %v2222
    %2231 = vrot.lane.b32.xlu0 %v2229, 32
    %v2232 = vpop.permute.xlu0 %2231
    %v2234 = vsel %vm137, %v2232, 0
    %2236 = vmatprep.subr.bf16.mxu0 0
    %2237 = vmatpush1.bf16.msra.mxu0 %v1764
    %2238 = vmatprep.subr.bf16.mxu0 0
    %2239 = vmatpush1.bf16.msra.mxu0 %v1765
    %2240 = vmatprep.subr.bf16.mxu0 0
    %2241 = vmatpush1.bf16.msra.mxu0 0
    %2242 = vmatprep.subr.bf16.mxu0 0
    %2243 = vmatpush1.bf16.msra.mxu0 0
    %2244 = vmatprep.subr.bf16.mxu0 0
    %2245 = vmatpush1.bf16.msra.mxu0 0
    %2246 = vmatprep.subr.bf16.mxu0 0
    %2247 = vmatpush1.bf16.msra.mxu0 0
    %2248 = vmatprep.subr.bf16.mxu0 0
    %2249 = vmatpush1.bf16.msra.mxu0 0
    %2250 = vmatprep.subr.bf16.mxu0 0
    %2251 = vmatpush1.bf16.msra.mxu0 0
    %2252 = vmatprep.subr.bf16.mxu0 0
    %2253 = vmatpush1.bf16.msra.mxu0 0
    %2254 = vmatprep.subr.bf16.mxu0 0
    %2255 = vmatpush1.bf16.msra.mxu0 0
    %2256 = vmatprep.subr.bf16.mxu0 0
    %2257 = vmatpush1.bf16.msra.mxu0 0
    %2258 = vmatprep.subr.bf16.mxu0 0
    %2259 = vmatpush1.bf16.msra.mxu0 0
    %2260 = vmatprep.subr.bf16.mxu0 0
    %2261 = vmatpush1.bf16.msra.mxu0 0
    %2262 = vmatprep.subr.bf16.mxu0 0
    %2263 = vmatpush1.bf16.msra.mxu0 0
    %2264 = vmatprep.subr.bf16.mxu0 0
    %2265 = vmatpush1.bf16.msra.mxu0 0
    %2266 = vmatprep.subr.bf16.mxu0 0
    %2267 = vmatpush1.bf16.msra.mxu0 0
    %2268 = vmatprep.mubr.bf16.mxu0 0
    %2269 = vmatmul.mubr.bf16.gmra.mrb[0].mxu0 %v2234
    %v2270 = vpop.f32.mrb[0].mxu0
    %v2271 = vadd.f32 0.0, %v2270
    %v2272 = vpop.f32.mrb[0].mxu0
    %v2273 = vpop.f32.mrb[0].mxu0
    %v2274 = vpop.f32.mrb[0].mxu0
    %2275 = vdwg.mxu0
    %v2276 = vadd.f32 %v2228, %v2271
    %v2277 = vxor.u32 %v2276, 2147483648
    %v2278 = vmul.f32 %v2277, 1.442695
    %v2279 = vpow.pop %v2278
    %v2280 = vadd.f32 %v2279, 1.0
    %v2281 = vrcp.pop %v2280
    %v2282 = vmul.f32 1.0, %v2281
    %v2283 = vtanh.pop %v2276
    %v2284 = vmul.f32 %v2282, %v2216
    %2286 = vrot.lane.b32.xlu0 %v2283, 64
    %v2287 = vpop.permute.xlu0 %2286
    %v2289 = vmul.f32 %v2282, %v2287
    %2291 = vrot.lane.b32.xlu0 %v2289, 32
    %v2292 = vpop.permute.xlu0 %2291
    %v2294 = vadd.f32 %v2284, %v2292
    %v2295 = vtanh.pop %v2294
    %2297 = vrot.lane.b32.xlu0 %v2295, 64
    %v2298 = vpop.permute.xlu0 %2297
    %v2300 = vmul.f32 %v2282, %v2298
    %2302 = vrot.lane.b32.xlu0 %v2300, 32
    %v2303 = vpop.permute.xlu0 %2302
    %2305 = vst.msk [vmem:[%s796] sm:$0xff] %vm137, %v2303
    %v2306 = vld [vmem:[%s798] sm:$0xff]
    %v2307 = vpack.c.bf16 %v2300, %v2300
    %2309 = vrot.lane.b32.xlu0 %v2307, 32
    %v2310 = vpop.permute.xlu0 %2309
    %v2312 = vsel %vm137, %v2310, 0
    %2314 = vmatprep.subr.bf16.mxu0 0
    %2315 = vmatpush1.bf16.msra.mxu0 %v1764
    %2316 = vmatprep.subr.bf16.mxu0 0
    %2317 = vmatpush1.bf16.msra.mxu0 %v1765
    %2318 = vmatprep.subr.bf16.mxu0 0
    %2319 = vmatpush1.bf16.msra.mxu0 0
    %2320 = vmatprep.subr.bf16.mxu0 0
    %2321 = vmatpush1.bf16.msra.mxu0 0
    %2322 = vmatprep.subr.bf16.mxu0 0
    %2323 = vmatpush1.bf16.msra.mxu0 0
    %2324 = vmatprep.subr.bf16.mxu0 0
    %2325 = vmatpush1.bf16.msra.mxu0 0
    %2326 = vmatprep.subr.bf16.mxu0 0
    %2327 = vmatpush1.bf16.msra.mxu0 0
    %2328 = vmatprep.subr.bf16.mxu0 0
    %2329 = vmatpush1.bf16.msra.mxu0 0
    %2330 = vmatprep.subr.bf16.mxu0 0
    %2331 = vmatpush1.bf16.msra.mxu0 0
    %2332 = vmatprep.subr.bf16.mxu0 0
    %2333 = vmatpush1.bf16.msra.mxu0 0
    %2334 = vmatprep.subr.bf16.mxu0 0
    %2335 = vmatpush1.bf16.msra.mxu0 0
    %2336 = vmatprep.subr.bf16.mxu0 0
    %2337 = vmatpush1.bf16.msra.mxu0 0
    %2338 = vmatprep.subr.bf16.mxu0 0
    %2339 = vmatpush1.bf16.msra.mxu0 0
    %2340 = vmatprep.subr.bf16.mxu0 0
    %2341 = vmatpush1.bf16.msra.mxu0 0
    %2342 = vmatprep.subr.bf16.mxu0 0
    %2343 = vmatpush1.bf16.msra.mxu0 0
    %2344 = vmatprep.subr.bf16.mxu0 0
    %2345 = vmatpush1.bf16.msra.mxu0 0
    %2346 = vmatprep.mubr.bf16.mxu0 0
    %2347 = vmatmul.mubr.bf16.gmra.mrb[0].mxu0 %v2312
    %v2348 = vpop.f32.mrb[0].mxu0
    %v2349 = vadd.f32 0.0, %v2348
    %v2350 = vpop.f32.mrb[0].mxu0
    %v2351 = vpop.f32.mrb[0].mxu0
    %v2352 = vpop.f32.mrb[0].mxu0
    %2353 = vdwg.mxu0
    %v2354 = vadd.f32 %v2306, %v2349
    %v2355 = vxor.u32 %v2354, 2147483648
    %v2356 = vmul.f32 %v2355, 1.442695
    %v2357 = vpow.pop %v2356
    %v2358 = vadd.f32 %v2357, 1.0
    %v2359 = vrcp.pop %v2358
    %v2360 = vmul.f32 1.0, %v2359
    %v2361 = vtanh.pop %v2354
    %v2362 = vmul.f32 %v2360, %v2294
    %2364 = vrot.lane.b32.xlu0 %v2361, 64
    %v2365 = vpop.permute.xlu0 %2364
    %v2367 = vmul.f32 %v2360, %v2365
    %2369 = vrot.lane.b32.xlu0 %v2367, 32
    %v2370 = vpop.permute.xlu0 %2369
    %v2372 = vadd.f32 %v2362, %v2370
    %v2373 = vtanh.pop %v2372
    %2375 = vrot.lane.b32.xlu0 %v2373, 64
    %v2376 = vpop.permute.xlu0 %2375
    %v2378 = vmul.f32 %v2360, %v2376
    %2380 = vrot.lane.b32.xlu0 %v2378, 32
    %v2381 = vpop.permute.xlu0 %2380
    %2383 = vst.msk [vmem:[%s876] sm:$0xff] %vm137, %v2381
    %v2384 = vld [vmem:[#allocation2] sm:$0xff]
    %v2385 = vld [vmem:[#allocation2 + $0x8] sm:$0xff]
    %v2386 = vld [vmem:[#allocation2 + $0x10] sm:$0xff]
    %v2387 = vld [vmem:[#allocation2 + $0x18] sm:$0xff]
    %v2388 = vld [vmem:[#allocation2 + $0x20] sm:$0xff]
    %v2389 = vld [vmem:[#allocation2 + $0x28] sm:$0xff]
    %v2390 = vld [vmem:[#allocation2 + $0x30] sm:$0xff]
    %v2391 = vld [vmem:[#allocation2 + $0x38] sm:$0xff]
    %v2392 = vpack.c.bf16 %v2385, %v2384
    %v2393 = vpack.c.bf16 %v2387, %v2386
    %v2394 = vpack.c.bf16 %v2389, %v2388
    %v2395 = vpack.c.bf16 %v2391, %v2390
    %v2396 = vld [vmem:[#allocation9] sm:$0xf]
    %v2397 = vld [vmem:[#allocation9 + $0x4] sm:$0xf]
    %v2398 = vld [vmem:[#allocation9 + $0x8] sm:$0xf]
    %v2399 = vld [vmem:[#allocation9 + $0xc] sm:$0xf]
    %v2400 = vld [vmem:[%s12] sm:$0x1]
    %v2402 = vlaneseq
    %v2403 = vshrl.u32 %v2402, 7
    %v2404 = vsub.s32 0, %v2403
    %v2405 = vrot.slane %v2400, %v2404
    %v2411 = vunpack.c.l.b16 %v2396
    %v2412 = vunpack.c.l.b16 %v2397
    %v2413 = vunpack.c.l.b16 %v2398
    %v2414 = vunpack.c.l.b16 %v2399
    %v2415 = vpack.c.b16 %v2412, %v2411
    %v2416 = vpack.c.b16 %v2414, %v2413
    %v2420 = vsel %vm137, %v2392, 0
    %v2423 = vsel %vm137, %v2393, 0
    %v2426 = vsel %vm137, %v2394, 0
    %v2429 = vsel %vm137, %v2395, 0
    %2431 = vmatprep.subr.bf16.mxu0 0
    %2432 = vmatpush1.bf16.msra.mxu0 %v2415
    %2433 = vmatprep.subr.bf16.mxu0 0
    %2434 = vmatpush1.bf16.msra.mxu0 %v2416
    %2435 = vmatprep.subr.bf16.mxu0 0
    %2436 = vmatpush1.bf16.msra.mxu0 0
    %2437 = vmatprep.subr.bf16.mxu0 0
    %2438 = vmatpush1.bf16.msra.mxu0 0
    %2439 = vmatprep.subr.bf16.mxu0 0
    %2440 = vmatpush1.bf16.msra.mxu0 0
    %2441 = vmatprep.subr.bf16.mxu0 0
    %2442 = vmatpush1.bf16.msra.mxu0 0
    %2443 = vmatprep.subr.bf16.mxu0 0
    %2444 = vmatpush1.bf16.msra.mxu0 0
    %2445 = vmatprep.subr.bf16.mxu0 0
    %2446 = vmatpush1.bf16.msra.mxu0 0
    %2447 = vmatprep.subr.bf16.mxu0 0
    %2448 = vmatpush1.bf16.msra.mxu0 0
    %2449 = vmatprep.subr.bf16.mxu0 0
    %2450 = vmatpush1.bf16.msra.mxu0 0
    %2451 = vmatprep.subr.bf16.mxu0 0
    %2452 = vmatpush1.bf16.msra.mxu0 0
    %2453 = vmatprep.subr.bf16.mxu0 0
    %2454 = vmatpush1.bf16.msra.mxu0 0
    %2455 = vmatprep.subr.bf16.mxu0 0
    %2456 = vmatpush1.bf16.msra.mxu0 0
    %2457 = vmatprep.subr.bf16.mxu0 0
    %2458 = vmatpush1.bf16.msra.mxu0 0
    %2459 = vmatprep.subr.bf16.mxu0 0
    %2460 = vmatpush1.bf16.msra.mxu0 0
    %2461 = vmatprep.subr.bf16.mxu0 0
    %2462 = vmatpush1.bf16.msra.mxu0 0
    %2463 = vmatprep.mubr.bf16.mxu0 0
    %2464 = vmatmul.mubr.bf16.gmra.mrb[0].mxu0 %v2420
    %v2465 = vpop.f32.mrb[0].mxu0
    %v2466 = vadd.f32 %v2405, %v2465
    %v2467 = vpop.f32.mrb[0].mxu0
    %v2468 = vpop.f32.mrb[0].mxu0
    %v2469 = vadd.f32 %v2405, %v2468
    %v2470 = vpop.f32.mrb[0].mxu0
    %2471 = vmatprep.mubr.bf16.mxu0 0
    %2472 = vmatmul.mubr.bf16.gmra.mrb[0].mxu0 %v2423
    %v2473 = vpop.f32.mrb[0].mxu0
    %v2474 = vadd.f32 %v2405, %v2473
    %v2475 = vpop.f32.mrb[0].mxu0
    %v2476 = vpop.f32.mrb[0].mxu0
    %v2477 = vadd.f32 %v2405, %v2476
    %v2478 = vpop.f32.mrb[0].mxu0
    %2479 = vmatprep.mubr.bf16.mxu0 0
    %2480 = vmatmul.mubr.bf16.gmra.mrb[0].mxu0 %v2426
    %v2481 = vpop.f32.mrb[0].mxu0
    %v2482 = vadd.f32 %v2405, %v2481
    %v2483 = vpop.f32.mrb[0].mxu0
    %v2484 = vpop.f32.mrb[0].mxu0
    %v2485 = vadd.f32 %v2405, %v2484
    %v2486 = vpop.f32.mrb[0].mxu0
    %2487 = vmatprep.mubr.bf16.mxu0 0
    %2488 = vmatmul.mubr.bf16.gmra.mrb[0].mxu0 %v2429
    %v2489 = vpop.f32.mrb[0].mxu0
    %v2490 = vadd.f32 %v2405, %v2489
    %v2491 = vpop.f32.mrb[0].mxu0
    %v2492 = vpop.f32.mrb[0].mxu0
    %v2493 = vadd.f32 %v2405, %v2492
    %v2494 = vpop.f32.mrb[0].mxu0
    %2495 = vdwg.mxu0
    %2496 = vst [vmem:[#allocation10] sm:$0xff] %v2466
    %2497 = vst [vmem:[#allocation10 + $0x8] sm:$0xff] %v2469
    %2498 = vst [vmem:[#allocation10 + $0x10] sm:$0xff] %v2474
    %2499 = vst [vmem:[#allocation10 + $0x18] sm:$0xff] %v2477
    %2500 = vst [vmem:[#allocation10 + $0x20] sm:$0xff] %v2482
    %2501 = vst [vmem:[#allocation10 + $0x28] sm:$0xff] %v2485
    %2502 = vst [vmem:[#allocation10 + $0x30] sm:$0xff] %v2490
    %2503 = vst [vmem:[#allocation10 + $0x38] sm:$0xff] %v2493
    // Predicated region
    $region66: #{tpu_custom_call.1} parent=1 // pred_check
      _
    $region67: #{tpu_custom_call.1} parent=1 // pred_check_branch
      %2505 = sbr.rel (0) target = $region69
    $region68: #{tpu_custom_call.1} parent=1 // pred_region
      %s2507 = ssub.s32 1024, 1024
      %2508 = vsyncadd [#allocation6], %s2507
      %s2509 = sshll.u32 [#allocation10], 4
      %s2510 = int_to_ptr.vmem [resolvable:$true] %s2509
      %2515 = dma.vmem_to_hbm [thread:$0]  %s2510, 1024, %s13, [#allocation6], 128, 128, 8
    $region69: #{tpu_custom_call.1} parent=1 // pred_fallthru
      _
    // Predicated region
    $region70: #{tpu_custom_call.1} parent=1 // pred_check
      _
    $region71: #{tpu_custom_call.1} parent=1 // pred_check_branch
      %2517 = sbr.rel (0) target = $region73
    $region72: #{tpu_custom_call.1} parent=1 // pred_region
      %2518 = dma.done [#allocation6], 1024
    $region73: #{tpu_custom_call.1} parent=1 // pred_fallthru
      _
    %2519 = vsyncpa [#allocation5], 1
    %2520 = vsyncpa [#allocation8], 1
    %2521 = vsyncpa [#allocation6], 1

</llo_original>
